<compile_context>
chip_gen: v6e
topology: v6e:2x2x1
jax: 0.10.0
libtpu: 0.0.40
codegen_flags: <defaults>
</compile_context>

<pallas_src>
import functools

import jax
import jax.numpy as jnp
from jax import lax
from jax.experimental import pallas as pl
from jax.experimental.pallas import tpu as pltpu


def _silu(y):
    # sigmoid's exp/recip ride the EUP slot, freeing the VALU for the BN affine.
    return y * jax.nn.sigmoid(y)


# --------------------------------------------------------------------------------------
# Fused kernel: conv1(1x1)+BN+SiLU -> cascaded max-pool pyramid -> conv2(1x1)+BN+SiLU
# --------------------------------------------------------------------------------------
def _spp_fused_kernel(x_ref, w1_ref, s1_ref, b1_ref, w2_ref, s2_ref, b2_ref,
                      o_ref, acc_ref, *, width, inc_kernels):
    c = pl.program_id(1)

    @pl.when(c == 0)
    def _():
        acc_ref[...] = jnp.zeros_like(acc_ref)

    # ---- conv1 (1x1) + BN affine + SiLU for this hidden-channel slice ------------------
    x = x_ref[...]                                                   # (H*W, Cin), compute dtype
    y = jnp.dot(x, w1_ref[...], preferred_element_type=jnp.float32)  # MXU, f32 accumulate
    y = _silu(y * s1_ref[...] + b1_ref[...]).astype(x.dtype)         # (H*W, tc)

    hw, tc = y.shape
    W = width

    # ---- stride-1, "same"-padded max pools on the flattened (H*W, tc) layout -----------
    # H-direction shifts are plain +/- d*W row shifts with -inf fill (the fill is exactly
    # the out-of-image region).  W-direction shifts additionally need a per-position column
    # mask so a shift never leaks across image-row boundaries.  Masks are built once.
    col = lax.broadcasted_iota(jnp.int32, (hw, 1), 0) % W
    p_max = max([k // 2 for k in inc_kernels], default=0)
    ok_fwd = {d: col < (W - d) for d in range(1, p_max + 1)}
    ok_bwd = {d: col >= d for d in range(1, p_max + 1)}

    def shift_up(a, d):       # out[i] = a[i + d]; rows shifted past the end become -inf
        if d >= hw:
            return jnp.full_like(a, -jnp.inf)
        return jnp.concatenate([a[d:], jnp.full((d, tc), -jnp.inf, a.dtype)], axis=0)

    def shift_down(a, d):     # out[i] = a[i - d]; rows shifted before the start become -inf
        if d >= hw:
            return jnp.full_like(a, -jnp.inf)
        return jnp.concatenate([jnp.full((d, tc), -jnp.inf, a.dtype), a[:hw - d]], axis=0)

    # TODO(synk): the +/-d shifts could ride the XLU via pltpu.roll + the same masks; the
    # concat-of-slices lowering is kept because it is proven and the kernel is MXU/DMA bound.

    def pool_w(a, k):         # 1-D max filter along W (within an image row), pad = -inf
        out = a
        for d in range(1, k // 2 + 1):
            fwd = jnp.where(ok_fwd[d], shift_up(a, d), -jnp.inf)
            bwd = jnp.where(ok_bwd[d], shift_down(a, d), -jnp.inf)
            out = jnp.maximum(out, jnp.maximum(fwd, bwd))
        return out

    def pool_h(a, k):         # 1-D max filter along H (across image rows), pad = -inf
        out = a
        for d in range(1, k // 2 + 1):
            out = jnp.maximum(out, jnp.maximum(shift_up(a, d * W), shift_down(a, d * W)))
        return out

    # ---- pyramid groups, each contracted immediately against its conv2 weight slice ----
    acc = acc_ref[...]
    feat = y
    acc = acc + jnp.dot(feat, w2_ref[0], preferred_element_type=jnp.float32)   # identity group
    for g, k in enumerate(inc_kernels):
        # cascade: pooling the previous pool == pooling y with the next pyramid kernel
        feat = pool_h(pool_w(feat, k), k)
        acc = acc + jnp.dot(feat, w2_ref[g + 1], preferred_element_type=jnp.float32)
    acc_ref[...] = acc

    # ---- conv2 BN affine + SiLU on the completed accumulator ---------------------------
    @pl.when(c == pl.num_programs(1) - 1)
    def _():
        yo = acc_ref[...] * s2_ref[...] + b2_ref[...]
        o_ref[...] = _silu(yo).astype(o_ref.dtype)


# --------------------------------------------------------------------------------------
# Tile selection + wrapper
# --------------------------------------------------------------------------------------
def _pick_tc_and_vmem(hw, cin, hidden, outs, n_groups, act_bytes, out_bytes):
    """Largest hidden-channel tile (full, or a multiple of 128, dividing `hidden`) whose
    estimated VMEM footprint fits a ~20 MiB budget.  Returns (tc, vmem_limit_bytes)."""
    def est(tc):
        return (2 * hw * cin * act_bytes                # x tile (double-buffered)
                + 2 * cin * tc * act_bytes              # w1 slice
                + 2 * n_groups * tc * outs * act_bytes  # w2 slices
                + hw * outs * 4                         # f32 accumulator scratch
                + 2 * hw * outs * out_bytes             # output tile (double-buffered)
                + 8 * hw * tc * 4                       # y / pooled-feature / shift temporaries
                + hw * outs * 4)                        # accumulator live value
    cands = sorted({hidden} | {t for t in range(128, hidden, 128) if hidden % t == 0},
                   reverse=True)
    budget = 20 * 1024 * 1024
    tc = cands[-1]
    for t in cands:
        if est(t) <= budget:
            tc = t
            break
    e = est(tc)
    vmem_limit = None if e <= 12 * 1024 * 1024 else int(min(1.5 * e, 64 * 1024 * 1024))
    return tc, vmem_limit


def spp_fused(x_flat, w1, s1, b1, w2, s2, b2, *, hw_dims, kernels=(5, 9, 13),
              out_dtype=jnp.float32):
    """x_flat: (N, H*W, Cin) activations (channels on lanes).  w1: (Cin, hidden),
    w2: ((len(kernels)+1)*hidden, outs) rows ordered [identity, pool_k1, pool_k2, ...].
    Returns (N, H*W, outs)."""
    N, HW, Cin = x_flat.shape
    H, W = hw_dims
    assert HW == H * W
    hidden = w1.shape[1]
    outs = w2.shape[1]
    n_groups = len(kernels) + 1
    assert w2.shape[0] == n_groups * hidden

    # Incremental kernel sizes: pool_{k_i}(x) == pool_{inc_i}(pool_{k_{i-1}}(x))
    inc, prev = [], 1
    for k in kernels:
        assert k % 2 == 1 and k > prev, "SPP cascade requires increasing odd kernels"
        inc.append(k - prev + 1)
        prev = k

    act_b = jnp.dtype(x_flat.dtype).itemsize
    out_b = jnp.dtype(out_dtype).itemsize
    tc, vmem_limit = _pick_tc_and_vmem(HW, Cin, hidden, outs, n_groups, act_b, out_b)
    n_ct = hidden // tc

    w2r = w2.reshape(n_groups, hidden, outs)          # per-group weight slices

    # TODO(synk): extremely large H*W*Cin tiles would need spatial tiling with pooling
    # halos; not needed at SPP's deep-stride feature-map sizes.
    out = pl.pallas_call(
        functools.partial(_spp_fused_kernel, width=W, inc_kernels=tuple(inc)),
        out_shape=jax.ShapeDtypeStruct((N, HW, outs), out_dtype),
        grid=(N, n_ct),
        in_specs=[
            pl.BlockSpec((None, HW, Cin), lambda n, c: (n, 0, 0)),       # x: resident per image
            pl.BlockSpec((Cin, tc), lambda n, c: (0, c)),                # w1 slice
            pl.BlockSpec((1, tc), lambda n, c: (0, c)),                  # conv1 BN scale
            pl.BlockSpec((1, tc), lambda n, c: (0, c)),                  # conv1 BN bias
            pl.BlockSpec((n_groups, tc, outs), lambda n, c: (0, c, 0)),  # w2 slices
            pl.BlockSpec((1, outs), lambda n, c: (0, 0)),                # conv2 BN scale
            pl.BlockSpec((1, outs), lambda n, c: (0, 0)),                # conv2 BN bias
        ],
        out_specs=pl.BlockSpec((None, HW, outs), lambda n, c: (n, 0, 0)),
        scratch_shapes=[pltpu.VMEM((HW, outs), jnp.float32)],
        compiler_params=pltpu.CompilerParams(
            dimension_semantics=("parallel", "arbitrary"),
            vmem_limit_bytes=vmem_limit),
    )(x_flat, w1,
      s1.reshape(1, hidden).astype(jnp.float32), b1.reshape(1, hidden).astype(jnp.float32),
      w2r,
      s2.reshape(1, outs).astype(jnp.float32), b2.reshape(1, outs).astype(jnp.float32))
    return out


# --------------------------------------------------------------------------------------
# Parameter init (deterministic, synthetic; BN folded into scale/bias as in eval mode)
# --------------------------------------------------------------------------------------
def init_spp_params(key, ins, outs, kernels=(5, 9, 13), eps=1e-5):
    hidden = ins // 2
    c2in = hidden * (len(kernels) + 1)
    ks = jax.random.split(key, 10)

    def bn_affine(kg, kb, km, kv, c):
        gamma = 1.0 + 0.1 * jax.random.normal(kg, (c,))
        beta = 0.1 * jax.random.normal(kb, (c,))
        running_mean = 0.1 * jax.random.normal(km, (c,))
        running_var = jax.nn.softplus(jax.random.normal(kv, (c,))) + 0.5
        scale = gamma / jnp.sqrt(running_var + eps)
        bias = beta - running_mean * scale
        return scale.astype(jnp.float32), bias.astype(jnp.float32)

    # w stored as (Cin, Cout) = torch_conv.weight[:, :, 0, 0].T
    w1 = (0.2 * jax.random.normal(ks[0], (ins, hidden))).astype(jnp.float32)
    s1, b1 = bn_affine(ks[1], ks[2], ks[3], ks[4], hidden)
    w2 = (0.2 * jax.random.normal(ks[5], (c2in, outs))).astype(jnp.float32)
    s2, b2 = bn_affine(ks[6], ks[7], ks[8], ks[9], outs)
    return dict(w1=w1, s1=s1, b1=b1, w2=w2, s2=s2, b2=b2)


# --------------------------------------------------------------------------------------
# Forward (Pallas) and pure-JAX reference
# --------------------------------------------------------------------------------------
def spp_forward(x_nchw, p, kernels=(5, 9, 13), compute_dtype=jnp.float32):
    cd = compute_dtype
    x = jnp.transpose(x_nchw, (0, 2, 3, 1))           # NCHW -> NHWC (channels on lanes)
    N, H, W, Cin = x.shape
    outs = p["w2"].shape[1]
    # Activations/weights fed to the MXU in `compute_dtype` (bf16 on v6e/v7x halves HBM
    # traffic and keeps the MXU at full rate); all accumulation stays f32.
    z = spp_fused(x.reshape(N, H * W, Cin).astype(cd),
                  p["w1"].astype(cd), p["s1"], p["b1"],
                  p["w2"].astype(cd), p["s2"], p["b2"],
                  hw_dims=(H, W), kernels=kernels, out_dtype=jnp.float32)
    z = z.reshape(N, H, W, outs)
    return jnp.transpose(z, (0, 3, 1, 2))             # NHWC -> NCHW


def spp_reference(x_nchw, p, kernels=(5, 9, 13), compute_dtype=jnp.float32):
    cd = compute_dtype
    x = jnp.transpose(x_nchw, (0, 2, 3, 1))

    def cba(z, w, s, b):
        y = jnp.einsum("nhwc,co->nhwo", z.astype(cd), w.astype(cd),
                       preferred_element_type=jnp.float32)
        y = y * s + b
        return y * jax.nn.sigmoid(y)

    y = cba(x, p["w1"], p["s1"], p["b1"]).astype(cd)
    pools = [y] + [
        lax.reduce_window(y, jnp.array(-jnp.inf, y.dtype), lax.max,
                          (1, k, k, 1), (1, 1, 1, 1),
                          [(0, 0), (k // 2, k // 2), (k // 2, k // 2), (0, 0)])
        for k in kernels
    ]
    y = jnp.concatenate(pools, axis=-1)
    y = cba(y, p["w2"], p["s2"], p["b2"])
    return jnp.transpose(y, (0, 3, 1, 2))


if __name__ == "__main__":
    key = jax.random.PRNGKey(0)
    k_x, k_p = jax.random.split(key)

    N, INS, H, W = 2, 8, 16, 16
    OUTS = 8
    x = jax.random.normal(k_x, (N, INS, H, W), dtype=jnp.float32)   # NCHW, like PyTorch
    params = init_spp_params(k_p, INS, OUTS)

    # f32 path: strict check against the pure-JAX reference.
    out = jax.block_until_ready(spp_forward(x, params, compute_dtype=jnp.float32))
    ref = jax.block_until_ready(spp_reference(x, params, compute_dtype=jnp.float32))
    assert out.shape == (N, OUTS, H, W), out.shape
    assert jnp.allclose(out, ref, atol=1e-4, rtol=1e-4), float(jnp.max(jnp.abs(out - ref)))

    # bf16-fed MXU path (recommended on v6e/v7x): loose check against a matching reference.
    out_bf = jax.block_until_ready(spp_forward(x, params, compute_dtype=jnp.bfloat16))
    ref_bf = jax.block_until_ready(spp_reference(x, params, compute_dtype=jnp.bfloat16))
    assert out_bf.shape == (N, OUTS, H, W), out_bf.shape
    assert jnp.allclose(out_bf, ref_bf, atol=5e-2, rtol=5e-2), \
        float(jnp.max(jnp.abs(out_bf - ref_bf)))

    print("KERNEL_OK")
</pallas_src>

<mosaic_0001>
module attributes {stable_mosaic.version = 11 : i64} {
  func.func @_spp_fused_kernel(%arg0: i32, %arg1: i32, %arg2: memref<1x256x8xf32, #tpu.memory_space<vmem>>, %arg3: memref<8x4xf32, #tpu.memory_space<vmem>>, %arg4: memref<1x4xf32, #tpu.memory_space<vmem>>, %arg5: memref<1x4xf32, #tpu.memory_space<vmem>>, %arg6: memref<4x4x8xf32, #tpu.memory_space<vmem>>, %arg7: memref<1x8xf32, #tpu.memory_space<vmem>>, %arg8: memref<1x8xf32, #tpu.memory_space<vmem>>, %arg9: memref<1x256x8xf32, #tpu.memory_space<vmem>>, %arg10: memref<256x8xf32, #tpu.memory_space<vmem>>) attributes {dimension_semantics = [#tpu.dimension_semantics<parallel>, #tpu.dimension_semantics<arbitrary>], iteration_bounds = array<i64: 2, 1>, scalar_prefetch = 0 : i64, scratch_operands = 1 : i64, tpu.core_type = #tpu.core_type<tc>, window_params = [{transform_indices = @transform_0, window_bounds = array<i64: 1, 256, 8>}, {transform_indices = @transform_1, window_bounds = array<i64: 8, 4>}, {transform_indices = @transform_2, window_bounds = array<i64: 1, 4>}, {transform_indices = @transform_3, window_bounds = array<i64: 1, 4>}, {transform_indices = @transform_4, window_bounds = array<i64: 4, 4, 8>}, {pipeline_mode = #tpu.pipeline_mode<synchronous>, transform_indices = @transform_5, window_bounds = array<i64: 1, 8>}, {pipeline_mode = #tpu.pipeline_mode<synchronous>, transform_indices = @transform_6, window_bounds = array<i64: 1, 8>}, {transform_indices = @transform_7, window_bounds = array<i64: 1, 256, 8>}]} {
    %c0_i32 = arith.constant 0 : i32
    %0 = arith.cmpi eq, %arg1, %c0_i32 : i32
    %1 = arith.extui %0 : i1 to i32
    %c0_i32_0 = arith.constant 0 : i32
    %2 = arith.cmpi ne, %1, %c0_i32_0 : i32
    scf.if %2 {
      %cst_70 = arith.constant 0.000000e+00 : f32
      %209 = vector.broadcast %cst_70 : f32 to vector<256x8xf32>
      %c0_71 = arith.constant 0 : index
      %c0_72 = arith.constant 0 : index
      %210 = vector.load %arg10[%c0_71, %c0_72] : memref<256x8xf32, #tpu.memory_space<vmem>>, vector<256x8xf32>
      tpu.vector_store %arg10[%c0_71, %c0_72], %209 {strides = array<i32>} : memref<256x8xf32, #tpu.memory_space<vmem>>, vector<256x8xf32>,
    } else {
    }
    %c0 = arith.constant 0 : index
    %c0_1 = arith.constant 0 : index
    %c0_2 = arith.constant 0 : index
    %3 = vector.load %arg2[%c0, %c0_1, %c0_2] : memref<1x256x8xf32, #tpu.memory_space<vmem>>, vector<1x256x8xf32>
    %4 = vector.shape_cast %3 : vector<1x256x8xf32> to vector<256x8xf32>
    %c0_3 = arith.constant 0 : index
    %c0_4 = arith.constant 0 : index
    %5 = vector.load %arg3[%c0_3, %c0_4] : memref<8x4xf32, #tpu.memory_space<vmem>>, vector<8x4xf32>
    %cst = arith.constant dense<0.000000e+00> : vector<256x4xf32>
    %6 = tpu.matmul %4, %5, %cst {dimension_numbers = #tpu.dot_dimension_numbers<[1], [0], [0], [1], [0, 0, 1, 1], [], []>} : vector<256x8xf32>, vector<8x4xf32>, vector<256x4xf32> -> vector<256x4xf32>
    %c0_5 = arith.constant 0 : index
    %c0_6 = arith.constant 0 : index
    %7 = vector.load %arg4[%c0_5, %c0_6] : memref<1x4xf32, #tpu.memory_space<vmem>>, vector<1x4xf32>
    %8 = vector.broadcast %7 : vector<1x4xf32> to vector<256x4xf32>
    %9 = arith.mulf %6, %8 : vector<256x4xf32>
    %c0_7 = arith.constant 0 : index
    %c0_8 = arith.constant 0 : index
    %10 = vector.load %arg5[%c0_7, %c0_8] : memref<1x4xf32, #tpu.memory_space<vmem>>, vector<1x4xf32>
    %11 = vector.broadcast %10 : vector<1x4xf32> to vector<256x4xf32>
    %12 = arith.addf %9, %11 : vector<256x4xf32>
    %13 = arith.negf %12 : vector<256x4xf32>
    %14 = math.exp %13 : vector<256x4xf32>
    %cst_9 = arith.constant 1.000000e+00 : f32
    %15 = vector.broadcast %cst_9 : f32 to vector<256x4xf32>
    %16 = arith.addf %15, %14 : vector<256x4xf32>
    %17 = arith.divf %15, %16 : vector<256x4xf32>
    %18 = arith.mulf %12, %17 : vector<256x4xf32>
    %19 = tpu.iota {dimensions = array<i32: 0>} : vector<256x1xi32>
    %c16_i32 = arith.constant 16 : i32
    %c0_i32_10 = arith.constant 0 : i32
    %20 = arith.cmpi eq, %c16_i32, %c0_i32_10 : i32
    %c1_i32 = arith.constant 1 : i32
    %21 = arith.select %20, %c1_i32, %c16_i32 : i32
    %22 = vector.broadcast %21 : i32 to vector<256x1xi32>
    %23 = arith.remsi %19, %22 : vector<256x1xi32>
    %c0_i32_11 = arith.constant 0 : i32
    %24 = vector.broadcast %c0_i32_11 : i32 to vector<256x1xi32>
    %25 = arith.cmpi ne, %23, %24 : vector<256x1xi32>
    %c0_i32_12 = arith.constant 0 : i32
    %26 = vector.broadcast %c0_i32_12 : i32 to vector<256x1xi32>
    %27 = arith.cmpi slt, %23, %26 : vector<256x1xi32>
    %c0_i32_13 = arith.constant 0 : i32
    %28 = arith.cmpi slt, %21, %c0_i32_13 : i32
    %29 = vector.broadcast %28 : i1 to vector<256x1xi1>
    %30 = vector.broadcast %29 : vector<256x1xi1> to vector<256x1xi1>
    %31 = arith.xori %27, %30 : vector<256x1xi1>
    %32 = arith.andi %31, %25 : vector<256x1xi1>
    %33 = vector.broadcast %21 : i32 to vector<256x1xi32>
    %34 = arith.addi %23, %33 : vector<256x1xi32>
    %35 = arith.select %32, %34, %23 : vector<256x1xi1>, vector<256x1xi32>
    %c15_i32 = arith.constant 15 : i32
    %36 = vector.broadcast %c15_i32 : i32 to vector<256x1xi32>
    %37 = arith.cmpi slt, %35, %36 : vector<256x1xi32>
    %c14_i32 = arith.constant 14 : i32
    %38 = vector.broadcast %c14_i32 : i32 to vector<256x1xi32>
    %39 = arith.cmpi slt, %35, %38 : vector<256x1xi32>
    %c1_i32_14 = arith.constant 1 : i32
    %40 = vector.broadcast %c1_i32_14 : i32 to vector<256x1xi32>
    %41 = arith.cmpi sge, %35, %40 : vector<256x1xi32>
    %c2_i32 = arith.constant 2 : i32
    %42 = vector.broadcast %c2_i32 : i32 to vector<256x1xi32>
    %43 = arith.cmpi sge, %35, %42 : vector<256x1xi32>
    %c0_15 = arith.constant 0 : index
    %c0_16 = arith.constant 0 : index
    %44 = vector.load %arg10[%c0_15, %c0_16] : memref<256x8xf32, #tpu.memory_space<vmem>>, vector<256x8xf32>
    %c0_17 = arith.constant 0 : index
    %c0_18 = arith.constant 0 : index
    %c0_19 = arith.constant 0 : index
    %45 = vector.load %arg6[%c0_17, %c0_18, %c0_19] : memref<4x4x8xf32, #tpu.memory_space<vmem>>, vector<1x4x8xf32>
    %46 = vector.shape_cast %45 : vector<1x4x8xf32> to vector<4x8xf32>
    %cst_20 = arith.constant dense<0.000000e+00> : vector<256x8xf32>
    %47 = tpu.matmul %18, %46, %cst_20 {dimension_numbers = #tpu.dot_dimension_numbers<[1], [0], [0], [1], [0, 0, 1, 1], [], []>} : vector<256x4xf32>, vector<4x8xf32>, vector<256x8xf32> -> vector<256x8xf32>
    %48 = arith.addf %44, %47 : vector<256x8xf32>
    %49 = vector.extract_strided_slice %18 {offsets = [1, 0], sizes = [255, 4], strides = [1, 1]} : vector<256x4xf32> to vector<255x4xf32>
    %cst_21 = arith.constant 0xFF800000 : f32
    %50 = vector.broadcast %cst_21 : f32 to vector<1x4xf32>
    %51 = tpu.concatenate %49, %50 in 0 : vector<255x4xf32>, vector<1x4xf32> -> vector<256x4xf32>
    %cst_22 = arith.constant 0xFF800000 : f32
    %52 = vector.shape_cast %37 : vector<256x1xi1> to vector<256x1xi1>
    %53 = vector.broadcast %52 : vector<256x1xi1> to vector<256x4xi1>
    %54 = vector.broadcast %cst_22 : f32 to vector<256x4xf32>
    %55 = arith.select %53, %51, %54 : vector<256x4xi1>, vector<256x4xf32>
    %cst_23 = arith.constant 0xFF800000 : f32
    %56 = vector.broadcast %cst_23 : f32 to vector<1x4xf32>
    %57 = vector.extract_strided_slice %18 {offsets = [0, 0], sizes = [255, 4], strides = [1, 1]} : vector<256x4xf32> to vector<255x4xf32>
    %58 = tpu.concatenate %56, %57 in 0 : vector<1x4xf32>, vector<255x4xf32> -> vector<256x4xf32>
    %cst_24 = arith.constant 0xFF800000 : f32
    %59 = vector.shape_cast %41 : vector<256x1xi1> to vector<256x1xi1>
    %60 = vector.broadcast %59 : vector<256x1xi1> to vector<256x4xi1>
    %61 = vector.broadcast %cst_24 : f32 to vector<256x4xf32>
    %62 = arith.select %60, %58, %61 : vector<256x4xi1>, vector<256x4xf32>
    %63 = arith.maximumf %55, %62 : vector<256x4xf32>
    %64 = arith.maximumf %18, %63 : vector<256x4xf32>
    %65 = vector.extract_strided_slice %18 {offsets = [2, 0], sizes = [254, 4], strides = [1, 1]} : vector<256x4xf32> to vector<254x4xf32>
    %cst_25 = arith.constant 0xFF800000 : f32
    %66 = vector.broadcast %cst_25 : f32 to vector<2x4xf32>
    %67 = tpu.concatenate %65, %66 in 0 : vector<254x4xf32>, vector<2x4xf32> -> vector<256x4xf32>
    %cst_26 = arith.constant 0xFF800000 : f32
    %68 = vector.shape_cast %39 : vector<256x1xi1> to vector<256x1xi1>
    %69 = vector.broadcast %68 : vector<256x1xi1> to vector<256x4xi1>
    %70 = vector.broadcast %cst_26 : f32 to vector<256x4xf32>
    %71 = arith.select %69, %67, %70 : vector<256x4xi1>, vector<256x4xf32>
    %cst_27 = arith.constant 0xFF800000 : f32
    %72 = vector.broadcast %cst_27 : f32 to vector<2x4xf32>
    %73 = vector.extract_strided_slice %18 {offsets = [0, 0], sizes = [254, 4], strides = [1, 1]} : vector<256x4xf32> to vector<254x4xf32>
    %74 = tpu.concatenate %72, %73 in 0 : vector<2x4xf32>, vector<254x4xf32> -> vector<256x4xf32>
    %cst_28 = arith.constant 0xFF800000 : f32
    %75 = vector.shape_cast %43 : vector<256x1xi1> to vector<256x1xi1>
    %76 = vector.broadcast %75 : vector<256x1xi1> to vector<256x4xi1>
    %77 = vector.broadcast %cst_28 : f32 to vector<256x4xf32>
    %78 = arith.select %76, %74, %77 : vector<256x4xi1>, vector<256x4xf32>
    %79 = arith.maximumf %71, %78 : vector<256x4xf32>
    %80 = arith.maximumf %64, %79 : vector<256x4xf32>
    %81 = vector.extract_strided_slice %80 {offsets = [16, 0], sizes = [240, 4], strides = [1, 1]} : vector<256x4xf32> to vector<240x4xf32>
    %cst_29 = arith.constant 0xFF800000 : f32
    %82 = vector.broadcast %cst_29 : f32 to vector<16x4xf32>
    %83 = tpu.concatenate %81, %82 in 0 : vector<240x4xf32>, vector<16x4xf32> -> vector<256x4xf32>
    %cst_30 = arith.constant 0xFF800000 : f32
    %84 = vector.broadcast %cst_30 : f32 to vector<16x4xf32>
    %85 = vector.extract_strided_slice %80 {offsets = [0, 0], sizes = [240, 4], strides = [1, 1]} : vector<256x4xf32> to vector<240x4xf32>
    %86 = tpu.concatenate %84, %85 in 0 : vector<16x4xf32>, vector<240x4xf32> -> vector<256x4xf32>
    %87 = arith.maximumf %83, %86 : vector<256x4xf32>
    %88 = arith.maximumf %80, %87 : vector<256x4xf32>
    %89 = vector.extract_strided_slice %80 {offsets = [32, 0], sizes = [224, 4], strides = [1, 1]} : vector<256x4xf32> to vector<224x4xf32>
    %cst_31 = arith.constant 0xFF800000 : f32
    %90 = vector.broadcast %cst_31 : f32 to vector<32x4xf32>
    %91 = tpu.concatenate %89, %90 in 0 : vector<224x4xf32>, vector<32x4xf32> -> vector<256x4xf32>
    %cst_32 = arith.constant 0xFF800000 : f32
    %92 = vector.broadcast %cst_32 : f32 to vector<32x4xf32>
    %93 = vector.extract_strided_slice %80 {offsets = [0, 0], sizes = [224, 4], strides = [1, 1]} : vector<256x4xf32> to vector<224x4xf32>
    %94 = tpu.concatenate %92, %93 in 0 : vector<32x4xf32>, vector<224x4xf32> -> vector<256x4xf32>
    %95 = arith.maximumf %91, %94 : vector<256x4xf32>
    %96 = arith.maximumf %88, %95 : vector<256x4xf32>
    %c1 = arith.constant 1 : index
    %c0_33 = arith.constant 0 : index
    %c0_34 = arith.constant 0 : index
    %97 = vector.load %arg6[%c1, %c0_33, %c0_34] : memref<4x4x8xf32, #tpu.memory_space<vmem>>, vector<1x4x8xf32>
    %98 = vector.shape_cast %97 : vector<1x4x8xf32> to vector<4x8xf32>
    %cst_35 = arith.constant dense<0.000000e+00> : vector<256x8xf32>
    %99 = tpu.matmul %96, %98, %cst_35 {dimension_numbers = #tpu.dot_dimension_numbers<[1], [0], [0], [1], [0, 0, 1, 1], [], []>} : vector<256x4xf32>, vector<4x8xf32>, vector<256x8xf32> -> vector<256x8xf32>
    %100 = arith.addf %48, %99 : vector<256x8xf32>
    %101 = vector.extract_strided_slice %96 {offsets = [1, 0], sizes = [255, 4], strides = [1, 1]} : vector<256x4xf32> to vector<255x4xf32>
    %cst_36 = arith.constant 0xFF800000 : f32
    %102 = vector.broadcast %cst_36 : f32 to vector<1x4xf32>
    %103 = tpu.concatenate %101, %102 in 0 : vector<255x4xf32>, vector<1x4xf32> -> vector<256x4xf32>
    %cst_37 = arith.constant 0xFF800000 : f32
    %104 = vector.shape_cast %37 : vector<256x1xi1> to vector<256x1xi1>
    %105 = vector.broadcast %104 : vector<256x1xi1> to vector<256x4xi1>
    %106 = vector.broadcast %cst_37 : f32 to vector<256x4xf32>
    %107 = arith.select %105, %103, %106 : vector<256x4xi1>, vector<256x4xf32>
    %cst_38 = arith.constant 0xFF800000 : f32
    %108 = vector.broadcast %cst_38 : f32 to vector<1x4xf32>
    %109 = vector.extract_strided_slice %96 {offsets = [0, 0], sizes = [255, 4], strides = [1, 1]} : vector<256x4xf32> to vector<255x4xf32>
    %110 = tpu.concatenate %108, %109 in 0 : vector<1x4xf32>, vector<255x4xf32> -> vector<256x4xf32>
    %cst_39 = arith.constant 0xFF800000 : f32
    %111 = vector.shape_cast %41 : vector<256x1xi1> to vector<256x1xi1>
    %112 = vector.broadcast %111 : vector<256x1xi1> to vector<256x4xi1>
    %113 = vector.broadcast %cst_39 : f32 to vector<256x4xf32>
    %114 = arith.select %112, %110, %113 : vector<256x4xi1>, vector<256x4xf32>
    %115 = arith.maximumf %107, %114 : vector<256x4xf32>
    %116 = arith.maximumf %96, %115 : vector<256x4xf32>
    %117 = vector.extract_strided_slice %96 {offsets = [2, 0], sizes = [254, 4], strides = [1, 1]} : vector<256x4xf32> to vector<254x4xf32>
    %cst_40 = arith.constant 0xFF800000 : f32
    %118 = vector.broadcast %cst_40 : f32 to vector<2x4xf32>
    %119 = tpu.concatenate %117, %118 in 0 : vector<254x4xf32>, vector<2x4xf32> -> vector<256x4xf32>
    %cst_41 = arith.constant 0xFF800000 : f32
    %120 = vector.shape_cast %39 : vector<256x1xi1> to vector<256x1xi1>
    %121 = vector.broadcast %120 : vector<256x1xi1> to vector<256x4xi1>
    %122 = vector.broadcast %cst_41 : f32 to vector<256x4xf32>
    %123 = arith.select %121, %119, %122 : vector<256x4xi1>, vector<256x4xf32>
    %cst_42 = arith.constant 0xFF800000 : f32
    %124 = vector.broadcast %cst_42 : f32 to vector<2x4xf32>
    %125 = vector.extract_strided_slice %96 {offsets = [0, 0], sizes = [254, 4], strides = [1, 1]} : vector<256x4xf32> to vector<254x4xf32>
    %126 = tpu.concatenate %124, %125 in 0 : vector<2x4xf32>, vector<254x4xf32> -> vector<256x4xf32>
    %cst_43 = arith.constant 0xFF800000 : f32
    %127 = vector.shape_cast %43 : vector<256x1xi1> to vector<256x1xi1>
    %128 = vector.broadcast %127 : vector<256x1xi1> to vector<256x4xi1>
    %129 = vector.broadcast %cst_43 : f32 to vector<256x4xf32>
    %130 = arith.select %128, %126, %129 : vector<256x4xi1>, vector<256x4xf32>
    %131 = arith.maximumf %123, %130 : vector<256x4xf32>
    %132 = arith.maximumf %116, %131 : vector<256x4xf32>
    %133 = vector.extract_strided_slice %132 {offsets = [16, 0], sizes = [240, 4], strides = [1, 1]} : vector<256x4xf32> to vector<240x4xf32>
    %cst_44 = arith.constant 0xFF800000 : f32
    %134 = vector.broadcast %cst_44 : f32 to vector<16x4xf32>
    %135 = tpu.concatenate %133, %134 in 0 : vector<240x4xf32>, vector<16x4xf32> -> vector<256x4xf32>
    %cst_45 = arith.constant 0xFF800000 : f32
    %136 = vector.broadcast %cst_45 : f32 to vector<16x4xf32>
    %137 = vector.extract_strided_slice %132 {offsets = [0, 0], sizes = [240, 4], strides = [1, 1]} : vector<256x4xf32> to vector<240x4xf32>
    %138 = tpu.concatenate %136, %137 in 0 : vector<16x4xf32>, vector<240x4xf32> -> vector<256x4xf32>
    %139 = arith.maximumf %135, %138 : vector<256x4xf32>
    %140 = arith.maximumf %132, %139 : vector<256x4xf32>
    %141 = vector.extract_strided_slice %132 {offsets = [32, 0], sizes = [224, 4], strides = [1, 1]} : vector<256x4xf32> to vector<224x4xf32>
    %cst_46 = arith.constant 0xFF800000 : f32
    %142 = vector.broadcast %cst_46 : f32 to vector<32x4xf32>
    %143 = tpu.concatenate %141, %142 in 0 : vector<224x4xf32>, vector<32x4xf32> -> vector<256x4xf32>
    %cst_47 = arith.constant 0xFF800000 : f32
    %144 = vector.broadcast %cst_47 : f32 to vector<32x4xf32>
    %145 = vector.extract_strided_slice %132 {offsets = [0, 0], sizes = [224, 4], strides = [1, 1]} : vector<256x4xf32> to vector<224x4xf32>
    %146 = tpu.concatenate %144, %145 in 0 : vector<32x4xf32>, vector<224x4xf32> -> vector<256x4xf32>
    %147 = arith.maximumf %143, %146 : vector<256x4xf32>
    %148 = arith.maximumf %140, %147 : vector<256x4xf32>
    %c2 = arith.constant 2 : index
    %c0_48 = arith.constant 0 : index
    %c0_49 = arith.constant 0 : index
    %149 = vector.load %arg6[%c2, %c0_48, %c0_49] : memref<4x4x8xf32, #tpu.memory_space<vmem>>, vector<1x4x8xf32>
    %150 = vector.shape_cast %149 : vector<1x4x8xf32> to vector<4x8xf32>
    %cst_50 = arith.constant dense<0.000000e+00> : vector<256x8xf32>
    %151 = tpu.matmul %148, %150, %cst_50 {dimension_numbers = #tpu.dot_dimension_numbers<[1], [0], [0], [1], [0, 0, 1, 1], [], []>} : vector<256x4xf32>, vector<4x8xf32>, vector<256x8xf32> -> vector<256x8xf32>
    %152 = arith.addf %100, %151 : vector<256x8xf32>
    %153 = vector.extract_strided_slice %148 {offsets = [1, 0], sizes = [255, 4], strides = [1, 1]} : vector<256x4xf32> to vector<255x4xf32>
    %cst_51 = arith.constant 0xFF800000 : f32
    %154 = vector.broadcast %cst_51 : f32 to vector<1x4xf32>
    %155 = tpu.concatenate %153, %154 in 0 : vector<255x4xf32>, vector<1x4xf32> -> vector<256x4xf32>
    %cst_52 = arith.constant 0xFF800000 : f32
    %156 = vector.shape_cast %37 : vector<256x1xi1> to vector<256x1xi1>
    %157 = vector.broadcast %156 : vector<256x1xi1> to vector<256x4xi1>
    %158 = vector.broadcast %cst_52 : f32 to vector<256x4xf32>
    %159 = arith.select %157, %155, %158 : vector<256x4xi1>, vector<256x4xf32>
    %cst_53 = arith.constant 0xFF800000 : f32
    %160 = vector.broadcast %cst_53 : f32 to vector<1x4xf32>
    %161 = vector.extract_strided_slice %148 {offsets = [0, 0], sizes = [255, 4], strides = [1, 1]} : vector<256x4xf32> to vector<255x4xf32>
    %162 = tpu.concatenate %160, %161 in 0 : vector<1x4xf32>, vector<255x4xf32> -> vector<256x4xf32>
    %cst_54 = arith.constant 0xFF800000 : f32
    %163 = vector.shape_cast %41 : vector<256x1xi1> to vector<256x1xi1>
    %164 = vector.broadcast %163 : vector<256x1xi1> to vector<256x4xi1>
    %165 = vector.broadcast %cst_54 : f32 to vector<256x4xf32>
    %166 = arith.select %164, %162, %165 : vector<256x4xi1>, vector<256x4xf32>
    %167 = arith.maximumf %159, %166 : vector<256x4xf32>
    %168 = arith.maximumf %148, %167 : vector<256x4xf32>
    %169 = vector.extract_strided_slice %148 {offsets = [2, 0], sizes = [254, 4], strides = [1, 1]} : vector<256x4xf32> to vector<254x4xf32>
    %cst_55 = arith.constant 0xFF800000 : f32
    %170 = vector.broadcast %cst_55 : f32 to vector<2x4xf32>
    %171 = tpu.concatenate %169, %170 in 0 : vector<254x4xf32>, vector<2x4xf32> -> vector<256x4xf32>
    %cst_56 = arith.constant 0xFF800000 : f32
    %172 = vector.shape_cast %39 : vector<256x1xi1> to vector<256x1xi1>
    %173 = vector.broadcast %172 : vector<256x1xi1> to vector<256x4xi1>
    %174 = vector.broadcast %cst_56 : f32 to vector<256x4xf32>
    %175 = arith.select %173, %171, %174 : vector<256x4xi1>, vector<256x4xf32>
    %cst_57 = arith.constant 0xFF800000 : f32
    %176 = vector.broadcast %cst_57 : f32 to vector<2x4xf32>
    %177 = vector.extract_strided_slice %148 {offsets = [0, 0], sizes = [254, 4], strides = [1, 1]} : vector<256x4xf32> to vector<254x4xf32>
    %178 = tpu.concatenate %176, %177 in 0 : vector<2x4xf32>, vector<254x4xf32> -> vector<256x4xf32>
    %cst_58 = arith.constant 0xFF800000 : f32
    %179 = vector.shape_cast %43 : vector<256x1xi1> to vector<256x1xi1>
    %180 = vector.broadcast %179 : vector<256x1xi1> to vector<256x4xi1>
    %181 = vector.broadcast %cst_58 : f32 to vector<256x4xf32>
    %182 = arith.select %180, %178, %181 : vector<256x4xi1>, vector<256x4xf32>
    %183 = arith.maximumf %175, %182 : vector<256x4xf32>
    %184 = arith.maximumf %168, %183 : vector<256x4xf32>
    %185 = vector.extract_strided_slice %184 {offsets = [16, 0], sizes = [240, 4], strides = [1, 1]} : vector<256x4xf32> to vector<240x4xf32>
    %cst_59 = arith.constant 0xFF800000 : f32
    %186 = vector.broadcast %cst_59 : f32 to vector<16x4xf32>
    %187 = tpu.concatenate %185, %186 in 0 : vector<240x4xf32>, vector<16x4xf32> -> vector<256x4xf32>
    %cst_60 = arith.constant 0xFF800000 : f32
    %188 = vector.broadcast %cst_60 : f32 to vector<16x4xf32>
    %189 = vector.extract_strided_slice %184 {offsets = [0, 0], sizes = [240, 4], strides = [1, 1]} : vector<256x4xf32> to vector<240x4xf32>
    %190 = tpu.concatenate %188, %189 in 0 : vector<16x4xf32>, vector<240x4xf32> -> vector<256x4xf32>
    %191 = arith.maximumf %187, %190 : vector<256x4xf32>
    %192 = arith.maximumf %184, %191 : vector<256x4xf32>
    %193 = vector.extract_strided_slice %184 {offsets = [32, 0], sizes = [224, 4], strides = [1, 1]} : vector<256x4xf32> to vector<224x4xf32>
    %cst_61 = arith.constant 0xFF800000 : f32
    %194 = vector.broadcast %cst_61 : f32 to vector<32x4xf32>
    %195 = tpu.concatenate %193, %194 in 0 : vector<224x4xf32>, vector<32x4xf32> -> vector<256x4xf32>
    %cst_62 = arith.constant 0xFF800000 : f32
    %196 = vector.broadcast %cst_62 : f32 to vector<32x4xf32>
    %197 = vector.extract_strided_slice %184 {offsets = [0, 0], sizes = [224, 4], strides = [1, 1]} : vector<256x4xf32> to vector<224x4xf32>
    %198 = tpu.concatenate %196, %197 in 0 : vector<32x4xf32>, vector<224x4xf32> -> vector<256x4xf32>
    %199 = arith.maximumf %195, %198 : vector<256x4xf32>
    %200 = arith.maximumf %192, %199 : vector<256x4xf32>
    %c3 = arith.constant 3 : index
    %c0_63 = arith.constant 0 : index
    %c0_64 = arith.constant 0 : index
    %201 = vector.load %arg6[%c3, %c0_63, %c0_64] : memref<4x4x8xf32, #tpu.memory_space<vmem>>, vector<1x4x8xf32>
    %202 = vector.shape_cast %201 : vector<1x4x8xf32> to vector<4x8xf32>
    %cst_65 = arith.constant dense<0.000000e+00> : vector<256x8xf32>
    %203 = tpu.matmul %200, %202, %cst_65 {dimension_numbers = #tpu.dot_dimension_numbers<[1], [0], [0], [1], [0, 0, 1, 1], [], []>} : vector<256x4xf32>, vector<4x8xf32>, vector<256x8xf32> -> vector<256x8xf32>
    %204 = arith.addf %152, %203 : vector<256x8xf32>
    %c0_66 = arith.constant 0 : index
    %c0_67 = arith.constant 0 : index
    %205 = vector.load %arg10[%c0_66, %c0_67] : memref<256x8xf32, #tpu.memory_space<vmem>>, vector<256x8xf32>
    tpu.vector_store %arg10[%c0_66, %c0_67], %204 {strides = array<i32>} : memref<256x8xf32, #tpu.memory_space<vmem>>, vector<256x8xf32>,
    %c0_i32_68 = arith.constant 0 : i32
    %206 = arith.cmpi eq, %arg1, %c0_i32_68 : i32
    %207 = arith.extui %206 : i1 to i32
    %c0_i32_69 = arith.constant 0 : i32
    %208 = arith.cmpi ne, %207, %c0_i32_69 : i32
    scf.if %208 {
      %c0_70 = arith.constant 0 : index
      %c0_71 = arith.constant 0 : index
      %209 = vector.load %arg10[%c0_70, %c0_71] : memref<256x8xf32, #tpu.memory_space<vmem>>, vector<256x8xf32>
      %c0_72 = arith.constant 0 : index
      %c0_73 = arith.constant 0 : index
      %210 = vector.load %arg7[%c0_72, %c0_73] : memref<1x8xf32, #tpu.memory_space<vmem>>, vector<1x8xf32>
      %211 = vector.broadcast %210 : vector<1x8xf32> to vector<256x8xf32>
      %212 = arith.mulf %209, %211 : vector<256x8xf32>
      %c0_74 = arith.constant 0 : index
      %c0_75 = arith.constant 0 : index
      %213 = vector.load %arg8[%c0_74, %c0_75] : memref<1x8xf32, #tpu.memory_space<vmem>>, vector<1x8xf32>
      %214 = vector.broadcast %213 : vector<1x8xf32> to vector<256x8xf32>
      %215 = arith.addf %212, %214 : vector<256x8xf32>
      %216 = arith.negf %215 : vector<256x8xf32>
      %217 = math.exp %216 : vector<256x8xf32>
      %cst_76 = arith.constant 1.000000e+00 : f32
      %218 = vector.broadcast %cst_76 : f32 to vector<256x8xf32>
      %219 = arith.addf %218, %217 : vector<256x8xf32>
      %220 = arith.divf %218, %219 : vector<256x8xf32>
      %221 = arith.mulf %215, %220 : vector<256x8xf32>
      %c0_77 = arith.constant 0 : index
      %c0_78 = arith.constant 0 : index
      %c0_79 = arith.constant 0 : index
      %222 = vector.load %arg9[%c0_77, %c0_78, %c0_79] : memref<1x256x8xf32, #tpu.memory_space<vmem>>, vector<1x256x8xf32>
      %223 = vector.shape_cast %222 : vector<1x256x8xf32> to vector<256x8xf32>
      %224 = vector.shape_cast %221 : vector<256x8xf32> to vector<1x256x8xf32>
      tpu.vector_store %arg9[%c0_77, %c0_78, %c0_79], %224 {strides = array<i32>} : memref<1x256x8xf32, #tpu.memory_space<vmem>>, vector<1x256x8xf32>,
    } else {
    }
    return
  }
  func.func @transform_0(%arg0: i32, %arg1: i32) -> (i32, i32, i32) {
    %c0_i32 = arith.constant 0 : i32
    %c0_i32_0 = arith.constant 0 : i32
    %c0_i32_1 = arith.constant 0 : i32
    return %arg0, %c0_i32, %c0_i32_0 : i32, i32, i32
  }
  func.func @transform_1(%arg0: i32, %arg1: i32) -> (i32, i32) {
    %c0_i32 = arith.constant 0 : i32
    %c0_i32_0 = arith.constant 0 : i32
    return %c0_i32, %arg1 : i32, i32
  }
  func.func @transform_2(%arg0: i32, %arg1: i32) -> (i32, i32) {
    %c0_i32 = arith.constant 0 : i32
    %c0_i32_0 = arith.constant 0 : i32
    return %c0_i32, %arg1 : i32, i32
  }
  func.func @transform_3(%arg0: i32, %arg1: i32) -> (i32, i32) {
    %c0_i32 = arith.constant 0 : i32
    %c0_i32_0 = arith.constant 0 : i32
    return %c0_i32, %arg1 : i32, i32
  }
  func.func @transform_4(%arg0: i32, %arg1: i32) -> (i32, i32, i32) {
    %c0_i32 = arith.constant 0 : i32
    %c0_i32_0 = arith.constant 0 : i32
    %c0_i32_1 = arith.constant 0 : i32
    return %c0_i32, %arg1, %c0_i32_0 : i32, i32, i32
  }
  func.func @transform_5(%arg0: i32, %arg1: i32) -> (i32, i32) {
    %c0_i32 = arith.constant 0 : i32
    %c0_i32_0 = arith.constant 0 : i32
    %c0_i32_1 = arith.constant 0 : i32
    return %c0_i32, %c0_i32_0 : i32, i32
  }
  func.func @transform_6(%arg0: i32, %arg1: i32) -> (i32, i32) {
    %c0_i32 = arith.constant 0 : i32
    %c0_i32_0 = arith.constant 0 : i32
    %c0_i32_1 = arith.constant 0 : i32
    return %c0_i32, %c0_i32_0 : i32, i32
  }
  func.func @transform_7(%arg0: i32, %arg1: i32) -> (i32, i32, i32) {
    %c0_i32 = arith.constant 0 : i32
    %c0_i32_0 = arith.constant 0 : i32
    %c0_i32_1 = arith.constant 0 : i32
    return %arg0, %c0_i32, %c0_i32_0 : i32, i32, i32
  }
}

</mosaic_0001>

<llo_original>
// kernel: tpu_custom_call.1
$region0: #{tpu_custom_call.1}
  #allocation0 [shape = 'u32[]', space=smem, size = 0x4, offset = 0x4, fixed_abs, tag = 'smem constant byte address 0x4 - core index']
  #allocation1 [shape = 'u32[144,128]{1,0:T(1,128)}', space=vmem, size = 0x12000, scoped, tag = 'internal scratch']
  #allocation2 [shape = 'f32[256,8]{1,0:T(8,128)}', space=vmem, size = 0x20000, scoped, tag = 'scratch operand']
  %s0 = inlined_call_operand.vmem [shape: f32[2,256,8], index: 0, kind: input, shape index: {}]
  %s1 = inlined_call_operand.vmem [shape: f32[8,4], index: 1, kind: input, shape index: {}]
  %s2 = inlined_call_operand.vmem [shape: f32[1,4], index: 2, kind: input, shape index: {}]
  %s3 = inlined_call_operand.vmem [shape: f32[1,4], index: 3, kind: input, shape index: {}]
  %s4 = inlined_call_operand.vmem [shape: f32[4,4,8], index: 4, kind: input, shape index: {}]
  %s5 = inlined_call_operand.vmem [shape: f32[1,8], index: 5, kind: input, shape index: {}]
  %s6 = inlined_call_operand.vmem [shape: f32[1,8], index: 6, kind: input, shape index: {}]
  %s7 = inlined_call_operand.vmem [shape: f32[2,256,8], index: 7, kind: output, shape index: {}]
  %s8 = sld [smem:[#allocation0]]
  $region69: #{tpu_custom_call.1} parent=0
    _
  %s10 = ssub.s32 1, %s8
  %s11 = scalar_select 0, %s10, %s8
  loop: start=0, step=1, limit=4
  $region2: #{tpu_custom_call.1} parent=0 // loop_pre_header
    _
  $region3: #{tpu_custom_call.1} parent=0 // loop_header
    %s13 = sphi 0, %s17
    %p14 = scmp.ge.s32.totalorder %s13, 4
    %s20 = sphi 0, %s32
    %s21 = sphi 0, %s28
    %s22 = sphi 0, %s20
    %s23 = sphi 0, %s21
    %s24 = sphi 0, %s22
    %s25 = sphi 0, %s23
    %s35 = sphi 0, %s37
    %s38 = sphi 0, %s35
    %s39 = sphi 0, %s38
    %s55 = sphi 0, %s39
    %s61 = sphi 0, %s63
    %s64 = sphi 0, %s61
    %s65 = sphi 0, %s64
    %s81 = sphi 0, %s65
    %s87 = sphi 0, %s89
    %s90 = sphi 0, %s87
    %s91 = sphi 0, %s90
    %s107 = sphi 0, %s91
    %s113 = sphi 0, %s115
    %s116 = sphi 0, %s113
    %s117 = sphi 0, %s116
    %s133 = sphi 0, %s117
    %s139 = sphi 0, %s141
    %s142 = sphi 0, %s139
    %s143 = sphi 0, %s142
    %s159 = sphi 0, %s143
    %s163 = sphi 0, %s163
    %s165 = sphi 0, %s163
    %s166 = sphi 0, %s165
    %s180 = sphi 0, %s166
    %s184 = sphi 0, %s184
    %s186 = sphi 0, %s184
    %s187 = sphi 0, %s186
    %s201 = sphi 0, %s187
    %s207 = sphi 0, %s209
    %s210 = sphi 0, %s207
    %s211 = sphi 0, %s210
    %s227 = sphi 0, %s211
  $region4: #{tpu_custom_call.1} parent=0 // loop_header_branch
    %16 = sbr.rel (%p14) target = $region8
  $region5: #{tpu_custom_call.1} parent=0 // loop_body
    %s18 = ssub.s32 %s13, 1
    %s19 = ssub.s32 %s13, 2
    %s26 = sadd.s32 1, %s21
    %p27 = scmp.ge.s32.totalorder %s26, 1
    %s28 = scalar_select %p27, 0, %s26
    %s29 = sadd.s32 1, %s20
    %s30 = scalar_select %p27, %s29, %s20
    %p31 = scmp.ge.s32.totalorder %s30, 2
    %s32 = scalar_select %p31, 0, %s30
    %s33 = ssub.s32 %s20, %s32
    %p34 = scmp.eq.s32.totalorder %s33, 0
    %s36 = sadd.s32 %s35, 1
    %s37 = scalar_select %p34, %s35, %s36
    %p40 = pneg %p34
    %p41 = scmp.eq.s32.totalorder %s13, 1
    %p42 = por %p40, %p41
    %p43 = scmp.ne.s32.totalorder %s35, %s38
    %p44 = scmp.eq.s32.totalorder %s13, 0
    %p45 = por %p43, %p44
    %p46 = scmp.ne.s32.totalorder %s35, %s38
    %p47 = scmp.eq.s32.totalorder %s18, 1
    %p48 = por %p46, %p47
    %p49 = scmp.ne.s32.totalorder %s38, %s39
    %p50 = scmp.eq.s32.totalorder %s18, 0
    %p51 = por %p49, %p50
    %p52 = scmp.ne.s32.totalorder %s38, %s39
    %p53 = scmp.eq.s32.totalorder %s19, 1
    %p54 = por %p52, %p53
    %p56 = scmp.ne.s32.totalorder %s39, %s55
    %p57 = scmp.eq.s32.totalorder %s19, 0
    %p58 = por %p56, %p57
    %s59 = ssub.s32 %s21, %s28
    %p60 = scmp.eq.s32.totalorder %s59, 0
    %s62 = sadd.s32 %s61, 1
    %s63 = scalar_select %p60, %s61, %s62
    %p66 = pneg %p60
    %p67 = scmp.eq.s32.totalorder %s13, 1
    %p68 = por %p66, %p67
    %p69 = scmp.ne.s32.totalorder %s61, %s64
    %p70 = scmp.eq.s32.totalorder %s13, 0
    %p71 = por %p69, %p70
    %p72 = scmp.ne.s32.totalorder %s61, %s64
    %p73 = scmp.eq.s32.totalorder %s18, 1
    %p74 = por %p72, %p73
    %p75 = scmp.ne.s32.totalorder %s64, %s65
    %p76 = scmp.eq.s32.totalorder %s18, 0
    %p77 = por %p75, %p76
    %p78 = scmp.ne.s32.totalorder %s64, %s65
    %p79 = scmp.eq.s32.totalorder %s19, 1
    %p80 = por %p78, %p79
    %p82 = scmp.ne.s32.totalorder %s65, %s81
    %p83 = scmp.eq.s32.totalorder %s19, 0
    %p84 = por %p82, %p83
    %s85 = ssub.s32 %s21, %s28
    %p86 = scmp.eq.s32.totalorder %s85, 0
    %s88 = sadd.s32 %s87, 1
    %s89 = scalar_select %p86, %s87, %s88
    %p92 = pneg %p86
    %p93 = scmp.eq.s32.totalorder %s13, 1
    %p94 = por %p92, %p93
    %p95 = scmp.ne.s32.totalorder %s87, %s90
    %p96 = scmp.eq.s32.totalorder %s13, 0
    %p97 = por %p95, %p96
    %p98 = scmp.ne.s32.totalorder %s87, %s90
    %p99 = scmp.eq.s32.totalorder %s18, 1
    %p100 = por %p98, %p99
    %p101 = scmp.ne.s32.totalorder %s90, %s91
    %p102 = scmp.eq.s32.totalorder %s18, 0
    %p103 = por %p101, %p102
    %p104 = scmp.ne.s32.totalorder %s90, %s91
    %p105 = scmp.eq.s32.totalorder %s19, 1
    %p106 = por %p104, %p105
    %p108 = scmp.ne.s32.totalorder %s91, %s107
    %p109 = scmp.eq.s32.totalorder %s19, 0
    %p110 = por %p108, %p109
    %s111 = ssub.s32 %s21, %s28
    %p112 = scmp.eq.s32.totalorder %s111, 0
    %s114 = sadd.s32 %s113, 1
    %s115 = scalar_select %p112, %s113, %s114
    %p118 = pneg %p112
    %p119 = scmp.eq.s32.totalorder %s13, 1
    %p120 = por %p118, %p119
    %p121 = scmp.ne.s32.totalorder %s113, %s116
    %p122 = scmp.eq.s32.totalorder %s13, 0
    %p123 = por %p121, %p122
    %p124 = scmp.ne.s32.totalorder %s113, %s116
    %p125 = scmp.eq.s32.totalorder %s18, 1
    %p126 = por %p124, %p125
    %p127 = scmp.ne.s32.totalorder %s116, %s117
    %p128 = scmp.eq.s32.totalorder %s18, 0
    %p129 = por %p127, %p128
    %p130 = scmp.ne.s32.totalorder %s116, %s117
    %p131 = scmp.eq.s32.totalorder %s19, 1
    %p132 = por %p130, %p131
    %p134 = scmp.ne.s32.totalorder %s117, %s133
    %p135 = scmp.eq.s32.totalorder %s19, 0
    %p136 = por %p134, %p135
    %s137 = ssub.s32 %s21, %s28
    %p138 = scmp.eq.s32.totalorder %s137, 0
    %s140 = sadd.s32 %s139, 1
    %s141 = scalar_select %p138, %s139, %s140
    %p144 = pneg %p138
    %p145 = scmp.eq.s32.totalorder %s13, 1
    %p146 = por %p144, %p145
    %p147 = scmp.ne.s32.totalorder %s139, %s142
    %p148 = scmp.eq.s32.totalorder %s13, 0
    %p149 = por %p147, %p148
    %p150 = scmp.ne.s32.totalorder %s139, %s142
    %p151 = scmp.eq.s32.totalorder %s18, 1
    %p152 = por %p150, %p151
    %p153 = scmp.ne.s32.totalorder %s142, %s143
    %p154 = scmp.eq.s32.totalorder %s18, 0
    %p155 = por %p153, %p154
    %p156 = scmp.ne.s32.totalorder %s142, %s143
    %p157 = scmp.eq.s32.totalorder %s19, 1
    %p158 = por %p156, %p157
    %p160 = scmp.ne.s32.totalorder %s143, %s159
    %p161 = scmp.eq.s32.totalorder %s19, 0
    %p162 = por %p160, %p161
    %s164 = sadd.s32 %s163, 1
    %p167 = scmp.eq.s32.totalorder %s13, 1
    %p168 = scmp.ne.s32.totalorder %s163, %s165
    %p169 = scmp.eq.s32.totalorder %s13, 0
    %p170 = por %p168, %p169
    %p171 = scmp.ne.s32.totalorder %s163, %s165
    %p172 = scmp.eq.s32.totalorder %s18, 1
    %p173 = por %p171, %p172
    %p174 = scmp.ne.s32.totalorder %s165, %s166
    %p175 = scmp.eq.s32.totalorder %s18, 0
    %p176 = por %p174, %p175
    %p177 = scmp.ne.s32.totalorder %s165, %s166
    %p178 = scmp.eq.s32.totalorder %s19, 1
    %p179 = por %p177, %p178
    %p181 = scmp.ne.s32.totalorder %s166, %s180
    %p182 = scmp.eq.s32.totalorder %s19, 0
    %p183 = por %p181, %p182
    %s185 = sadd.s32 %s184, 1
    %p188 = scmp.eq.s32.totalorder %s13, 1
    %p189 = scmp.ne.s32.totalorder %s184, %s186
    %p190 = scmp.eq.s32.totalorder %s13, 0
    %p191 = por %p189, %p190
    %p192 = scmp.ne.s32.totalorder %s184, %s186
    %p193 = scmp.eq.s32.totalorder %s18, 1
    %p194 = por %p192, %p193
    %p195 = scmp.ne.s32.totalorder %s186, %s187
    %p196 = scmp.eq.s32.totalorder %s18, 0
    %p197 = por %p195, %p196
    %p198 = scmp.ne.s32.totalorder %s186, %s187
    %p199 = scmp.eq.s32.totalorder %s19, 1
    %p200 = por %p198, %p199
    %p202 = scmp.ne.s32.totalorder %s187, %s201
    %p203 = scmp.eq.s32.totalorder %s19, 0
    %p204 = por %p202, %p203
    %s205 = ssub.s32 %s20, %s32
    %p206 = scmp.eq.s32.totalorder %s205, 0
    %s208 = sadd.s32 %s207, 1
    %s209 = scalar_select %p206, %s207, %s208
    %p212 = pneg %p206
    %p213 = scmp.eq.s32.totalorder %s13, 1
    %p214 = por %p212, %p213
    %p215 = scmp.ne.s32.totalorder %s207, %s210
    %p216 = scmp.eq.s32.totalorder %s13, 0
    %p217 = por %p215, %p216
    %p218 = scmp.ne.s32.totalorder %s207, %s210
    %p219 = scmp.eq.s32.totalorder %s18, 1
    %p220 = por %p218, %p219
    %p221 = scmp.ne.s32.totalorder %s210, %s211
    %p222 = scmp.eq.s32.totalorder %s18, 0
    %p223 = por %p221, %p222
    %p224 = scmp.ne.s32.totalorder %s210, %s211
    %p225 = scmp.eq.s32.totalorder %s19, 1
    %p226 = por %p224, %p225
    %p228 = scmp.ne.s32.totalorder %s211, %s227
    %p229 = scmp.eq.s32.totalorder %s19, 0
    %p230 = por %p228, %p229
    %p231 = scmp.le.s32.totalorder 1, %s13
    %p232 = scmp.lt.s32.totalorder %s13, 3
    %p233 = pnand %p231, %p232
    %p234 = pneg %p233
    // Predicated region
    $region9: #{tpu_custom_call.1} parent=5 // pred_check
      _
    $region10: #{tpu_custom_call.1} parent=5 // pred_check_branch
      %236 = sbr.rel (%p233) target = $region12
    $region11: #{tpu_custom_call.1} parent=5 // pred_region
      %s237 = ssub.s32 %s13, 1
      // Predicated region
      $region13: #{tpu_custom_call.1} parent=11 // pred_check
        %p238 = pneg %p77
      $region14: #{tpu_custom_call.1} parent=11 // pred_check_branch
        %240 = sbr.rel (%p238) target = $region16
      $region15: #{tpu_custom_call.1} parent=11 // pred_region
        %p241 = scmp.lt.s32.totalorder %s23, 0
        %s242 = scalar_select %p241, %s23, 0
        %s243 = smul.addr %s242, 8
        %s244 = scalar_lea.vmem %s1, %s243
      $region16: #{tpu_custom_call.1} parent=11 // pred_fallthru
        _
      // Predicated region
      $region17: #{tpu_custom_call.1} parent=11 // pred_check
        %p245 = pneg %p103
      $region18: #{tpu_custom_call.1} parent=11 // pred_check_branch
        %247 = sbr.rel (%p245) target = $region20
      $region19: #{tpu_custom_call.1} parent=11 // pred_region
        %p248 = scmp.lt.s32.totalorder %s23, 0
        %s249 = scalar_select %p248, %s23, 0
        %s250 = scalar_lea.vmem %s2, %s249
      $region20: #{tpu_custom_call.1} parent=11 // pred_fallthru
        _
      // Predicated region
      $region21: #{tpu_custom_call.1} parent=11 // pred_check
        %p251 = pneg %p129
      $region22: #{tpu_custom_call.1} parent=11 // pred_check_branch
        %253 = sbr.rel (%p251) target = $region24
      $region23: #{tpu_custom_call.1} parent=11 // pred_region
        %p254 = scmp.lt.s32.totalorder %s23, 0
        %s255 = scalar_select %p254, %s23, 0
        %s256 = scalar_lea.vmem %s3, %s255
      $region24: #{tpu_custom_call.1} parent=11 // pred_fallthru
        _
      // Predicated region
      $region25: #{tpu_custom_call.1} parent=11 // pred_check
        %p257 = pneg %p155
      $region26: #{tpu_custom_call.1} parent=11 // pred_check_branch
        %259 = sbr.rel (%p257) target = $region28
      $region27: #{tpu_custom_call.1} parent=11 // pred_region
        %p260 = scmp.lt.s32.totalorder %s23, 0
        %s261 = scalar_select %p260, %s23, 0
        %s262 = smul.addr %s261, 4
        %s263 = scalar_lea.vmem %s4, %s262
      $region28: #{tpu_custom_call.1} parent=11 // pred_fallthru
        _
      // Predicated region
      $region29: #{tpu_custom_call.1} parent=11 // pred_check
        %p264 = pneg %p176
      $region30: #{tpu_custom_call.1} parent=11 // pred_check_branch
        %266 = sbr.rel (%p264) target = $region32
      $region31: #{tpu_custom_call.1} parent=11 // pred_region
        _
      $region32: #{tpu_custom_call.1} parent=11 // pred_fallthru
        _
      // Predicated region
      $region33: #{tpu_custom_call.1} parent=11 // pred_check
        %p267 = pneg %p197
      $region34: #{tpu_custom_call.1} parent=11 // pred_check_branch
        %269 = sbr.rel (%p267) target = $region36
      $region35: #{tpu_custom_call.1} parent=11 // pred_region
        _
      $region36: #{tpu_custom_call.1} parent=11 // pred_fallthru
        _
    $region12: #{tpu_custom_call.1} parent=5 // pred_fallthru
      _
    %p270 = scmp.lt.s32.totalorder %s13, 2
    // Predicated region
    $region37: #{tpu_custom_call.1} parent=5 // pred_check
      %p271 = pneg %p270
    $region38: #{tpu_custom_call.1} parent=5 // pred_check_branch
      %273 = sbr.rel (%p271) target = $region40
    $region39: #{tpu_custom_call.1} parent=5 // pred_region
      // Predicated region
      $region41: #{tpu_custom_call.1} parent=39 // pred_check
        %p274 = pneg %p45
      $region42: #{tpu_custom_call.1} parent=39 // pred_check_branch
        %276 = sbr.rel (%p274) target = $region44
      $region43: #{tpu_custom_call.1} parent=39 // pred_region
        %p277 = scmp.lt.s32.totalorder %s20, 1
        %s278 = scalar_select %p277, %s20, 1
        %s279 = smul.addr %s278, 32
        %s280 = smul.addr %s279, 8
        %s281 = scalar_lea.vmem %s0, %s280
      $region44: #{tpu_custom_call.1} parent=39 // pred_fallthru
        _
    $region40: #{tpu_custom_call.1} parent=5 // pred_fallthru
      _
    %p282 = scmp.le.s32.totalorder 1, %s13
    %p283 = scmp.lt.s32.totalorder %s13, 3
    %p284 = pnand %p282, %p283
    %p285 = pneg %p284
    // Predicated region
    $region45: #{tpu_custom_call.1} parent=5 // pred_check
      _
    $region46: #{tpu_custom_call.1} parent=5 // pred_check_branch
      %287 = sbr.rel (%p284) target = $region48
    $region47: #{tpu_custom_call.1} parent=5 // pred_region
      %s288 = ssub.s32 %s13, 1
      %p289 = scmp.lt.s32.totalorder %s22, 1
      %s290 = scalar_select %p289, %s22, 1
      %s291 = smul.addr %s290, 32
      %s292 = smul.addr %s291, 8
      %s293 = scalar_lea.vmem %s0, %s292
      %p294 = pneg %p51
      %p295 = pneg %p48
      %p296 = scmp.lt.s32.totalorder %s23, 0
      %s297 = scalar_select %p296, %s23, 0
      %s298 = smul.addr %s297, 8
      %s299 = scalar_lea.vmem %s1, %s298
      %p300 = pneg %p77
      %p301 = pneg %p74
      %p302 = scmp.lt.s32.totalorder %s23, 0
      %s303 = scalar_select %p302, %s23, 0
      %s304 = scalar_lea.vmem %s2, %s303
      %p305 = pneg %p103
      %p306 = pneg %p100
      %p307 = scmp.lt.s32.totalorder %s23, 0
      %s308 = scalar_select %p307, %s23, 0
      %s309 = scalar_lea.vmem %s3, %s308
      %p310 = pneg %p129
      %p311 = pneg %p126
      %p312 = scmp.lt.s32.totalorder %s23, 0
      %s313 = scalar_select %p312, %s23, 0
      %s314 = smul.addr %s313, 4
      %s315 = scalar_lea.vmem %s4, %s314
      %p316 = pneg %p155
      %p317 = pneg %p152
      %p318 = pneg %p176
      %p319 = pneg %p173
      %p320 = pneg %p197
      %p321 = pneg %p194
      %p322 = pneg %p223
      %p323 = pneg %p220
      %p324 = scmp.lt.s32.totalorder %s22, 1
      %s325 = scalar_select %p324, %s22, 1
      %s326 = smul.addr %s325, 32
      %s327 = smul.addr %s326, 8
      %s328 = scalar_lea.vmem %s7, %s327
      %p329 = scmp.lt.s32.totalorder %s22, 1
      %s330 = scalar_select %p329, %s22, 1
      %s331 = smul.addr %s330, 32
      %s332 = smul.addr %s331, 8
      %s333 = scalar_lea.vmem %s0, %s332
      %p334 = scmp.lt.s32.totalorder %s23, 0
      %s335 = scalar_select %p334, %s23, 0
      %s336 = smul.addr %s335, 8
      %s337 = scalar_lea.vmem %s1, %s336
      %p338 = scmp.lt.s32.totalorder %s23, 0
      %s339 = scalar_select %p338, %s23, 0
      %s340 = scalar_lea.vmem %s2, %s339
      %p341 = scmp.lt.s32.totalorder %s23, 0
      %s342 = scalar_select %p341, %s23, 0
      %s343 = scalar_lea.vmem %s3, %s342
      %p344 = scmp.lt.s32.totalorder %s23, 0
      %s345 = scalar_select %p344, %s23, 0
      %s346 = smul.addr %s345, 4
      %s347 = scalar_lea.vmem %s4, %s346
      %p348 = scmp.lt.s32.totalorder %s22, 1
      %s349 = scalar_select %p348, %s22, 1
      %s350 = smul.addr %s349, 32
      %s351 = smul.addr %s350, 8
      %s352 = scalar_lea.vmem %s7, %s351
      %p353 = scmp.eq.s32.totalorder %s23, 0
      // Predicated region
      $region49: #{tpu_custom_call.1} parent=47 // pred_check
        %p354 = pneg %p353
      $region50: #{tpu_custom_call.1} parent=47 // pred_check_branch
        %356 = sbr.rel (%p354) target = $region52
      $region51: #{tpu_custom_call.1} parent=47 // pred_region
        %vm357 = vcmask 64512
        %358 = vst.msk [vmem:[#allocation2] sm:$0xff] %vm357, 0.0
        %359 = vst.msk [vmem:[#allocation2 + $0x8] sm:$0xff] %vm357, 0.0
        %360 = vst.msk [vmem:[#allocation2 + $0x10] sm:$0xff] %vm357, 0.0
        %361 = vst.msk [vmem:[#allocation2 + $0x18] sm:$0xff] %vm357, 0.0
        %362 = vst.msk [vmem:[#allocation2 + $0x20] sm:$0xff] %vm357, 0.0
        %363 = vst.msk [vmem:[#allocation2 + $0x28] sm:$0xff] %vm357, 0.0
        %364 = vst.msk [vmem:[#allocation2 + $0x30] sm:$0xff] %vm357, 0.0
        %365 = vst.msk [vmem:[#allocation2 + $0x38] sm:$0xff] %vm357, 0.0
        %366 = vst.msk [vmem:[#allocation2 + $0x40] sm:$0xff] %vm357, 0.0
        %367 = vst.msk [vmem:[#allocation2 + $0x48] sm:$0xff] %vm357, 0.0
        %368 = vst.msk [vmem:[#allocation2 + $0x50] sm:$0xff] %vm357, 0.0
        %369 = vst.msk [vmem:[#allocation2 + $0x58] sm:$0xff] %vm357, 0.0
        %370 = vst.msk [vmem:[#allocation2 + $0x60] sm:$0xff] %vm357, 0.0
        %371 = vst.msk [vmem:[#allocation2 + $0x68] sm:$0xff] %vm357, 0.0
        %372 = vst.msk [vmem:[#allocation2 + $0x70] sm:$0xff] %vm357, 0.0
        %373 = vst.msk [vmem:[#allocation2 + $0x78] sm:$0xff] %vm357, 0.0
        %374 = vst.msk [vmem:[#allocation2 + $0x80] sm:$0xff] %vm357, 0.0
        %375 = vst.msk [vmem:[#allocation2 + $0x88] sm:$0xff] %vm357, 0.0
        %376 = vst.msk [vmem:[#allocation2 + $0x90] sm:$0xff] %vm357, 0.0
        %377 = vst.msk [vmem:[#allocation2 + $0x98] sm:$0xff] %vm357, 0.0
        %378 = vst.msk [vmem:[#allocation2 + $0xa0] sm:$0xff] %vm357, 0.0
        %379 = vst.msk [vmem:[#allocation2 + $0xa8] sm:$0xff] %vm357, 0.0
        %380 = vst.msk [vmem:[#allocation2 + $0xb0] sm:$0xff] %vm357, 0.0
        %381 = vst.msk [vmem:[#allocation2 + $0xb8] sm:$0xff] %vm357, 0.0
        %382 = vst.msk [vmem:[#allocation2 + $0xc0] sm:$0xff] %vm357, 0.0
        %383 = vst.msk [vmem:[#allocation2 + $0xc8] sm:$0xff] %vm357, 0.0
        %384 = vst.msk [vmem:[#allocation2 + $0xd0] sm:$0xff] %vm357, 0.0
        %385 = vst.msk [vmem:[#allocation2 + $0xd8] sm:$0xff] %vm357, 0.0
        %386 = vst.msk [vmem:[#allocation2 + $0xe0] sm:$0xff] %vm357, 0.0
        %387 = vst.msk [vmem:[#allocation2 + $0xe8] sm:$0xff] %vm357, 0.0
        %388 = vst.msk [vmem:[#allocation2 + $0xf0] sm:$0xff] %vm357, 0.0
        %389 = vst.msk [vmem:[#allocation2 + $0xf8] sm:$0xff] %vm357, 0.0
      $region52: #{tpu_custom_call.1} parent=47 // pred_fallthru
        _
      %v390 = vld [vmem:[%s333] sm:$0xff]
      %v391 = vld [vmem:[%s333 + $0x8] sm:$0xff]
      %v392 = vld [vmem:[%s333 + $0x10] sm:$0xff]
      %v393 = vld [vmem:[%s333 + $0x18] sm:$0xff]
      %v394 = vld [vmem:[%s333 + $0x20] sm:$0xff]
      %v395 = vld [vmem:[%s333 + $0x28] sm:$0xff]
      %v396 = vld [vmem:[%s333 + $0x30] sm:$0xff]
      %v397 = vld [vmem:[%s333 + $0x38] sm:$0xff]
      %v398 = vld [vmem:[%s333 + $0x40] sm:$0xff]
      %v399 = vld [vmem:[%s333 + $0x48] sm:$0xff]
      %v400 = vld [vmem:[%s333 + $0x50] sm:$0xff]
      %v401 = vld [vmem:[%s333 + $0x58] sm:$0xff]
      %v402 = vld [vmem:[%s333 + $0x60] sm:$0xff]
      %v403 = vld [vmem:[%s333 + $0x68] sm:$0xff]
      %v404 = vld [vmem:[%s333 + $0x70] sm:$0xff]
      %v405 = vld [vmem:[%s333 + $0x78] sm:$0xff]
      %v406 = vld [vmem:[%s333 + $0x80] sm:$0xff]
      %v407 = vld [vmem:[%s333 + $0x88] sm:$0xff]
      %v408 = vld [vmem:[%s333 + $0x90] sm:$0xff]
      %v409 = vld [vmem:[%s333 + $0x98] sm:$0xff]
      %v410 = vld [vmem:[%s333 + $0xa0] sm:$0xff]
      %v411 = vld [vmem:[%s333 + $0xa8] sm:$0xff]
      %v412 = vld [vmem:[%s333 + $0xb0] sm:$0xff]
      %v413 = vld [vmem:[%s333 + $0xb8] sm:$0xff]
      %v414 = vld [vmem:[%s333 + $0xc0] sm:$0xff]
      %v415 = vld [vmem:[%s333 + $0xc8] sm:$0xff]
      %v416 = vld [vmem:[%s333 + $0xd0] sm:$0xff]
      %v417 = vld [vmem:[%s333 + $0xd8] sm:$0xff]
      %v418 = vld [vmem:[%s333 + $0xe0] sm:$0xff]
      %v419 = vld [vmem:[%s333 + $0xe8] sm:$0xff]
      %v420 = vld [vmem:[%s333 + $0xf0] sm:$0xff]
      %v421 = vld [vmem:[%s333 + $0xf8] sm:$0xff]
      %v422 = vld [vmem:[%s337] sm:$0xff]
      %vm423 = vcmask 64512
      %v425 = vsel %vm423, %v390, 0
      %v428 = vsel %vm423, %v391, 0
      %v431 = vsel %vm423, %v392, 0
      %v434 = vsel %vm423, %v393, 0
      %v437 = vsel %vm423, %v394, 0
      %v440 = vsel %vm423, %v395, 0
      %v443 = vsel %vm423, %v396, 0
      %v446 = vsel %vm423, %v397, 0
      %v449 = vsel %vm423, %v398, 0
      %v452 = vsel %vm423, %v399, 0
      %v455 = vsel %vm423, %v400, 0
      %v458 = vsel %vm423, %v401, 0
      %v461 = vsel %vm423, %v402, 0
      %v464 = vsel %vm423, %v403, 0
      %v467 = vsel %vm423, %v404, 0
      %v470 = vsel %vm423, %v405, 0
      %v473 = vsel %vm423, %v406, 0
      %v476 = vsel %vm423, %v407, 0
      %v479 = vsel %vm423, %v408, 0
      %v482 = vsel %vm423, %v409, 0
      %v485 = vsel %vm423, %v410, 0
      %v488 = vsel %vm423, %v411, 0
      %v491 = vsel %vm423, %v412, 0
      %v494 = vsel %vm423, %v413, 0
      %v497 = vsel %vm423, %v414, 0
      %v500 = vsel %vm423, %v415, 0
      %v503 = vsel %vm423, %v416, 0
      %v506 = vsel %vm423, %v417, 0
      %v509 = vsel %vm423, %v418, 0
      %v512 = vsel %vm423, %v419, 0
      %v515 = vsel %vm423, %v420, 0
      %v518 = vsel %vm423, %v421, 0
      %520 = vmatprep.subr.mxu0 0.0
      %521 = vmatpush1.msra.mxu0 0.0
      %522 = vmatprep.subr.mxu0 0.0
      %523 = vmatpush1.msra.mxu0 0.0
      %524 = vmatprep.subr.mxu0 0.0
      %525 = vmatpush1.msra.mxu0 0.0
      %526 = vmatprep.subr.mxu0 0.0
      %527 = vmatpush1.msra.mxu0 0.0
      %528 = vmatprep.subr.mxu0 0.0
      %529 = vmatpush1.msra.mxu0 0.0
      %530 = vmatprep.subr.mxu0 0.0
      %531 = vmatpush1.msra.mxu0 0.0
      %532 = vmatprep.subr.mxu0 0.0
      %533 = vmatpush1.msra.mxu0 0.0
      %534 = vmatprep.subr.mxu0 0.0
      %535 = vmatpush1.msra.mxu0 0.0
      %536 = vmatprep.subr.mxu0 0.0
      %537 = vmatpush1.msra.mxu0 0.0
      %538 = vmatprep.subr.mxu0 0.0
      %539 = vmatpush1.msra.mxu0 0.0
      %540 = vmatprep.subr.mxu0 0.0
      %541 = vmatpush1.msra.mxu0 0.0
      %542 = vmatprep.subr.mxu0 0.0
      %543 = vmatpush1.msra.mxu0 0.0
      %544 = vmatprep.subr.mxu0 0.0
      %545 = vmatpush1.msra.mxu0 0.0
      %546 = vmatprep.subr.mxu0 0.0
      %547 = vmatpush1.msra.mxu0 0.0
      %548 = vmatprep.subr.mxu0 0.0
      %549 = vmatpush1.msra.mxu0 0.0
      %550 = vmatprep.subr.mxu0 0.0
      %551 = vmatpush1.msra.mxu0 %v422
      %552 = vmatprep.subr.mxu0 0.0
      %553 = vmatpush2.msra.mxu0 0.0
      %554 = vmatprep.subr.mxu0 0.0
      %555 = vmatpush2.msra.mxu0 0.0
      %556 = vmatprep.subr.mxu0 0.0
      %557 = vmatpush2.msra.mxu0 0.0
      %558 = vmatprep.subr.mxu0 0.0
      %559 = vmatpush2.msra.mxu0 0.0
      %560 = vmatprep.subr.mxu0 0.0
      %561 = vmatpush2.msra.mxu0 0.0
      %562 = vmatprep.subr.mxu0 0.0
      %563 = vmatpush2.msra.mxu0 0.0
      %564 = vmatprep.subr.mxu0 0.0
      %565 = vmatpush2.msra.mxu0 0.0
      %566 = vmatprep.subr.mxu0 0.0
      %567 = vmatpush2.msra.mxu0 0.0
      %568 = vmatprep.subr.mxu0 0.0
      %569 = vmatpush2.msra.mxu0 0.0
      %570 = vmatprep.subr.mxu0 0.0
      %571 = vmatpush2.msra.mxu0 0.0
      %572 = vmatprep.subr.mxu0 0.0
      %573 = vmatpush2.msra.mxu0 0.0
      %574 = vmatprep.subr.mxu0 0.0
      %575 = vmatpush2.msra.mxu0 0.0
      %576 = vmatprep.subr.mxu0 0.0
      %577 = vmatpush2.msra.mxu0 0.0
      %578 = vmatprep.subr.mxu0 0.0
      %579 = vmatpush2.msra.mxu0 0.0
      %580 = vmatprep.subr.mxu0 0.0
      %581 = vmatpush2.msra.mxu0 0.0
      %582 = vmatprep.subr.mxu0 0.0
      %583 = vmatpush2.msra.mxu0 0.0
      %584 = vmatprep.mubr.f32.mxu0 0.0
      %585 = vmatmul.mubr.f32.gmra.mxu0 %v425
      %v586 = vpop.f32.mrf.mxu0
      %v587 = vadd.f32 0.0, %v586
      %v588 = vpop.f32.mrf.mxu0
      %589 = vmatprep.mubr.f32.mxu0 0.0
      %590 = vmatmul.mubr.f32.gmra.mxu0 %v428
      %v591 = vpop.f32.mrf.mxu0
      %v592 = vadd.f32 0.0, %v591
      %v593 = vpop.f32.mrf.mxu0
      %594 = vmatprep.mubr.f32.mxu0 0.0
      %595 = vmatmul.mubr.f32.gmra.mxu0 %v431
      %v596 = vpop.f32.mrf.mxu0
      %v597 = vadd.f32 0.0, %v596
      %v598 = vpop.f32.mrf.mxu0
      %599 = vmatprep.mubr.f32.mxu0 0.0
      %600 = vmatmul.mubr.f32.gmra.mxu0 %v434
      %v601 = vpop.f32.mrf.mxu0
      %v602 = vadd.f32 0.0, %v601
      %v603 = vpop.f32.mrf.mxu0
      %604 = vmatprep.mubr.f32.mxu0 0.0
      %605 = vmatmul.mubr.f32.gmra.mxu0 %v437
      %v606 = vpop.f32.mrf.mxu0
      %v607 = vadd.f32 0.0, %v606
      %v608 = vpop.f32.mrf.mxu0
      %609 = vmatprep.mubr.f32.mxu0 0.0
      %610 = vmatmul.mubr.f32.gmra.mxu0 %v440
      %v611 = vpop.f32.mrf.mxu0
      %v612 = vadd.f32 0.0, %v611
      %v613 = vpop.f32.mrf.mxu0
      %614 = vmatprep.mubr.f32.mxu0 0.0
      %615 = vmatmul.mubr.f32.gmra.mxu0 %v443
      %v616 = vpop.f32.mrf.mxu0
      %v617 = vadd.f32 0.0, %v616
      %v618 = vpop.f32.mrf.mxu0
      %619 = vmatprep.mubr.f32.mxu0 0.0
      %620 = vmatmul.mubr.f32.gmra.mxu0 %v446
      %v621 = vpop.f32.mrf.mxu0
      %v622 = vadd.f32 0.0, %v621
      %v623 = vpop.f32.mrf.mxu0
      %624 = vmatprep.mubr.f32.mxu0 0.0
      %625 = vmatmul.mubr.f32.gmra.mxu0 %v449
      %v626 = vpop.f32.mrf.mxu0
      %v627 = vadd.f32 0.0, %v626
      %v628 = vpop.f32.mrf.mxu0
      %629 = vmatprep.mubr.f32.mxu0 0.0
      %630 = vmatmul.mubr.f32.gmra.mxu0 %v452
      %v631 = vpop.f32.mrf.mxu0
      %v632 = vadd.f32 0.0, %v631
      %v633 = vpop.f32.mrf.mxu0
      %634 = vmatprep.mubr.f32.mxu0 0.0
      %635 = vmatmul.mubr.f32.gmra.mxu0 %v455
      %v636 = vpop.f32.mrf.mxu0
      %v637 = vadd.f32 0.0, %v636
      %v638 = vpop.f32.mrf.mxu0
      %639 = vmatprep.mubr.f32.mxu0 0.0
      %640 = vmatmul.mubr.f32.gmra.mxu0 %v458
      %v641 = vpop.f32.mrf.mxu0
      %v642 = vadd.f32 0.0, %v641
      %v643 = vpop.f32.mrf.mxu0
      %644 = vmatprep.mubr.f32.mxu0 0.0
      %645 = vmatmul.mubr.f32.gmra.mxu0 %v461
      %v646 = vpop.f32.mrf.mxu0
      %v647 = vadd.f32 0.0, %v646
      %v648 = vpop.f32.mrf.mxu0
      %649 = vmatprep.mubr.f32.mxu0 0.0
      %650 = vmatmul.mubr.f32.gmra.mxu0 %v464
      %v651 = vpop.f32.mrf.mxu0
      %v652 = vadd.f32 0.0, %v651
      %v653 = vpop.f32.mrf.mxu0
      %654 = vmatprep.mubr.f32.mxu0 0.0
      %655 = vmatmul.mubr.f32.gmra.mxu0 %v467
      %v656 = vpop.f32.mrf.mxu0
      %v657 = vadd.f32 0.0, %v656
      %v658 = vpop.f32.mrf.mxu0
      %659 = vmatprep.mubr.f32.mxu0 0.0
      %660 = vmatmul.mubr.f32.gmra.mxu0 %v470
      %v661 = vpop.f32.mrf.mxu0
      %v662 = vadd.f32 0.0, %v661
      %v663 = vpop.f32.mrf.mxu0
      %664 = vmatprep.mubr.f32.mxu0 0.0
      %665 = vmatmul.mubr.f32.gmra.mxu0 %v473
      %v666 = vpop.f32.mrf.mxu0
      %v667 = vadd.f32 0.0, %v666
      %v668 = vpop.f32.mrf.mxu0
      %669 = vmatprep.mubr.f32.mxu0 0.0
      %670 = vmatmul.mubr.f32.gmra.mxu0 %v476
      %v671 = vpop.f32.mrf.mxu0
      %v672 = vadd.f32 0.0, %v671
      %v673 = vpop.f32.mrf.mxu0
      %674 = vmatprep.mubr.f32.mxu0 0.0
      %675 = vmatmul.mubr.f32.gmra.mxu0 %v479
      %v676 = vpop.f32.mrf.mxu0
      %v677 = vadd.f32 0.0, %v676
      %v678 = vpop.f32.mrf.mxu0
      %679 = vmatprep.mubr.f32.mxu0 0.0
      %680 = vmatmul.mubr.f32.gmra.mxu0 %v482
      %v681 = vpop.f32.mrf.mxu0
      %v682 = vadd.f32 0.0, %v681
      %v683 = vpop.f32.mrf.mxu0
      %684 = vmatprep.mubr.f32.mxu0 0.0
      %685 = vmatmul.mubr.f32.gmra.mxu0 %v485
      %v686 = vpop.f32.mrf.mxu0
      %v687 = vadd.f32 0.0, %v686
      %v688 = vpop.f32.mrf.mxu0
      %689 = vmatprep.mubr.f32.mxu0 0.0
      %690 = vmatmul.mubr.f32.gmra.mxu0 %v488
      %v691 = vpop.f32.mrf.mxu0
      %v692 = vadd.f32 0.0, %v691
      %v693 = vpop.f32.mrf.mxu0
      %694 = vmatprep.mubr.f32.mxu0 0.0
      %695 = vmatmul.mubr.f32.gmra.mxu0 %v491
      %v696 = vpop.f32.mrf.mxu0
      %v697 = vadd.f32 0.0, %v696
      %v698 = vpop.f32.mrf.mxu0
      %699 = vmatprep.mubr.f32.mxu0 0.0
      %700 = vmatmul.mubr.f32.gmra.mxu0 %v494
      %v701 = vpop.f32.mrf.mxu0
      %v702 = vadd.f32 0.0, %v701
      %v703 = vpop.f32.mrf.mxu0
      %704 = vmatprep.mubr.f32.mxu0 0.0
      %705 = vmatmul.mubr.f32.gmra.mxu0 %v497
      %v706 = vpop.f32.mrf.mxu0
      %v707 = vadd.f32 0.0, %v706
      %v708 = vpop.f32.mrf.mxu0
      %709 = vmatprep.mubr.f32.mxu0 0.0
      %710 = vmatmul.mubr.f32.gmra.mxu0 %v500
      %v711 = vpop.f32.mrf.mxu0
      %v712 = vadd.f32 0.0, %v711
      %v713 = vpop.f32.mrf.mxu0
      %714 = vmatprep.mubr.f32.mxu0 0.0
      %715 = vmatmul.mubr.f32.gmra.mxu0 %v503
      %v716 = vpop.f32.mrf.mxu0
      %v717 = vadd.f32 0.0, %v716
      %v718 = vpop.f32.mrf.mxu0
      %719 = vmatprep.mubr.f32.mxu0 0.0
      %720 = vmatmul.mubr.f32.gmra.mxu0 %v506
      %v721 = vpop.f32.mrf.mxu0
      %v722 = vadd.f32 0.0, %v721
      %v723 = vpop.f32.mrf.mxu0
      %724 = vmatprep.mubr.f32.mxu0 0.0
      %725 = vmatmul.mubr.f32.gmra.mxu0 %v509
      %v726 = vpop.f32.mrf.mxu0
      %v727 = vadd.f32 0.0, %v726
      %v728 = vpop.f32.mrf.mxu0
      %729 = vmatprep.mubr.f32.mxu0 0.0
      %730 = vmatmul.mubr.f32.gmra.mxu0 %v512
      %v731 = vpop.f32.mrf.mxu0
      %v732 = vadd.f32 0.0, %v731
      %v733 = vpop.f32.mrf.mxu0
      %734 = vmatprep.mubr.f32.mxu0 0.0
      %735 = vmatmul.mubr.f32.gmra.mxu0 %v515
      %v736 = vpop.f32.mrf.mxu0
      %v737 = vadd.f32 0.0, %v736
      %v738 = vpop.f32.mrf.mxu0
      %739 = vmatprep.mubr.f32.mxu0 0.0
      %740 = vmatmul.mubr.f32.gmra.mxu0 %v518
      %v741 = vpop.f32.mrf.mxu0
      %v742 = vadd.f32 0.0, %v741
      %v743 = vpop.f32.mrf.mxu0
      %744 = vdwg.mxu0
      %v745 = vld [vmem:[%s340] sm:$0x1]
      %v747 = vlaneseq
      %v748 = vshrl.u32 %v747, 7
      %v749 = vsub.s32 0, %v748
      %v750 = vrot.slane %v745, %v749
      %v752 = vmul.f32 %v587, %v750
      %v753 = vmul.f32 %v592, %v750
      %v754 = vmul.f32 %v597, %v750
      %v755 = vmul.f32 %v602, %v750
      %v756 = vmul.f32 %v607, %v750
      %v757 = vmul.f32 %v612, %v750
      %v758 = vmul.f32 %v617, %v750
      %v759 = vmul.f32 %v622, %v750
      %v760 = vmul.f32 %v627, %v750
      %v761 = vmul.f32 %v632, %v750
      %v762 = vmul.f32 %v637, %v750
      %v763 = vmul.f32 %v642, %v750
      %v764 = vmul.f32 %v647, %v750
      %v765 = vmul.f32 %v652, %v750
      %v766 = vmul.f32 %v657, %v750
      %v767 = vmul.f32 %v662, %v750
      %v768 = vmul.f32 %v667, %v750
      %v769 = vmul.f32 %v672, %v750
      %v770 = vmul.f32 %v677, %v750
      %v771 = vmul.f32 %v682, %v750
      %v772 = vmul.f32 %v687, %v750
      %v773 = vmul.f32 %v692, %v750
      %v774 = vmul.f32 %v697, %v750
      %v775 = vmul.f32 %v702, %v750
      %v776 = vmul.f32 %v707, %v750
      %v777 = vmul.f32 %v712, %v750
      %v778 = vmul.f32 %v717, %v750
      %v779 = vmul.f32 %v722, %v750
      %v780 = vmul.f32 %v727, %v750
      %v781 = vmul.f32 %v732, %v750
      %v782 = vmul.f32 %v737, %v750
      %v783 = vmul.f32 %v742, %v750
      %v784 = vld [vmem:[%s343] sm:$0x1]
      %v786 = vlaneseq
      %v787 = vshrl.u32 %v786, 7
      %v788 = vsub.s32 0, %v787
      %v789 = vrot.slane %v784, %v788
      %v791 = vadd.f32 %v752, %v789
      %v792 = vadd.f32 %v753, %v789
      %v793 = vadd.f32 %v754, %v789
      %v794 = vadd.f32 %v755, %v789
      %v795 = vadd.f32 %v756, %v789
      %v796 = vadd.f32 %v757, %v789
      %v797 = vadd.f32 %v758, %v789
      %v798 = vadd.f32 %v759, %v789
      %v799 = vadd.f32 %v760, %v789
      %v800 = vadd.f32 %v761, %v789
      %v801 = vadd.f32 %v762, %v789
      %v802 = vadd.f32 %v763, %v789
      %v803 = vadd.f32 %v764, %v789
      %v804 = vadd.f32 %v765, %v789
      %v805 = vadd.f32 %v766, %v789
      %v806 = vadd.f32 %v767, %v789
      %v807 = vadd.f32 %v768, %v789
      %v808 = vadd.f32 %v769, %v789
      %v809 = vadd.f32 %v770, %v789
      %v810 = vadd.f32 %v771, %v789
      %v811 = vadd.f32 %v772, %v789
      %v812 = vadd.f32 %v773, %v789
      %v813 = vadd.f32 %v774, %v789
      %v814 = vadd.f32 %v775, %v789
      %v815 = vadd.f32 %v776, %v789
      %v816 = vadd.f32 %v777, %v789
      %v817 = vadd.f32 %v778, %v789
      %v818 = vadd.f32 %v779, %v789
      %v819 = vadd.f32 %v780, %v789
      %v820 = vadd.f32 %v781, %v789
      %v821 = vadd.f32 %v782, %v789
      %v822 = vadd.f32 %v783, %v789
      %v823 = vxor.u32 %v791, 2147483648
      %v824 = vxor.u32 %v792, 2147483648
      %v825 = vxor.u32 %v793, 2147483648
      %v826 = vxor.u32 %v794, 2147483648
      %v827 = vxor.u32 %v795, 2147483648
      %v828 = vxor.u32 %v796, 2147483648
      %v829 = vxor.u32 %v797, 2147483648
      %v830 = vxor.u32 %v798, 2147483648
      %v831 = vxor.u32 %v799, 2147483648
      %v832 = vxor.u32 %v800, 2147483648
      %v833 = vxor.u32 %v801, 2147483648
      %v834 = vxor.u32 %v802, 2147483648
      %v835 = vxor.u32 %v803, 2147483648
      %v836 = vxor.u32 %v804, 2147483648
      %v837 = vxor.u32 %v805, 2147483648
      %v838 = vxor.u32 %v806, 2147483648
      %v839 = vxor.u32 %v807, 2147483648
      %v840 = vxor.u32 %v808, 2147483648
      %v841 = vxor.u32 %v809, 2147483648
      %v842 = vxor.u32 %v810, 2147483648
      %v843 = vxor.u32 %v811, 2147483648
      %v844 = vxor.u32 %v812, 2147483648
      %v845 = vxor.u32 %v813, 2147483648
      %v846 = vxor.u32 %v814, 2147483648
      %v847 = vxor.u32 %v815, 2147483648
      %v848 = vxor.u32 %v816, 2147483648
      %v849 = vxor.u32 %v817, 2147483648
      %v850 = vxor.u32 %v818, 2147483648
      %v851 = vxor.u32 %v819, 2147483648
      %v852 = vxor.u32 %v820, 2147483648
      %v853 = vxor.u32 %v821, 2147483648
      %v854 = vxor.u32 %v822, 2147483648
      %v855 = vmul.f32 %v823, 1.442695
      %v856 = vpow.pop %v855
      %v857 = vmul.f32 %v824, 1.442695
      %v858 = vpow.pop %v857
      %v859 = vmul.f32 %v825, 1.442695
      %v860 = vpow.pop %v859
      %v861 = vmul.f32 %v826, 1.442695
      %v862 = vpow.pop %v861
      %v863 = vmul.f32 %v827, 1.442695
      %v864 = vpow.pop %v863
      %v865 = vmul.f32 %v828, 1.442695
      %v866 = vpow.pop %v865
      %v867 = vmul.f32 %v829, 1.442695
      %v868 = vpow.pop %v867
      %v869 = vmul.f32 %v830, 1.442695
      %v870 = vpow.pop %v869
      %v871 = vmul.f32 %v831, 1.442695
      %v872 = vpow.pop %v871
      %v873 = vmul.f32 %v832, 1.442695
      %v874 = vpow.pop %v873
      %v875 = vmul.f32 %v833, 1.442695
      %v876 = vpow.pop %v875
      %v877 = vmul.f32 %v834, 1.442695
      %v878 = vpow.pop %v877
      %v879 = vmul.f32 %v835, 1.442695
      %v880 = vpow.pop %v879
      %v881 = vmul.f32 %v836, 1.442695
      %v882 = vpow.pop %v881
      %v883 = vmul.f32 %v837, 1.442695
      %v884 = vpow.pop %v883
      %v885 = vmul.f32 %v838, 1.442695
      %v886 = vpow.pop %v885
      %v887 = vmul.f32 %v839, 1.442695
      %v888 = vpow.pop %v887
      %v889 = vmul.f32 %v840, 1.442695
      %v890 = vpow.pop %v889
      %v891 = vmul.f32 %v841, 1.442695
      %v892 = vpow.pop %v891
      %v893 = vmul.f32 %v842, 1.442695
      %v894 = vpow.pop %v893
      %v895 = vmul.f32 %v843, 1.442695
      %v896 = vpow.pop %v895
      %v897 = vmul.f32 %v844, 1.442695
      %v898 = vpow.pop %v897
      %v899 = vmul.f32 %v845, 1.442695
      %v900 = vpow.pop %v899
      %v901 = vmul.f32 %v846, 1.442695
      %v902 = vpow.pop %v901
      %v903 = vmul.f32 %v847, 1.442695
      %v904 = vpow.pop %v903
      %v905 = vmul.f32 %v848, 1.442695
      %v906 = vpow.pop %v905
      %v907 = vmul.f32 %v849, 1.442695
      %v908 = vpow.pop %v907
      %v909 = vmul.f32 %v850, 1.442695
      %v910 = vpow.pop %v909
      %v911 = vmul.f32 %v851, 1.442695
      %v912 = vpow.pop %v911
      %v913 = vmul.f32 %v852, 1.442695
      %v914 = vpow.pop %v913
      %v915 = vmul.f32 %v853, 1.442695
      %v916 = vpow.pop %v915
      %v917 = vmul.f32 %v854, 1.442695
      %v918 = vpow.pop %v917
      %v919 = vadd.f32 %v856, 1.0
      %v920 = vadd.f32 %v858, 1.0
      %v921 = vadd.f32 %v860, 1.0
      %v922 = vadd.f32 %v862, 1.0
      %v923 = vadd.f32 %v864, 1.0
      %v924 = vadd.f32 %v866, 1.0
      %v925 = vadd.f32 %v868, 1.0
      %v926 = vadd.f32 %v870, 1.0
      %v927 = vadd.f32 %v872, 1.0
      %v928 = vadd.f32 %v874, 1.0
      %v929 = vadd.f32 %v876, 1.0
      %v930 = vadd.f32 %v878, 1.0
      %v931 = vadd.f32 %v880, 1.0
      %v932 = vadd.f32 %v882, 1.0
      %v933 = vadd.f32 %v884, 1.0
      %v934 = vadd.f32 %v886, 1.0
      %v935 = vadd.f32 %v888, 1.0
      %v936 = vadd.f32 %v890, 1.0
      %v937 = vadd.f32 %v892, 1.0
      %v938 = vadd.f32 %v894, 1.0
      %v939 = vadd.f32 %v896, 1.0
      %v940 = vadd.f32 %v898, 1.0
      %v941 = vadd.f32 %v900, 1.0
      %v942 = vadd.f32 %v902, 1.0
      %v943 = vadd.f32 %v904, 1.0
      %v944 = vadd.f32 %v906, 1.0
      %v945 = vadd.f32 %v908, 1.0
      %v946 = vadd.f32 %v910, 1.0
      %v947 = vadd.f32 %v912, 1.0
      %v948 = vadd.f32 %v914, 1.0
      %v949 = vadd.f32 %v916, 1.0
      %v950 = vadd.f32 %v918, 1.0
      %v951 = vrcp.pop %v919
      %v952 = vmul.f32 1.0, %v951
      %v953 = vrcp.pop %v920
      %v954 = vmul.f32 1.0, %v953
      %v955 = vrcp.pop %v921
      %v956 = vmul.f32 1.0, %v955
      %v957 = vrcp.pop %v922
      %v958 = vmul.f32 1.0, %v957
      %v959 = vrcp.pop %v923
      %v960 = vmul.f32 1.0, %v959
      %v961 = vrcp.pop %v924
      %v962 = vmul.f32 1.0, %v961
      %v963 = vrcp.pop %v925
      %v964 = vmul.f32 1.0, %v963
      %v965 = vrcp.pop %v926
      %v966 = vmul.f32 1.0, %v965
      %v967 = vrcp.pop %v927
      %v968 = vmul.f32 1.0, %v967
      %v969 = vrcp.pop %v928
      %v970 = vmul.f32 1.0, %v969
      %v971 = vrcp.pop %v929
      %v972 = vmul.f32 1.0, %v971
      %v973 = vrcp.pop %v930
      %v974 = vmul.f32 1.0, %v973
      %v975 = vrcp.pop %v931
      %v976 = vmul.f32 1.0, %v975
      %v977 = vrcp.pop %v932
      %v978 = vmul.f32 1.0, %v977
      %v979 = vrcp.pop %v933
      %v980 = vmul.f32 1.0, %v979
      %v981 = vrcp.pop %v934
      %v982 = vmul.f32 1.0, %v981
      %v983 = vrcp.pop %v935
      %v984 = vmul.f32 1.0, %v983
      %v985 = vrcp.pop %v936
      %v986 = vmul.f32 1.0, %v985
      %v987 = vrcp.pop %v937
      %v988 = vmul.f32 1.0, %v987
      %v989 = vrcp.pop %v938
      %v990 = vmul.f32 1.0, %v989
      %v991 = vrcp.pop %v939
      %v992 = vmul.f32 1.0, %v991
      %v993 = vrcp.pop %v940
      %v994 = vmul.f32 1.0, %v993
      %v995 = vrcp.pop %v941
      %v996 = vmul.f32 1.0, %v995
      %v997 = vrcp.pop %v942
      %v998 = vmul.f32 1.0, %v997
      %v999 = vrcp.pop %v943
      %v1000 = vmul.f32 1.0, %v999
      %v1001 = vrcp.pop %v944
      %v1002 = vmul.f32 1.0, %v1001
      %v1003 = vrcp.pop %v945
      %v1004 = vmul.f32 1.0, %v1003
      %v1005 = vrcp.pop %v946
      %v1006 = vmul.f32 1.0, %v1005
      %v1007 = vrcp.pop %v947
      %v1008 = vmul.f32 1.0, %v1007
      %v1009 = vrcp.pop %v948
      %v1010 = vmul.f32 1.0, %v1009
      %v1011 = vrcp.pop %v949
      %v1012 = vmul.f32 1.0, %v1011
      %v1013 = vrcp.pop %v950
      %v1014 = vmul.f32 1.0, %v1013
      %v1015 = vmul.f32 %v791, %v952
      %v1016 = vmul.f32 %v792, %v954
      %v1017 = vmul.f32 %v793, %v956
      %v1018 = vmul.f32 %v794, %v958
      %v1019 = vmul.f32 %v795, %v960
      %v1020 = vmul.f32 %v796, %v962
      %v1021 = vmul.f32 %v797, %v964
      %v1022 = vmul.f32 %v798, %v966
      %v1023 = vmul.f32 %v799, %v968
      %v1024 = vmul.f32 %v800, %v970
      %v1025 = vmul.f32 %v801, %v972
      %v1026 = vmul.f32 %v802, %v974
      %v1027 = vmul.f32 %v803, %v976
      %v1028 = vmul.f32 %v804, %v978
      %v1029 = vmul.f32 %v805, %v980
      %v1030 = vmul.f32 %v806, %v982
      %v1031 = vmul.f32 %v807, %v984
      %v1032 = vmul.f32 %v808, %v986
      %v1033 = vmul.f32 %v809, %v988
      %v1034 = vmul.f32 %v810, %v990
      %v1035 = vmul.f32 %v811, %v992
      %v1036 = vmul.f32 %v812, %v994
      %v1037 = vmul.f32 %v813, %v996
      %v1038 = vmul.f32 %v814, %v998
      %v1039 = vmul.f32 %v815, %v1000
      %v1040 = vmul.f32 %v816, %v1002
      %v1041 = vmul.f32 %v817, %v1004
      %v1042 = vmul.f32 %v818, %v1006
      %v1043 = vmul.f32 %v819, %v1008
      %v1044 = vmul.f32 %v820, %v1010
      %v1045 = vmul.f32 %v821, %v1012
      %v1046 = vmul.f32 %v822, %v1014
      %v1047 = vlaneseq
      %v1048 = vshrl.u32 %v1047, 7
      %v1049 = vadd.s32 %v1048, 8
      %v1050 = vadd.s32 %v1048, 16
      %v1051 = vadd.s32 %v1048, 24
      %v1052 = vadd.s32 %v1048, 32
      %v1053 = vadd.s32 %v1048, 40
      %v1054 = vadd.s32 %v1048, 48
      %v1055 = vadd.s32 %v1048, 56
      %v1056 = vadd.s32 %v1048, 64
      %v1057 = vadd.s32 %v1048, 72
      %v1058 = vadd.s32 %v1048, 80
      %v1059 = vadd.s32 %v1048, 88
      %v1060 = vadd.s32 %v1048, 96
      %v1061 = vadd.s32 %v1048, 104
      %v1062 = vadd.s32 %v1048, 112
      %v1063 = vadd.s32 %v1048, 120
      %v1064 = vadd.s32 %v1048, 128
      %v1065 = vadd.s32 %v1048, 136
      %v1066 = vadd.s32 %v1048, 144
      %v1067 = vadd.s32 %v1048, 152
      %v1068 = vadd.s32 %v1048, 160
      %v1069 = vadd.s32 %v1048, 168
      %v1070 = vadd.s32 %v1048, 176
      %v1071 = vadd.s32 %v1048, 184
      %v1072 = vadd.s32 %v1048, 192
      %v1073 = vadd.s32 %v1048, 200
      %v1074 = vadd.s32 %v1048, 208
      %v1075 = vadd.s32 %v1048, 216
      %v1076 = vadd.s32 %v1048, 224
      %v1077 = vadd.s32 %v1048, 232
      %v1078 = vadd.s32 %v1048, 240
      %v1079 = vadd.s32 %v1048, 248
      %vm1080 = vcmp.lt.s32.totalorder %v1048, 0
      %v1081 = vsub.s32 0, %v1048
      %v1082 = vsel %vm1080, %v1081, %v1048
      %v1083 = vshrl.u32 %v1082, 4
      %v1084 = vand.u32 %v1082, 15
      %v1085 = vsub.s32 0, %v1084
      %v1086 = vsel %vm1080, %v1085, %v1084
      %vm1087 = vcmp.lt.s32.totalorder %v1049, 0
      %v1088 = vsub.s32 0, %v1049
      %v1089 = vsel %vm1087, %v1088, %v1049
      %v1090 = vshrl.u32 %v1089, 4
      %v1091 = vand.u32 %v1089, 15
      %v1092 = vsub.s32 0, %v1091
      %v1093 = vsel %vm1087, %v1092, %v1091
      %vm1094 = vcmp.lt.s32.totalorder %v1050, 0
      %v1095 = vsub.s32 0, %v1050
      %v1096 = vsel %vm1094, %v1095, %v1050
      %v1097 = vshrl.u32 %v1096, 4
      %v1098 = vand.u32 %v1096, 15
      %v1099 = vsub.s32 0, %v1098
      %v1100 = vsel %vm1094, %v1099, %v1098
      %vm1101 = vcmp.lt.s32.totalorder %v1051, 0
      %v1102 = vsub.s32 0, %v1051
      %v1103 = vsel %vm1101, %v1102, %v1051
      %v1104 = vshrl.u32 %v1103, 4
      %v1105 = vand.u32 %v1103, 15
      %v1106 = vsub.s32 0, %v1105
      %v1107 = vsel %vm1101, %v1106, %v1105
      %vm1108 = vcmp.lt.s32.totalorder %v1052, 0
      %v1109 = vsub.s32 0, %v1052
      %v1110 = vsel %vm1108, %v1109, %v1052
      %v1111 = vshrl.u32 %v1110, 4
      %v1112 = vand.u32 %v1110, 15
      %v1113 = vsub.s32 0, %v1112
      %v1114 = vsel %vm1108, %v1113, %v1112
      %vm1115 = vcmp.lt.s32.totalorder %v1053, 0
      %v1116 = vsub.s32 0, %v1053
      %v1117 = vsel %vm1115, %v1116, %v1053
      %v1118 = vshrl.u32 %v1117, 4
      %v1119 = vand.u32 %v1117, 15
      %v1120 = vsub.s32 0, %v1119
      %v1121 = vsel %vm1115, %v1120, %v1119
      %vm1122 = vcmp.lt.s32.totalorder %v1054, 0
      %v1123 = vsub.s32 0, %v1054
      %v1124 = vsel %vm1122, %v1123, %v1054
      %v1125 = vshrl.u32 %v1124, 4
      %v1126 = vand.u32 %v1124, 15
      %v1127 = vsub.s32 0, %v1126
      %v1128 = vsel %vm1122, %v1127, %v1126
      %vm1129 = vcmp.lt.s32.totalorder %v1055, 0
      %v1130 = vsub.s32 0, %v1055
      %v1131 = vsel %vm1129, %v1130, %v1055
      %v1132 = vshrl.u32 %v1131, 4
      %v1133 = vand.u32 %v1131, 15
      %v1134 = vsub.s32 0, %v1133
      %v1135 = vsel %vm1129, %v1134, %v1133
      %vm1136 = vcmp.lt.s32.totalorder %v1056, 0
      %v1137 = vsub.s32 0, %v1056
      %v1138 = vsel %vm1136, %v1137, %v1056
      %v1139 = vshrl.u32 %v1138, 4
      %v1140 = vand.u32 %v1138, 15
      %v1141 = vsub.s32 0, %v1140
      %v1142 = vsel %vm1136, %v1141, %v1140
      %vm1143 = vcmp.lt.s32.totalorder %v1057, 0
      %v1144 = vsub.s32 0, %v1057
      %v1145 = vsel %vm1143, %v1144, %v1057
      %v1146 = vshrl.u32 %v1145, 4
      %v1147 = vand.u32 %v1145, 15
      %v1148 = vsub.s32 0, %v1147
      %v1149 = vsel %vm1143, %v1148, %v1147
      %vm1150 = vcmp.lt.s32.totalorder %v1058, 0
      %v1151 = vsub.s32 0, %v1058
      %v1152 = vsel %vm1150, %v1151, %v1058
      %v1153 = vshrl.u32 %v1152, 4
      %v1154 = vand.u32 %v1152, 15
      %v1155 = vsub.s32 0, %v1154
      %v1156 = vsel %vm1150, %v1155, %v1154
      %vm1157 = vcmp.lt.s32.totalorder %v1059, 0
      %v1158 = vsub.s32 0, %v1059
      %v1159 = vsel %vm1157, %v1158, %v1059
      %v1160 = vshrl.u32 %v1159, 4
      %v1161 = vand.u32 %v1159, 15
      %v1162 = vsub.s32 0, %v1161
      %v1163 = vsel %vm1157, %v1162, %v1161
      %vm1164 = vcmp.lt.s32.totalorder %v1060, 0
      %v1165 = vsub.s32 0, %v1060
      %v1166 = vsel %vm1164, %v1165, %v1060
      %v1167 = vshrl.u32 %v1166, 4
      %v1168 = vand.u32 %v1166, 15
      %v1169 = vsub.s32 0, %v1168
      %v1170 = vsel %vm1164, %v1169, %v1168
      %vm1171 = vcmp.lt.s32.totalorder %v1061, 0
      %v1172 = vsub.s32 0, %v1061
      %v1173 = vsel %vm1171, %v1172, %v1061
      %v1174 = vshrl.u32 %v1173, 4
      %v1175 = vand.u32 %v1173, 15
      %v1176 = vsub.s32 0, %v1175
      %v1177 = vsel %vm1171, %v1176, %v1175
      %vm1178 = vcmp.lt.s32.totalorder %v1062, 0
      %v1179 = vsub.s32 0, %v1062
      %v1180 = vsel %vm1178, %v1179, %v1062
      %v1181 = vshrl.u32 %v1180, 4
      %v1182 = vand.u32 %v1180, 15
      %v1183 = vsub.s32 0, %v1182
      %v1184 = vsel %vm1178, %v1183, %v1182
      %vm1185 = vcmp.lt.s32.totalorder %v1063, 0
      %v1186 = vsub.s32 0, %v1063
      %v1187 = vsel %vm1185, %v1186, %v1063
      %v1188 = vshrl.u32 %v1187, 4
      %v1189 = vand.u32 %v1187, 15
      %v1190 = vsub.s32 0, %v1189
      %v1191 = vsel %vm1185, %v1190, %v1189
      %vm1192 = vcmp.lt.s32.totalorder %v1064, 0
      %v1193 = vsub.s32 0, %v1064
      %v1194 = vsel %vm1192, %v1193, %v1064
      %v1195 = vshrl.u32 %v1194, 4
      %v1196 = vand.u32 %v1194, 15
      %v1197 = vsub.s32 0, %v1196
      %v1198 = vsel %vm1192, %v1197, %v1196
      %vm1199 = vcmp.lt.s32.totalorder %v1065, 0
      %v1200 = vsub.s32 0, %v1065
      %v1201 = vsel %vm1199, %v1200, %v1065
      %v1202 = vshrl.u32 %v1201, 4
      %v1203 = vand.u32 %v1201, 15
      %v1204 = vsub.s32 0, %v1203
      %v1205 = vsel %vm1199, %v1204, %v1203
      %vm1206 = vcmp.lt.s32.totalorder %v1066, 0
      %v1207 = vsub.s32 0, %v1066
      %v1208 = vsel %vm1206, %v1207, %v1066
      %v1209 = vshrl.u32 %v1208, 4
      %v1210 = vand.u32 %v1208, 15
      %v1211 = vsub.s32 0, %v1210
      %v1212 = vsel %vm1206, %v1211, %v1210
      %vm1213 = vcmp.lt.s32.totalorder %v1067, 0
      %v1214 = vsub.s32 0, %v1067
      %v1215 = vsel %vm1213, %v1214, %v1067
      %v1216 = vshrl.u32 %v1215, 4
      %v1217 = vand.u32 %v1215, 15
      %v1218 = vsub.s32 0, %v1217
      %v1219 = vsel %vm1213, %v1218, %v1217
      %vm1220 = vcmp.lt.s32.totalorder %v1068, 0
      %v1221 = vsub.s32 0, %v1068
      %v1222 = vsel %vm1220, %v1221, %v1068
      %v1223 = vshrl.u32 %v1222, 4
      %v1224 = vand.u32 %v1222, 15
      %v1225 = vsub.s32 0, %v1224
      %v1226 = vsel %vm1220, %v1225, %v1224
      %vm1227 = vcmp.lt.s32.totalorder %v1069, 0
      %v1228 = vsub.s32 0, %v1069
      %v1229 = vsel %vm1227, %v1228, %v1069
      %v1230 = vshrl.u32 %v1229, 4
      %v1231 = vand.u32 %v1229, 15
      %v1232 = vsub.s32 0, %v1231
      %v1233 = vsel %vm1227, %v1232, %v1231
      %vm1234 = vcmp.lt.s32.totalorder %v1070, 0
      %v1235 = vsub.s32 0, %v1070
      %v1236 = vsel %vm1234, %v1235, %v1070
      %v1237 = vshrl.u32 %v1236, 4
      %v1238 = vand.u32 %v1236, 15
      %v1239 = vsub.s32 0, %v1238
      %v1240 = vsel %vm1234, %v1239, %v1238
      %vm1241 = vcmp.lt.s32.totalorder %v1071, 0
      %v1242 = vsub.s32 0, %v1071
      %v1243 = vsel %vm1241, %v1242, %v1071
      %v1244 = vshrl.u32 %v1243, 4
      %v1245 = vand.u32 %v1243, 15
      %v1246 = vsub.s32 0, %v1245
      %v1247 = vsel %vm1241, %v1246, %v1245
      %vm1248 = vcmp.lt.s32.totalorder %v1072, 0
      %v1249 = vsub.s32 0, %v1072
      %v1250 = vsel %vm1248, %v1249, %v1072
      %v1251 = vshrl.u32 %v1250, 4
      %v1252 = vand.u32 %v1250, 15
      %v1253 = vsub.s32 0, %v1252
      %v1254 = vsel %vm1248, %v1253, %v1252
      %vm1255 = vcmp.lt.s32.totalorder %v1073, 0
      %v1256 = vsub.s32 0, %v1073
      %v1257 = vsel %vm1255, %v1256, %v1073
      %v1258 = vshrl.u32 %v1257, 4
      %v1259 = vand.u32 %v1257, 15
      %v1260 = vsub.s32 0, %v1259
      %v1261 = vsel %vm1255, %v1260, %v1259
      %vm1262 = vcmp.lt.s32.totalorder %v1074, 0
      %v1263 = vsub.s32 0, %v1074
      %v1264 = vsel %vm1262, %v1263, %v1074
      %v1265 = vshrl.u32 %v1264, 4
      %v1266 = vand.u32 %v1264, 15
      %v1267 = vsub.s32 0, %v1266
      %v1268 = vsel %vm1262, %v1267, %v1266
      %vm1269 = vcmp.lt.s32.totalorder %v1075, 0
      %v1270 = vsub.s32 0, %v1075
      %v1271 = vsel %vm1269, %v1270, %v1075
      %v1272 = vshrl.u32 %v1271, 4
      %v1273 = vand.u32 %v1271, 15
      %v1274 = vsub.s32 0, %v1273
      %v1275 = vsel %vm1269, %v1274, %v1273
      %vm1276 = vcmp.lt.s32.totalorder %v1076, 0
      %v1277 = vsub.s32 0, %v1076
      %v1278 = vsel %vm1276, %v1277, %v1076
      %v1279 = vshrl.u32 %v1278, 4
      %v1280 = vand.u32 %v1278, 15
      %v1281 = vsub.s32 0, %v1280
      %v1282 = vsel %vm1276, %v1281, %v1280
      %vm1283 = vcmp.lt.s32.totalorder %v1077, 0
      %v1284 = vsub.s32 0, %v1077
      %v1285 = vsel %vm1283, %v1284, %v1077
      %v1286 = vshrl.u32 %v1285, 4
      %v1287 = vand.u32 %v1285, 15
      %v1288 = vsub.s32 0, %v1287
      %v1289 = vsel %vm1283, %v1288, %v1287
      %vm1290 = vcmp.lt.s32.totalorder %v1078, 0
      %v1291 = vsub.s32 0, %v1078
      %v1292 = vsel %vm1290, %v1291, %v1078
      %v1293 = vshrl.u32 %v1292, 4
      %v1294 = vand.u32 %v1292, 15
      %v1295 = vsub.s32 0, %v1294
      %v1296 = vsel %vm1290, %v1295, %v1294
      %vm1297 = vcmp.lt.s32.totalorder %v1079, 0
      %v1298 = vsub.s32 0, %v1079
      %v1299 = vsel %vm1297, %v1298, %v1079
      %v1300 = vshrl.u32 %v1299, 4
      %v1301 = vand.u32 %v1299, 15
      %v1302 = vsub.s32 0, %v1301
      %v1303 = vsel %vm1297, %v1302, %v1301
      %vm1304 = vcmp.ne.s32.totalorder %v1086, 0
      %vm1305 = vcmp.ne.s32.totalorder %v1093, 0
      %vm1306 = vcmp.ne.s32.totalorder %v1100, 0
      %vm1307 = vcmp.ne.s32.totalorder %v1107, 0
      %vm1308 = vcmp.ne.s32.totalorder %v1114, 0
      %vm1309 = vcmp.ne.s32.totalorder %v1121, 0
      %vm1310 = vcmp.ne.s32.totalorder %v1128, 0
      %vm1311 = vcmp.ne.s32.totalorder %v1135, 0
      %vm1312 = vcmp.ne.s32.totalorder %v1142, 0
      %vm1313 = vcmp.ne.s32.totalorder %v1149, 0
      %vm1314 = vcmp.ne.s32.totalorder %v1156, 0
      %vm1315 = vcmp.ne.s32.totalorder %v1163, 0
      %vm1316 = vcmp.ne.s32.totalorder %v1170, 0
      %vm1317 = vcmp.ne.s32.totalorder %v1177, 0
      %vm1318 = vcmp.ne.s32.totalorder %v1184, 0
      %vm1319 = vcmp.ne.s32.totalorder %v1191, 0
      %vm1320 = vcmp.ne.s32.totalorder %v1198, 0
      %vm1321 = vcmp.ne.s32.totalorder %v1205, 0
      %vm1322 = vcmp.ne.s32.totalorder %v1212, 0
      %vm1323 = vcmp.ne.s32.totalorder %v1219, 0
      %vm1324 = vcmp.ne.s32.totalorder %v1226, 0
      %vm1325 = vcmp.ne.s32.totalorder %v1233, 0
      %vm1326 = vcmp.ne.s32.totalorder %v1240, 0
      %vm1327 = vcmp.ne.s32.totalorder %v1247, 0
      %vm1328 = vcmp.ne.s32.totalorder %v1254, 0
      %vm1329 = vcmp.ne.s32.totalorder %v1261, 0
      %vm1330 = vcmp.ne.s32.totalorder %v1268, 0
      %vm1331 = vcmp.ne.s32.totalorder %v1275, 0
      %vm1332 = vcmp.ne.s32.totalorder %v1282, 0
      %vm1333 = vcmp.ne.s32.totalorder %v1289, 0
      %vm1334 = vcmp.ne.s32.totalorder %v1296, 0
      %vm1335 = vcmp.ne.s32.totalorder %v1303, 0
      %vm1336 = vcmp.lt.s32.totalorder %v1086, 0
      %vm1337 = vcmp.lt.s32.totalorder %v1093, 0
      %vm1338 = vcmp.lt.s32.totalorder %v1100, 0
      %vm1339 = vcmp.lt.s32.totalorder %v1107, 0
      %vm1340 = vcmp.lt.s32.totalorder %v1114, 0
      %vm1341 = vcmp.lt.s32.totalorder %v1121, 0
      %vm1342 = vcmp.lt.s32.totalorder %v1128, 0
      %vm1343 = vcmp.lt.s32.totalorder %v1135, 0
      %vm1344 = vcmp.lt.s32.totalorder %v1142, 0
      %vm1345 = vcmp.lt.s32.totalorder %v1149, 0
      %vm1346 = vcmp.lt.s32.totalorder %v1156, 0
      %vm1347 = vcmp.lt.s32.totalorder %v1163, 0
      %vm1348 = vcmp.lt.s32.totalorder %v1170, 0
      %vm1349 = vcmp.lt.s32.totalorder %v1177, 0
      %vm1350 = vcmp.lt.s32.totalorder %v1184, 0
      %vm1351 = vcmp.lt.s32.totalorder %v1191, 0
      %vm1352 = vcmp.lt.s32.totalorder %v1198, 0
      %vm1353 = vcmp.lt.s32.totalorder %v1205, 0
      %vm1354 = vcmp.lt.s32.totalorder %v1212, 0
      %vm1355 = vcmp.lt.s32.totalorder %v1219, 0
      %vm1356 = vcmp.lt.s32.totalorder %v1226, 0
      %vm1357 = vcmp.lt.s32.totalorder %v1233, 0
      %vm1358 = vcmp.lt.s32.totalorder %v1240, 0
      %vm1359 = vcmp.lt.s32.totalorder %v1247, 0
      %vm1360 = vcmp.lt.s32.totalorder %v1254, 0
      %vm1361 = vcmp.lt.s32.totalorder %v1261, 0
      %vm1362 = vcmp.lt.s32.totalorder %v1268, 0
      %vm1363 = vcmp.lt.s32.totalorder %v1275, 0
      %vm1364 = vcmp.lt.s32.totalorder %v1282, 0
      %vm1365 = vcmp.lt.s32.totalorder %v1289, 0
      %vm1366 = vcmp.lt.s32.totalorder %v1296, 0
      %vm1367 = vcmp.lt.s32.totalorder %v1303, 0
      %vm1368 = vmand %vm1336, %vm1304
      %vm1369 = vmand %vm1337, %vm1305
      %vm1370 = vmand %vm1338, %vm1306
      %vm1371 = vmand %vm1339, %vm1307
      %vm1372 = vmand %vm1340, %vm1308
      %vm1373 = vmand %vm1341, %vm1309
      %vm1374 = vmand %vm1342, %vm1310
      %vm1375 = vmand %vm1343, %vm1311
      %vm1376 = vmand %vm1344, %vm1312
      %vm1377 = vmand %vm1345, %vm1313
      %vm1378 = vmand %vm1346, %vm1314
      %vm1379 = vmand %vm1347, %vm1315
      %vm1380 = vmand %vm1348, %vm1316
      %vm1381 = vmand %vm1349, %vm1317
      %vm1382 = vmand %vm1350, %vm1318
      %vm1383 = vmand %vm1351, %vm1319
      %vm1384 = vmand %vm1352, %vm1320
      %vm1385 = vmand %vm1353, %vm1321
      %vm1386 = vmand %vm1354, %vm1322
      %vm1387 = vmand %vm1355, %vm1323
      %vm1388 = vmand %vm1356, %vm1324
      %vm1389 = vmand %vm1357, %vm1325
      %vm1390 = vmand %vm1358, %vm1326
      %vm1391 = vmand %vm1359, %vm1327
      %vm1392 = vmand %vm1360, %vm1328
      %vm1393 = vmand %vm1361, %vm1329
      %vm1394 = vmand %vm1362, %vm1330
      %vm1395 = vmand %vm1363, %vm1331
      %vm1396 = vmand %vm1364, %vm1332
      %vm1397 = vmand %vm1365, %vm1333
      %vm1398 = vmand %vm1366, %vm1334
      %vm1399 = vmand %vm1367, %vm1335
      %v1400 = vadd.s32 %v1086, 16
      %v1401 = vadd.s32 %v1093, 16
      %v1402 = vadd.s32 %v1100, 16
      %v1403 = vadd.s32 %v1107, 16
      %v1404 = vadd.s32 %v1114, 16
      %v1405 = vadd.s32 %v1121, 16
      %v1406 = vadd.s32 %v1128, 16
      %v1407 = vadd.s32 %v1135, 16
      %v1408 = vadd.s32 %v1142, 16
      %v1409 = vadd.s32 %v1149, 16
      %v1410 = vadd.s32 %v1156, 16
      %v1411 = vadd.s32 %v1163, 16
      %v1412 = vadd.s32 %v1170, 16
      %v1413 = vadd.s32 %v1177, 16
      %v1414 = vadd.s32 %v1184, 16
      %v1415 = vadd.s32 %v1191, 16
      %v1416 = vadd.s32 %v1198, 16
      %v1417 = vadd.s32 %v1205, 16
      %v1418 = vadd.s32 %v1212, 16
      %v1419 = vadd.s32 %v1219, 16
      %v1420 = vadd.s32 %v1226, 16
      %v1421 = vadd.s32 %v1233, 16
      %v1422 = vadd.s32 %v1240, 16
      %v1423 = vadd.s32 %v1247, 16
      %v1424 = vadd.s32 %v1254, 16
      %v1425 = vadd.s32 %v1261, 16
      %v1426 = vadd.s32 %v1268, 16
      %v1427 = vadd.s32 %v1275, 16
      %v1428 = vadd.s32 %v1282, 16
      %v1429 = vadd.s32 %v1289, 16
      %v1430 = vadd.s32 %v1296, 16
      %v1431 = vadd.s32 %v1303, 16
      %v1432 = vsel %vm1368, %v1400, %v1086
      %v1433 = vsel %vm1369, %v1401, %v1093
      %v1434 = vsel %vm1370, %v1402, %v1100
      %v1435 = vsel %vm1371, %v1403, %v1107
      %v1436 = vsel %vm1372, %v1404, %v1114
      %v1437 = vsel %vm1373, %v1405, %v1121
      %v1438 = vsel %vm1374, %v1406, %v1128
      %v1439 = vsel %vm1375, %v1407, %v1135
      %v1440 = vsel %vm1376, %v1408, %v1142
      %v1441 = vsel %vm1377, %v1409, %v1149
      %v1442 = vsel %vm1378, %v1410, %v1156
      %v1443 = vsel %vm1379, %v1411, %v1163
      %v1444 = vsel %vm1380, %v1412, %v1170
      %v1445 = vsel %vm1381, %v1413, %v1177
      %v1446 = vsel %vm1382, %v1414, %v1184
      %v1447 = vsel %vm1383, %v1415, %v1191
      %v1448 = vsel %vm1384, %v1416, %v1198
      %v1449 = vsel %vm1385, %v1417, %v1205
      %v1450 = vsel %vm1386, %v1418, %v1212
      %v1451 = vsel %vm1387, %v1419, %v1219
      %v1452 = vsel %vm1388, %v1420, %v1226
      %v1453 = vsel %vm1389, %v1421, %v1233
      %v1454 = vsel %vm1390, %v1422, %v1240
      %v1455 = vsel %vm1391, %v1423, %v1247
      %v1456 = vsel %vm1392, %v1424, %v1254
      %v1457 = vsel %vm1393, %v1425, %v1261
      %v1458 = vsel %vm1394, %v1426, %v1268
      %v1459 = vsel %vm1395, %v1427, %v1275
      %v1460 = vsel %vm1396, %v1428, %v1282
      %v1461 = vsel %vm1397, %v1429, %v1289
      %v1462 = vsel %vm1398, %v1430, %v1296
      %v1463 = vsel %vm1399, %v1431, %v1303
      %vm1464 = vcmp.lt.s32.totalorder %v1432, 15
      %vm1465 = vcmp.lt.s32.totalorder %v1433, 15
      %vm1466 = vcmp.lt.s32.totalorder %v1434, 15
      %vm1467 = vcmp.lt.s32.totalorder %v1435, 15
      %vm1468 = vcmp.lt.s32.totalorder %v1436, 15
      %vm1469 = vcmp.lt.s32.totalorder %v1437, 15
      %vm1470 = vcmp.lt.s32.totalorder %v1438, 15
      %vm1471 = vcmp.lt.s32.totalorder %v1439, 15
      %vm1472 = vcmp.lt.s32.totalorder %v1440, 15
      %vm1473 = vcmp.lt.s32.totalorder %v1441, 15
      %vm1474 = vcmp.lt.s32.totalorder %v1442, 15
      %vm1475 = vcmp.lt.s32.totalorder %v1443, 15
      %vm1476 = vcmp.lt.s32.totalorder %v1444, 15
      %vm1477 = vcmp.lt.s32.totalorder %v1445, 15
      %vm1478 = vcmp.lt.s32.totalorder %v1446, 15
      %vm1479 = vcmp.lt.s32.totalorder %v1447, 15
      %vm1480 = vcmp.lt.s32.totalorder %v1448, 15
      %vm1481 = vcmp.lt.s32.totalorder %v1449, 15
      %vm1482 = vcmp.lt.s32.totalorder %v1450, 15
      %vm1483 = vcmp.lt.s32.totalorder %v1451, 15
      %vm1484 = vcmp.lt.s32.totalorder %v1452, 15
      %vm1485 = vcmp.lt.s32.totalorder %v1453, 15
      %vm1486 = vcmp.lt.s32.totalorder %v1454, 15
      %vm1487 = vcmp.lt.s32.totalorder %v1455, 15
      %vm1488 = vcmp.lt.s32.totalorder %v1456, 15
      %vm1489 = vcmp.lt.s32.totalorder %v1457, 15
      %vm1490 = vcmp.lt.s32.totalorder %v1458, 15
      %vm1491 = vcmp.lt.s32.totalorder %v1459, 15
      %vm1492 = vcmp.lt.s32.totalorder %v1460, 15
      %vm1493 = vcmp.lt.s32.totalorder %v1461, 15
      %vm1494 = vcmp.lt.s32.totalorder %v1462, 15
      %vm1495 = vcmp.lt.s32.totalorder %v1463, 15
      %vm1496 = vcmp.lt.s32.totalorder %v1432, 14
      %vm1497 = vcmp.lt.s32.totalorder %v1433, 14
      %vm1498 = vcmp.lt.s32.totalorder %v1434, 14
      %vm1499 = vcmp.lt.s32.totalorder %v1435, 14
      %vm1500 = vcmp.lt.s32.totalorder %v1436, 14
      %vm1501 = vcmp.lt.s32.totalorder %v1437, 14
      %vm1502 = vcmp.lt.s32.totalorder %v1438, 14
      %vm1503 = vcmp.lt.s32.totalorder %v1439, 14
      %vm1504 = vcmp.lt.s32.totalorder %v1440, 14
      %vm1505 = vcmp.lt.s32.totalorder %v1441, 14
      %vm1506 = vcmp.lt.s32.totalorder %v1442, 14
      %vm1507 = vcmp.lt.s32.totalorder %v1443, 14
      %vm1508 = vcmp.lt.s32.totalorder %v1444, 14
      %vm1509 = vcmp.lt.s32.totalorder %v1445, 14
      %vm1510 = vcmp.lt.s32.totalorder %v1446, 14
      %vm1511 = vcmp.lt.s32.totalorder %v1447, 14
      %vm1512 = vcmp.lt.s32.totalorder %v1448, 14
      %vm1513 = vcmp.lt.s32.totalorder %v1449, 14
      %vm1514 = vcmp.lt.s32.totalorder %v1450, 14
      %vm1515 = vcmp.lt.s32.totalorder %v1451, 14
      %vm1516 = vcmp.lt.s32.totalorder %v1452, 14
      %vm1517 = vcmp.lt.s32.totalorder %v1453, 14
      %vm1518 = vcmp.lt.s32.totalorder %v1454, 14
      %vm1519 = vcmp.lt.s32.totalorder %v1455, 14
      %vm1520 = vcmp.lt.s32.totalorder %v1456, 14
      %vm1521 = vcmp.lt.s32.totalorder %v1457, 14
      %vm1522 = vcmp.lt.s32.totalorder %v1458, 14
      %vm1523 = vcmp.lt.s32.totalorder %v1459, 14
      %vm1524 = vcmp.lt.s32.totalorder %v1460, 14
      %vm1525 = vcmp.lt.s32.totalorder %v1461, 14
      %vm1526 = vcmp.lt.s32.totalorder %v1462, 14
      %vm1527 = vcmp.lt.s32.totalorder %v1463, 14
      %vm1528 = vcmp.ge.s32.totalorder %v1432, 1
      %vm1529 = vcmp.ge.s32.totalorder %v1433, 1
      %vm1530 = vcmp.ge.s32.totalorder %v1434, 1
      %vm1531 = vcmp.ge.s32.totalorder %v1435, 1
      %vm1532 = vcmp.ge.s32.totalorder %v1436, 1
      %vm1533 = vcmp.ge.s32.totalorder %v1437, 1
      %vm1534 = vcmp.ge.s32.totalorder %v1438, 1
      %vm1535 = vcmp.ge.s32.totalorder %v1439, 1
      %vm1536 = vcmp.ge.s32.totalorder %v1440, 1
      %vm1537 = vcmp.ge.s32.totalorder %v1441, 1
      %vm1538 = vcmp.ge.s32.totalorder %v1442, 1
      %vm1539 = vcmp.ge.s32.totalorder %v1443, 1
      %vm1540 = vcmp.ge.s32.totalorder %v1444, 1
      %vm1541 = vcmp.ge.s32.totalorder %v1445, 1
      %vm1542 = vcmp.ge.s32.totalorder %v1446, 1
      %vm1543 = vcmp.ge.s32.totalorder %v1447, 1
      %vm1544 = vcmp.ge.s32.totalorder %v1448, 1
      %vm1545 = vcmp.ge.s32.totalorder %v1449, 1
      %vm1546 = vcmp.ge.s32.totalorder %v1450, 1
      %vm1547 = vcmp.ge.s32.totalorder %v1451, 1
      %vm1548 = vcmp.ge.s32.totalorder %v1452, 1
      %vm1549 = vcmp.ge.s32.totalorder %v1453, 1
      %vm1550 = vcmp.ge.s32.totalorder %v1454, 1
      %vm1551 = vcmp.ge.s32.totalorder %v1455, 1
      %vm1552 = vcmp.ge.s32.totalorder %v1456, 1
      %vm1553 = vcmp.ge.s32.totalorder %v1457, 1
      %vm1554 = vcmp.ge.s32.totalorder %v1458, 1
      %vm1555 = vcmp.ge.s32.totalorder %v1459, 1
      %vm1556 = vcmp.ge.s32.totalorder %v1460, 1
      %vm1557 = vcmp.ge.s32.totalorder %v1461, 1
      %vm1558 = vcmp.ge.s32.totalorder %v1462, 1
      %vm1559 = vcmp.ge.s32.totalorder %v1463, 1
      %vm1560 = vcmp.ge.s32.totalorder %v1432, 2
      %vm1561 = vcmp.ge.s32.totalorder %v1433, 2
      %vm1562 = vcmp.ge.s32.totalorder %v1434, 2
      %vm1563 = vcmp.ge.s32.totalorder %v1435, 2
      %vm1564 = vcmp.ge.s32.totalorder %v1436, 2
      %vm1565 = vcmp.ge.s32.totalorder %v1437, 2
      %vm1566 = vcmp.ge.s32.totalorder %v1438, 2
      %vm1567 = vcmp.ge.s32.totalorder %v1439, 2
      %vm1568 = vcmp.ge.s32.totalorder %v1440, 2
      %vm1569 = vcmp.ge.s32.totalorder %v1441, 2
      %vm1570 = vcmp.ge.s32.totalorder %v1442, 2
      %vm1571 = vcmp.ge.s32.totalorder %v1443, 2
      %vm1572 = vcmp.ge.s32.totalorder %v1444, 2
      %vm1573 = vcmp.ge.s32.totalorder %v1445, 2
      %vm1574 = vcmp.ge.s32.totalorder %v1446, 2
      %vm1575 = vcmp.ge.s32.totalorder %v1447, 2
      %vm1576 = vcmp.ge.s32.totalorder %v1448, 2
      %vm1577 = vcmp.ge.s32.totalorder %v1449, 2
      %vm1578 = vcmp.ge.s32.totalorder %v1450, 2
      %vm1579 = vcmp.ge.s32.totalorder %v1451, 2
      %vm1580 = vcmp.ge.s32.totalorder %v1452, 2
      %vm1581 = vcmp.ge.s32.totalorder %v1453, 2
      %vm1582 = vcmp.ge.s32.totalorder %v1454, 2
      %vm1583 = vcmp.ge.s32.totalorder %v1455, 2
      %vm1584 = vcmp.ge.s32.totalorder %v1456, 2
      %vm1585 = vcmp.ge.s32.totalorder %v1457, 2
      %vm1586 = vcmp.ge.s32.totalorder %v1458, 2
      %vm1587 = vcmp.ge.s32.totalorder %v1459, 2
      %vm1588 = vcmp.ge.s32.totalorder %v1460, 2
      %vm1589 = vcmp.ge.s32.totalorder %v1461, 2
      %vm1590 = vcmp.ge.s32.totalorder %v1462, 2
      %vm1591 = vcmp.ge.s32.totalorder %v1463, 2
      %v1592 = vld [vmem:[#allocation2] sm:$0xff]
      %v1593 = vld [vmem:[#allocation2 + $0x8] sm:$0xff]
      %v1594 = vld [vmem:[#allocation2 + $0x10] sm:$0xff]
      %v1595 = vld [vmem:[#allocation2 + $0x18] sm:$0xff]
      %v1596 = vld [vmem:[#allocation2 + $0x20] sm:$0xff]
      %v1597 = vld [vmem:[#allocation2 + $0x28] sm:$0xff]
      %v1598 = vld [vmem:[#allocation2 + $0x30] sm:$0xff]
      %v1599 = vld [vmem:[#allocation2 + $0x38] sm:$0xff]
      %v1600 = vld [vmem:[#allocation2 + $0x40] sm:$0xff]
      %v1601 = vld [vmem:[#allocation2 + $0x48] sm:$0xff]
      %v1602 = vld [vmem:[#allocation2 + $0x50] sm:$0xff]
      %v1603 = vld [vmem:[#allocation2 + $0x58] sm:$0xff]
      %v1604 = vld [vmem:[#allocation2 + $0x60] sm:$0xff]
      %v1605 = vld [vmem:[#allocation2 + $0x68] sm:$0xff]
      %v1606 = vld [vmem:[#allocation2 + $0x70] sm:$0xff]
      %v1607 = vld [vmem:[#allocation2 + $0x78] sm:$0xff]
      %v1608 = vld [vmem:[#allocation2 + $0x80] sm:$0xff]
      %v1609 = vld [vmem:[#allocation2 + $0x88] sm:$0xff]
      %v1610 = vld [vmem:[#allocation2 + $0x90] sm:$0xff]
      %v1611 = vld [vmem:[#allocation2 + $0x98] sm:$0xff]
      %v1612 = vld [vmem:[#allocation2 + $0xa0] sm:$0xff]
      %v1613 = vld [vmem:[#allocation2 + $0xa8] sm:$0xff]
      %v1614 = vld [vmem:[#allocation2 + $0xb0] sm:$0xff]
      %v1615 = vld [vmem:[#allocation2 + $0xb8] sm:$0xff]
      %v1616 = vld [vmem:[#allocation2 + $0xc0] sm:$0xff]
      %v1617 = vld [vmem:[#allocation2 + $0xc8] sm:$0xff]
      %v1618 = vld [vmem:[#allocation2 + $0xd0] sm:$0xff]
      %v1619 = vld [vmem:[#allocation2 + $0xd8] sm:$0xff]
      %v1620 = vld [vmem:[#allocation2 + $0xe0] sm:$0xff]
      %v1621 = vld [vmem:[#allocation2 + $0xe8] sm:$0xff]
      %v1622 = vld [vmem:[#allocation2 + $0xf0] sm:$0xff]
      %v1623 = vld [vmem:[#allocation2 + $0xf8] sm:$0xff]
      %v1624 = vld [vmem:[%s347] sm:$0xf]
      %vm1625 = vcmask 31744
      %v1627 = vsel %vm1625, %v1015, 0
      %v1630 = vsel %vm1625, %v1016, 0
      %v1633 = vsel %vm1625, %v1017, 0
      %v1636 = vsel %vm1625, %v1018, 0
      %v1639 = vsel %vm1625, %v1019, 0
      %v1642 = vsel %vm1625, %v1020, 0
      %v1645 = vsel %vm1625, %v1021, 0
      %v1648 = vsel %vm1625, %v1022, 0
      %v1651 = vsel %vm1625, %v1023, 0
      %v1654 = vsel %vm1625, %v1024, 0
      %v1657 = vsel %vm1625, %v1025, 0
      %v1660 = vsel %vm1625, %v1026, 0
      %v1663 = vsel %vm1625, %v1027, 0
      %v1666 = vsel %vm1625, %v1028, 0
      %v1669 = vsel %vm1625, %v1029, 0
      %v1672 = vsel %vm1625, %v1030, 0
      %v1675 = vsel %vm1625, %v1031, 0
      %v1678 = vsel %vm1625, %v1032, 0
      %v1681 = vsel %vm1625, %v1033, 0
      %v1684 = vsel %vm1625, %v1034, 0
      %v1687 = vsel %vm1625, %v1035, 0
      %v1690 = vsel %vm1625, %v1036, 0
      %v1693 = vsel %vm1625, %v1037, 0
      %v1696 = vsel %vm1625, %v1038, 0
      %v1699 = vsel %vm1625, %v1039, 0
      %v1702 = vsel %vm1625, %v1040, 0
      %v1705 = vsel %vm1625, %v1041, 0
      %v1708 = vsel %vm1625, %v1042, 0
      %v1711 = vsel %vm1625, %v1043, 0
      %v1714 = vsel %vm1625, %v1044, 0
      %v1717 = vsel %vm1625, %v1045, 0
      %v1720 = vsel %vm1625, %v1046, 0
      %vm1722 = vcmask 1043456
      %v1724 = vsel %vm1722, %v1624, 0
      %1726 = vmatprep.subr.mxu0 0.0
      %1727 = vmatpush1.msra.mxu0 0.0
      %1728 = vmatprep.subr.mxu0 0.0
      %1729 = vmatpush1.msra.mxu0 0.0
      %1730 = vmatprep.subr.mxu0 0.0
      %1731 = vmatpush1.msra.mxu0 0.0
      %1732 = vmatprep.subr.mxu0 0.0
      %1733 = vmatpush1.msra.mxu0 0.0
      %1734 = vmatprep.subr.mxu0 0.0
      %1735 = vmatpush1.msra.mxu0 0.0
      %1736 = vmatprep.subr.mxu0 0.0
      %1737 = vmatpush1.msra.mxu0 0.0
      %1738 = vmatprep.subr.mxu0 0.0
      %1739 = vmatpush1.msra.mxu0 0.0
      %1740 = vmatprep.subr.mxu0 0.0
      %1741 = vmatpush1.msra.mxu0 0.0
      %1742 = vmatprep.subr.mxu0 0.0
      %1743 = vmatpush1.msra.mxu0 0.0
      %1744 = vmatprep.subr.mxu0 0.0
      %1745 = vmatpush1.msra.mxu0 0.0
      %1746 = vmatprep.subr.mxu0 0.0
      %1747 = vmatpush1.msra.mxu0 0.0
      %1748 = vmatprep.subr.mxu0 0.0
      %1749 = vmatpush1.msra.mxu0 0.0
      %1750 = vmatprep.subr.mxu0 0.0
      %1751 = vmatpush1.msra.mxu0 0.0
      %1752 = vmatprep.subr.mxu0 0.0
      %1753 = vmatpush1.msra.mxu0 0.0
      %1754 = vmatprep.subr.mxu0 0.0
      %1755 = vmatpush1.msra.mxu0 0.0
      %1756 = vmatprep.subr.mxu0 0.0
      %1757 = vmatpush1.msra.mxu0 %v1724
      %1758 = vmatprep.subr.mxu0 0.0
      %1759 = vmatpush2.msra.mxu0 0.0
      %1760 = vmatprep.subr.mxu0 0.0
      %1761 = vmatpush2.msra.mxu0 0.0
      %1762 = vmatprep.subr.mxu0 0.0
      %1763 = vmatpush2.msra.mxu0 0.0
      %1764 = vmatprep.subr.mxu0 0.0
      %1765 = vmatpush2.msra.mxu0 0.0
      %1766 = vmatprep.subr.mxu0 0.0
      %1767 = vmatpush2.msra.mxu0 0.0
      %1768 = vmatprep.subr.mxu0 0.0
      %1769 = vmatpush2.msra.mxu0 0.0
      %1770 = vmatprep.subr.mxu0 0.0
      %1771 = vmatpush2.msra.mxu0 0.0
      %1772 = vmatprep.subr.mxu0 0.0
      %1773 = vmatpush2.msra.mxu0 0.0
      %1774 = vmatprep.subr.mxu0 0.0
      %1775 = vmatpush2.msra.mxu0 0.0
      %1776 = vmatprep.subr.mxu0 0.0
      %1777 = vmatpush2.msra.mxu0 0.0
      %1778 = vmatprep.subr.mxu0 0.0
      %1779 = vmatpush2.msra.mxu0 0.0
      %1780 = vmatprep.subr.mxu0 0.0
      %1781 = vmatpush2.msra.mxu0 0.0
      %1782 = vmatprep.subr.mxu0 0.0
      %1783 = vmatpush2.msra.mxu0 0.0
      %1784 = vmatprep.subr.mxu0 0.0
      %1785 = vmatpush2.msra.mxu0 0.0
      %1786 = vmatprep.subr.mxu0 0.0
      %1787 = vmatpush2.msra.mxu0 0.0
      %1788 = vmatprep.subr.mxu0 0.0
      %1789 = vmatpush2.msra.mxu0 0.0
      %1790 = vmatprep.mubr.f32.mxu0 0.0
      %1791 = vmatmul.mubr.f32.gmra.mxu0 %v1627
      %v1792 = vpop.f32.mrf.mxu0
      %v1793 = vadd.f32 0.0, %v1792
      %v1794 = vpop.f32.mrf.mxu0
      %1795 = vmatprep.mubr.f32.mxu0 0.0
      %1796 = vmatmul.mubr.f32.gmra.mxu0 %v1630
      %v1797 = vpop.f32.mrf.mxu0
      %v1798 = vadd.f32 0.0, %v1797
      %v1799 = vpop.f32.mrf.mxu0
      %1800 = vmatprep.mubr.f32.mxu0 0.0
      %1801 = vmatmul.mubr.f32.gmra.mxu0 %v1633
      %v1802 = vpop.f32.mrf.mxu0
      %v1803 = vadd.f32 0.0, %v1802
      %v1804 = vpop.f32.mrf.mxu0
      %1805 = vmatprep.mubr.f32.mxu0 0.0
      %1806 = vmatmul.mubr.f32.gmra.mxu0 %v1636
      %v1807 = vpop.f32.mrf.mxu0
      %v1808 = vadd.f32 0.0, %v1807
      %v1809 = vpop.f32.mrf.mxu0
      %1810 = vmatprep.mubr.f32.mxu0 0.0
      %1811 = vmatmul.mubr.f32.gmra.mxu0 %v1639
      %v1812 = vpop.f32.mrf.mxu0
      %v1813 = vadd.f32 0.0, %v1812
      %v1814 = vpop.f32.mrf.mxu0
      %1815 = vmatprep.mubr.f32.mxu0 0.0
      %1816 = vmatmul.mubr.f32.gmra.mxu0 %v1642
      %v1817 = vpop.f32.mrf.mxu0
      %v1818 = vadd.f32 0.0, %v1817
      %v1819 = vpop.f32.mrf.mxu0
      %1820 = vmatprep.mubr.f32.mxu0 0.0
      %1821 = vmatmul.mubr.f32.gmra.mxu0 %v1645
      %v1822 = vpop.f32.mrf.mxu0
      %v1823 = vadd.f32 0.0, %v1822
      %v1824 = vpop.f32.mrf.mxu0
      %1825 = vmatprep.mubr.f32.mxu0 0.0
      %1826 = vmatmul.mubr.f32.gmra.mxu0 %v1648
      %v1827 = vpop.f32.mrf.mxu0
      %v1828 = vadd.f32 0.0, %v1827
      %v1829 = vpop.f32.mrf.mxu0
      %1830 = vmatprep.mubr.f32.mxu0 0.0
      %1831 = vmatmul.mubr.f32.gmra.mxu0 %v1651
      %v1832 = vpop.f32.mrf.mxu0
      %v1833 = vadd.f32 0.0, %v1832
      %v1834 = vpop.f32.mrf.mxu0
      %1835 = vmatprep.mubr.f32.mxu0 0.0
      %1836 = vmatmul.mubr.f32.gmra.mxu0 %v1654
      %v1837 = vpop.f32.mrf.mxu0
      %v1838 = vadd.f32 0.0, %v1837
      %v1839 = vpop.f32.mrf.mxu0
      %1840 = vmatprep.mubr.f32.mxu0 0.0
      %1841 = vmatmul.mubr.f32.gmra.mxu0 %v1657
      %v1842 = vpop.f32.mrf.mxu0
      %v1843 = vadd.f32 0.0, %v1842
      %v1844 = vpop.f32.mrf.mxu0
      %1845 = vmatprep.mubr.f32.mxu0 0.0
      %1846 = vmatmul.mubr.f32.gmra.mxu0 %v1660
      %v1847 = vpop.f32.mrf.mxu0
      %v1848 = vadd.f32 0.0, %v1847
      %v1849 = vpop.f32.mrf.mxu0
      %1850 = vmatprep.mubr.f32.mxu0 0.0
      %1851 = vmatmul.mubr.f32.gmra.mxu0 %v1663
      %v1852 = vpop.f32.mrf.mxu0
      %v1853 = vadd.f32 0.0, %v1852
      %v1854 = vpop.f32.mrf.mxu0
      %1855 = vmatprep.mubr.f32.mxu0 0.0
      %1856 = vmatmul.mubr.f32.gmra.mxu0 %v1666
      %v1857 = vpop.f32.mrf.mxu0
      %v1858 = vadd.f32 0.0, %v1857
      %v1859 = vpop.f32.mrf.mxu0
      %1860 = vmatprep.mubr.f32.mxu0 0.0
      %1861 = vmatmul.mubr.f32.gmra.mxu0 %v1669
      %v1862 = vpop.f32.mrf.mxu0
      %v1863 = vadd.f32 0.0, %v1862
      %v1864 = vpop.f32.mrf.mxu0
      %1865 = vmatprep.mubr.f32.mxu0 0.0
      %1866 = vmatmul.mubr.f32.gmra.mxu0 %v1672
      %v1867 = vpop.f32.mrf.mxu0
      %v1868 = vadd.f32 0.0, %v1867
      %v1869 = vpop.f32.mrf.mxu0
      %1870 = vmatprep.mubr.f32.mxu0 0.0
      %1871 = vmatmul.mubr.f32.gmra.mxu0 %v1675
      %v1872 = vpop.f32.mrf.mxu0
      %v1873 = vadd.f32 0.0, %v1872
      %v1874 = vpop.f32.mrf.mxu0
      %1875 = vmatprep.mubr.f32.mxu0 0.0
      %1876 = vmatmul.mubr.f32.gmra.mxu0 %v1678
      %v1877 = vpop.f32.mrf.mxu0
      %v1878 = vadd.f32 0.0, %v1877
      %v1879 = vpop.f32.mrf.mxu0
      %1880 = vmatprep.mubr.f32.mxu0 0.0
      %1881 = vmatmul.mubr.f32.gmra.mxu0 %v1681
      %v1882 = vpop.f32.mrf.mxu0
      %v1883 = vadd.f32 0.0, %v1882
      %v1884 = vpop.f32.mrf.mxu0
      %1885 = vmatprep.mubr.f32.mxu0 0.0
      %1886 = vmatmul.mubr.f32.gmra.mxu0 %v1684
      %v1887 = vpop.f32.mrf.mxu0
      %v1888 = vadd.f32 0.0, %v1887
      %v1889 = vpop.f32.mrf.mxu0
      %1890 = vmatprep.mubr.f32.mxu0 0.0
      %1891 = vmatmul.mubr.f32.gmra.mxu0 %v1687
      %v1892 = vpop.f32.mrf.mxu0
      %v1893 = vadd.f32 0.0, %v1892
      %v1894 = vpop.f32.mrf.mxu0
      %1895 = vmatprep.mubr.f32.mxu0 0.0
      %1896 = vmatmul.mubr.f32.gmra.mxu0 %v1690
      %v1897 = vpop.f32.mrf.mxu0
      %v1898 = vadd.f32 0.0, %v1897
      %v1899 = vpop.f32.mrf.mxu0
      %1900 = vmatprep.mubr.f32.mxu0 0.0
      %1901 = vmatmul.mubr.f32.gmra.mxu0 %v1693
      %v1902 = vpop.f32.mrf.mxu0
      %v1903 = vadd.f32 0.0, %v1902
      %v1904 = vpop.f32.mrf.mxu0
      %1905 = vmatprep.mubr.f32.mxu0 0.0
      %1906 = vmatmul.mubr.f32.gmra.mxu0 %v1696
      %v1907 = vpop.f32.mrf.mxu0
      %v1908 = vadd.f32 0.0, %v1907
      %v1909 = vpop.f32.mrf.mxu0
      %1910 = vmatprep.mubr.f32.mxu0 0.0
      %1911 = vmatmul.mubr.f32.gmra.mxu0 %v1699
      %v1912 = vpop.f32.mrf.mxu0
      %v1913 = vadd.f32 0.0, %v1912
      %v1914 = vpop.f32.mrf.mxu0
      %1915 = vmatprep.mubr.f32.mxu0 0.0
      %1916 = vmatmul.mubr.f32.gmra.mxu0 %v1702
      %v1917 = vpop.f32.mrf.mxu0
      %v1918 = vadd.f32 0.0, %v1917
      %v1919 = vpop.f32.mrf.mxu0
      %1920 = vmatprep.mubr.f32.mxu0 0.0
      %1921 = vmatmul.mubr.f32.gmra.mxu0 %v1705
      %v1922 = vpop.f32.mrf.mxu0
      %v1923 = vadd.f32 0.0, %v1922
      %v1924 = vpop.f32.mrf.mxu0
      %1925 = vmatprep.mubr.f32.mxu0 0.0
      %1926 = vmatmul.mubr.f32.gmra.mxu0 %v1708
      %v1927 = vpop.f32.mrf.mxu0
      %v1928 = vadd.f32 0.0, %v1927
      %v1929 = vpop.f32.mrf.mxu0
      %1930 = vmatprep.mubr.f32.mxu0 0.0
      %1931 = vmatmul.mubr.f32.gmra.mxu0 %v1711
      %v1932 = vpop.f32.mrf.mxu0
      %v1933 = vadd.f32 0.0, %v1932
      %v1934 = vpop.f32.mrf.mxu0
      %1935 = vmatprep.mubr.f32.mxu0 0.0
      %1936 = vmatmul.mubr.f32.gmra.mxu0 %v1714
      %v1937 = vpop.f32.mrf.mxu0
      %v1938 = vadd.f32 0.0, %v1937
      %v1939 = vpop.f32.mrf.mxu0
      %1940 = vmatprep.mubr.f32.mxu0 0.0
      %1941 = vmatmul.mubr.f32.gmra.mxu0 %v1717
      %v1942 = vpop.f32.mrf.mxu0
      %v1943 = vadd.f32 0.0, %v1942
      %v1944 = vpop.f32.mrf.mxu0
      %1945 = vmatprep.mubr.f32.mxu0 0.0
      %1946 = vmatmul.mubr.f32.gmra.mxu0 %v1720
      %v1947 = vpop.f32.mrf.mxu0
      %v1948 = vadd.f32 0.0, %v1947
      %v1949 = vpop.f32.mrf.mxu0
      %1950 = vdwg.mxu0
      %v1951 = vadd.f32 %v1592, %v1793
      %v1952 = vadd.f32 %v1593, %v1798
      %v1953 = vadd.f32 %v1594, %v1803
      %v1954 = vadd.f32 %v1595, %v1808
      %v1955 = vadd.f32 %v1596, %v1813
      %v1956 = vadd.f32 %v1597, %v1818
      %v1957 = vadd.f32 %v1598, %v1823
      %v1958 = vadd.f32 %v1599, %v1828
      %v1959 = vadd.f32 %v1600, %v1833
      %v1960 = vadd.f32 %v1601, %v1838
      %v1961 = vadd.f32 %v1602, %v1843
      %v1962 = vadd.f32 %v1603, %v1848
      %v1963 = vadd.f32 %v1604, %v1853
      %v1964 = vadd.f32 %v1605, %v1858
      %v1965 = vadd.f32 %v1606, %v1863
      %v1966 = vadd.f32 %v1607, %v1868
      %v1967 = vadd.f32 %v1608, %v1873
      %v1968 = vadd.f32 %v1609, %v1878
      %v1969 = vadd.f32 %v1610, %v1883
      %v1970 = vadd.f32 %v1611, %v1888
      %v1971 = vadd.f32 %v1612, %v1893
      %v1972 = vadd.f32 %v1613, %v1898
      %v1973 = vadd.f32 %v1614, %v1903
      %v1974 = vadd.f32 %v1615, %v1908
      %v1975 = vadd.f32 %v1616, %v1913
      %v1976 = vadd.f32 %v1617, %v1918
      %v1977 = vadd.f32 %v1618, %v1923
      %v1978 = vadd.f32 %v1619, %v1928
      %v1979 = vadd.f32 %v1620, %v1933
      %v1980 = vadd.f32 %v1621, %v1938
      %v1981 = vadd.f32 %v1622, %v1943
      %v1982 = vadd.f32 %v1623, %v1948
      %vm1983 = vcmask 1046528
      %v1984 = vrot.slane %v1015, 1
      %v1985 = vrot.slane %v1016, 1
      %v1986 = vsel %vm1983, %v1984, %v1985
      %v1987 = vrot.slane %v1017, 1
      %v1988 = vsel %vm1983, %v1985, %v1987
      %v1989 = vrot.slane %v1018, 1
      %v1990 = vsel %vm1983, %v1987, %v1989
      %v1991 = vrot.slane %v1019, 1
      %v1992 = vsel %vm1983, %v1989, %v1991
      %v1993 = vrot.slane %v1020, 1
      %v1994 = vsel %vm1983, %v1991, %v1993
      %v1995 = vrot.slane %v1021, 1
      %v1996 = vsel %vm1983, %v1993, %v1995
      %v1997 = vrot.slane %v1022, 1
      %v1998 = vsel %vm1983, %v1995, %v1997
      %v1999 = vrot.slane %v1023, 1
      %v2000 = vsel %vm1983, %v1997, %v1999
      %v2001 = vrot.slane %v1024, 1
      %v2002 = vsel %vm1983, %v1999, %v2001
      %v2003 = vrot.slane %v1025, 1
      %v2004 = vsel %vm1983, %v2001, %v2003
      %v2005 = vrot.slane %v1026, 1
      %v2006 = vsel %vm1983, %v2003, %v2005
      %v2007 = vrot.slane %v1027, 1
      %v2008 = vsel %vm1983, %v2005, %v2007
      %v2009 = vrot.slane %v1028, 1
      %v2010 = vsel %vm1983, %v2007, %v2009
      %v2011 = vrot.slane %v1029, 1
      %v2012 = vsel %vm1983, %v2009, %v2011
      %v2013 = vrot.slane %v1030, 1
      %v2014 = vsel %vm1983, %v2011, %v2013
      %v2015 = vrot.slane %v1031, 1
      %v2016 = vsel %vm1983, %v2013, %v2015
      %v2017 = vrot.slane %v1032, 1
      %v2018 = vsel %vm1983, %v2015, %v2017
      %v2019 = vrot.slane %v1033, 1
      %v2020 = vsel %vm1983, %v2017, %v2019
      %v2021 = vrot.slane %v1034, 1
      %v2022 = vsel %vm1983, %v2019, %v2021
      %v2023 = vrot.slane %v1035, 1
      %v2024 = vsel %vm1983, %v2021, %v2023
      %v2025 = vrot.slane %v1036, 1
      %v2026 = vsel %vm1983, %v2023, %v2025
      %v2027 = vrot.slane %v1037, 1
      %v2028 = vsel %vm1983, %v2025, %v2027
      %v2029 = vrot.slane %v1038, 1
      %v2030 = vsel %vm1983, %v2027, %v2029
      %v2031 = vrot.slane %v1039, 1
      %v2032 = vsel %vm1983, %v2029, %v2031
      %v2033 = vrot.slane %v1040, 1
      %v2034 = vsel %vm1983, %v2031, %v2033
      %v2035 = vrot.slane %v1041, 1
      %v2036 = vsel %vm1983, %v2033, %v2035
      %v2037 = vrot.slane %v1042, 1
      %v2038 = vsel %vm1983, %v2035, %v2037
      %v2039 = vrot.slane %v1043, 1
      %v2040 = vsel %vm1983, %v2037, %v2039
      %v2041 = vrot.slane %v1044, 1
      %v2042 = vsel %vm1983, %v2039, %v2041
      %v2043 = vrot.slane %v1045, 1
      %v2044 = vsel %vm1983, %v2041, %v2043
      %v2045 = vrot.slane %v1046, 1
      %v2046 = vsel %vm1983, %v2043, %v2045
      %v2079 = vsel %vm1983, %v2045, -inf
      %v2080 = vsel %vm1464, 1, 0
      %v2081 = vsel %vm1465, 1, 0
      %v2082 = vsel %vm1466, 1, 0
      %v2083 = vsel %vm1467, 1, 0
      %v2084 = vsel %vm1468, 1, 0
      %v2085 = vsel %vm1469, 1, 0
      %v2086 = vsel %vm1470, 1, 0
      %v2087 = vsel %vm1471, 1, 0
      %v2088 = vsel %vm1472, 1, 0
      %v2089 = vsel %vm1473, 1, 0
      %v2090 = vsel %vm1474, 1, 0
      %v2091 = vsel %vm1475, 1, 0
      %v2092 = vsel %vm1476, 1, 0
      %v2093 = vsel %vm1477, 1, 0
      %v2094 = vsel %vm1478, 1, 0
      %v2095 = vsel %vm1479, 1, 0
      %v2096 = vsel %vm1480, 1, 0
      %v2097 = vsel %vm1481, 1, 0
      %v2098 = vsel %vm1482, 1, 0
      %v2099 = vsel %vm1483, 1, 0
      %v2100 = vsel %vm1484, 1, 0
      %v2101 = vsel %vm1485, 1, 0
      %v2102 = vsel %vm1486, 1, 0
      %v2103 = vsel %vm1487, 1, 0
      %v2104 = vsel %vm1488, 1, 0
      %v2105 = vsel %vm1489, 1, 0
      %v2106 = vsel %vm1490, 1, 0
      %v2107 = vsel %vm1491, 1, 0
      %v2108 = vsel %vm1492, 1, 0
      %v2109 = vsel %vm1493, 1, 0
      %v2110 = vsel %vm1494, 1, 0
      %v2111 = vsel %vm1495, 1, 0
      %vm2112 = vcmp.eq.s32.totalorder %v2080, 1
      %vm2113 = vcmp.eq.s32.totalorder %v2081, 1
      %vm2114 = vcmp.eq.s32.totalorder %v2082, 1
      %vm2115 = vcmp.eq.s32.totalorder %v2083, 1
      %vm2116 = vcmp.eq.s32.totalorder %v2084, 1
      %vm2117 = vcmp.eq.s32.totalorder %v2085, 1
      %vm2118 = vcmp.eq.s32.totalorder %v2086, 1
      %vm2119 = vcmp.eq.s32.totalorder %v2087, 1
      %vm2120 = vcmp.eq.s32.totalorder %v2088, 1
      %vm2121 = vcmp.eq.s32.totalorder %v2089, 1
      %vm2122 = vcmp.eq.s32.totalorder %v2090, 1
      %vm2123 = vcmp.eq.s32.totalorder %v2091, 1
      %vm2124 = vcmp.eq.s32.totalorder %v2092, 1
      %vm2125 = vcmp.eq.s32.totalorder %v2093, 1
      %vm2126 = vcmp.eq.s32.totalorder %v2094, 1
      %vm2127 = vcmp.eq.s32.totalorder %v2095, 1
      %vm2128 = vcmp.eq.s32.totalorder %v2096, 1
      %vm2129 = vcmp.eq.s32.totalorder %v2097, 1
      %vm2130 = vcmp.eq.s32.totalorder %v2098, 1
      %vm2131 = vcmp.eq.s32.totalorder %v2099, 1
      %vm2132 = vcmp.eq.s32.totalorder %v2100, 1
      %vm2133 = vcmp.eq.s32.totalorder %v2101, 1
      %vm2134 = vcmp.eq.s32.totalorder %v2102, 1
      %vm2135 = vcmp.eq.s32.totalorder %v2103, 1
      %vm2136 = vcmp.eq.s32.totalorder %v2104, 1
      %vm2137 = vcmp.eq.s32.totalorder %v2105, 1
      %vm2138 = vcmp.eq.s32.totalorder %v2106, 1
      %vm2139 = vcmp.eq.s32.totalorder %v2107, 1
      %vm2140 = vcmp.eq.s32.totalorder %v2108, 1
      %vm2141 = vcmp.eq.s32.totalorder %v2109, 1
      %vm2142 = vcmp.eq.s32.totalorder %v2110, 1
      %vm2143 = vcmp.eq.s32.totalorder %v2111, 1
      %v2144 = vsel %vm2112, %v1986, -inf
      %v2145 = vsel %vm2113, %v1988, -inf
      %v2146 = vsel %vm2114, %v1990, -inf
      %v2147 = vsel %vm2115, %v1992, -inf
      %v2148 = vsel %vm2116, %v1994, -inf
      %v2149 = vsel %vm2117, %v1996, -inf
      %v2150 = vsel %vm2118, %v1998, -inf
      %v2151 = vsel %vm2119, %v2000, -inf
      %v2152 = vsel %vm2120, %v2002, -inf
      %v2153 = vsel %vm2121, %v2004, -inf
      %v2154 = vsel %vm2122, %v2006, -inf
      %v2155 = vsel %vm2123, %v2008, -inf
      %v2156 = vsel %vm2124, %v2010, -inf
      %v2157 = vsel %vm2125, %v2012, -inf
      %v2158 = vsel %vm2126, %v2014, -inf
      %v2159 = vsel %vm2127, %v2016, -inf
      %v2160 = vsel %vm2128, %v2018, -inf
      %v2161 = vsel %vm2129, %v2020, -inf
      %v2162 = vsel %vm2130, %v2022, -inf
      %v2163 = vsel %vm2131, %v2024, -inf
      %v2164 = vsel %vm2132, %v2026, -inf
      %v2165 = vsel %vm2133, %v2028, -inf
      %v2166 = vsel %vm2134, %v2030, -inf
      %v2167 = vsel %vm2135, %v2032, -inf
      %v2168 = vsel %vm2136, %v2034, -inf
      %v2169 = vsel %vm2137, %v2036, -inf
      %v2170 = vsel %vm2138, %v2038, -inf
      %v2171 = vsel %vm2139, %v2040, -inf
      %v2172 = vsel %vm2140, %v2042, -inf
      %v2173 = vsel %vm2141, %v2044, -inf
      %v2174 = vsel %vm2142, %v2046, -inf
      %v2175 = vsel %vm2143, %v2079, -inf
      %vm2176 = vcmask 1040384
      %v2177 = vrot.slane %v1015, 7
      %v2178 = vrot.slane %v1016, 7
      %v2179 = vsel %vm2176, %v2177, %v2178
      %v2180 = vrot.slane %v1017, 7
      %v2181 = vsel %vm2176, %v2178, %v2180
      %v2182 = vrot.slane %v1018, 7
      %v2183 = vsel %vm2176, %v2180, %v2182
      %v2184 = vrot.slane %v1019, 7
      %v2185 = vsel %vm2176, %v2182, %v2184
      %v2186 = vrot.slane %v1020, 7
      %v2187 = vsel %vm2176, %v2184, %v2186
      %v2188 = vrot.slane %v1021, 7
      %v2189 = vsel %vm2176, %v2186, %v2188
      %v2190 = vrot.slane %v1022, 7
      %v2191 = vsel %vm2176, %v2188, %v2190
      %v2192 = vrot.slane %v1023, 7
      %v2193 = vsel %vm2176, %v2190, %v2192
      %v2194 = vrot.slane %v1024, 7
      %v2195 = vsel %vm2176, %v2192, %v2194
      %v2196 = vrot.slane %v1025, 7
      %v2197 = vsel %vm2176, %v2194, %v2196
      %v2198 = vrot.slane %v1026, 7
      %v2199 = vsel %vm2176, %v2196, %v2198
      %v2200 = vrot.slane %v1027, 7
      %v2201 = vsel %vm2176, %v2198, %v2200
      %v2202 = vrot.slane %v1028, 7
      %v2203 = vsel %vm2176, %v2200, %v2202
      %v2204 = vrot.slane %v1029, 7
      %v2205 = vsel %vm2176, %v2202, %v2204
      %v2206 = vrot.slane %v1030, 7
      %v2207 = vsel %vm2176, %v2204, %v2206
      %v2208 = vrot.slane %v1031, 7
      %v2209 = vsel %vm2176, %v2206, %v2208
      %v2210 = vrot.slane %v1032, 7
      %v2211 = vsel %vm2176, %v2208, %v2210
      %v2212 = vrot.slane %v1033, 7
      %v2213 = vsel %vm2176, %v2210, %v2212
      %v2214 = vrot.slane %v1034, 7
      %v2215 = vsel %vm2176, %v2212, %v2214
      %v2216 = vrot.slane %v1035, 7
      %v2217 = vsel %vm2176, %v2214, %v2216
      %v2218 = vrot.slane %v1036, 7
      %v2219 = vsel %vm2176, %v2216, %v2218
      %v2220 = vrot.slane %v1037, 7
      %v2221 = vsel %vm2176, %v2218, %v2220
      %v2222 = vrot.slane %v1038, 7
      %v2223 = vsel %vm2176, %v2220, %v2222
      %v2224 = vrot.slane %v1039, 7
      %v2225 = vsel %vm2176, %v2222, %v2224
      %v2226 = vrot.slane %v1040, 7
      %v2227 = vsel %vm2176, %v2224, %v2226
      %v2228 = vrot.slane %v1041, 7
      %v2229 = vsel %vm2176, %v2226, %v2228
      %v2230 = vrot.slane %v1042, 7
      %v2231 = vsel %vm2176, %v2228, %v2230
      %v2232 = vrot.slane %v1043, 7
      %v2233 = vsel %vm2176, %v2230, %v2232
      %v2234 = vrot.slane %v1044, 7
      %v2235 = vsel %vm2176, %v2232, %v2234
      %v2236 = vrot.slane %v1045, 7
      %v2237 = vsel %vm2176, %v2234, %v2236
      %v2238 = vrot.slane %v1046, 7
      %v2239 = vsel %vm2176, %v2236, %v2238
      %v2272 = vsel %vm2176, -inf, %v2177
      %v2273 = vsel %vm1528, 1, 0
      %v2274 = vsel %vm1529, 1, 0
      %v2275 = vsel %vm1530, 1, 0
      %v2276 = vsel %vm1531, 1, 0
      %v2277 = vsel %vm1532, 1, 0
      %v2278 = vsel %vm1533, 1, 0
      %v2279 = vsel %vm1534, 1, 0
      %v2280 = vsel %vm1535, 1, 0
      %v2281 = vsel %vm1536, 1, 0
      %v2282 = vsel %vm1537, 1, 0
      %v2283 = vsel %vm1538, 1, 0
      %v2284 = vsel %vm1539, 1, 0
      %v2285 = vsel %vm1540, 1, 0
      %v2286 = vsel %vm1541, 1, 0
      %v2287 = vsel %vm1542, 1, 0
      %v2288 = vsel %vm1543, 1, 0
      %v2289 = vsel %vm1544, 1, 0
      %v2290 = vsel %vm1545, 1, 0
      %v2291 = vsel %vm1546, 1, 0
      %v2292 = vsel %vm1547, 1, 0
      %v2293 = vsel %vm1548, 1, 0
      %v2294 = vsel %vm1549, 1, 0
      %v2295 = vsel %vm1550, 1, 0
      %v2296 = vsel %vm1551, 1, 0
      %v2297 = vsel %vm1552, 1, 0
      %v2298 = vsel %vm1553, 1, 0
      %v2299 = vsel %vm1554, 1, 0
      %v2300 = vsel %vm1555, 1, 0
      %v2301 = vsel %vm1556, 1, 0
      %v2302 = vsel %vm1557, 1, 0
      %v2303 = vsel %vm1558, 1, 0
      %v2304 = vsel %vm1559, 1, 0
      %vm2305 = vcmp.eq.s32.totalorder %v2273, 1
      %vm2306 = vcmp.eq.s32.totalorder %v2274, 1
      %vm2307 = vcmp.eq.s32.totalorder %v2275, 1
      %vm2308 = vcmp.eq.s32.totalorder %v2276, 1
      %vm2309 = vcmp.eq.s32.totalorder %v2277, 1
      %vm2310 = vcmp.eq.s32.totalorder %v2278, 1
      %vm2311 = vcmp.eq.s32.totalorder %v2279, 1
      %vm2312 = vcmp.eq.s32.totalorder %v2280, 1
      %vm2313 = vcmp.eq.s32.totalorder %v2281, 1
      %vm2314 = vcmp.eq.s32.totalorder %v2282, 1
      %vm2315 = vcmp.eq.s32.totalorder %v2283, 1
      %vm2316 = vcmp.eq.s32.totalorder %v2284, 1
      %vm2317 = vcmp.eq.s32.totalorder %v2285, 1
      %vm2318 = vcmp.eq.s32.totalorder %v2286, 1
      %vm2319 = vcmp.eq.s32.totalorder %v2287, 1
      %vm2320 = vcmp.eq.s32.totalorder %v2288, 1
      %vm2321 = vcmp.eq.s32.totalorder %v2289, 1
      %vm2322 = vcmp.eq.s32.totalorder %v2290, 1
      %vm2323 = vcmp.eq.s32.totalorder %v2291, 1
      %vm2324 = vcmp.eq.s32.totalorder %v2292, 1
      %vm2325 = vcmp.eq.s32.totalorder %v2293, 1
      %vm2326 = vcmp.eq.s32.totalorder %v2294, 1
      %vm2327 = vcmp.eq.s32.totalorder %v2295, 1
      %vm2328 = vcmp.eq.s32.totalorder %v2296, 1
      %vm2329 = vcmp.eq.s32.totalorder %v2297, 1
      %vm2330 = vcmp.eq.s32.totalorder %v2298, 1
      %vm2331 = vcmp.eq.s32.totalorder %v2299, 1
      %vm2332 = vcmp.eq.s32.totalorder %v2300, 1
      %vm2333 = vcmp.eq.s32.totalorder %v2301, 1
      %vm2334 = vcmp.eq.s32.totalorder %v2302, 1
      %vm2335 = vcmp.eq.s32.totalorder %v2303, 1
      %vm2336 = vcmp.eq.s32.totalorder %v2304, 1
      %v2337 = vsel %vm2305, %v2272, -inf
      %v2338 = vsel %vm2306, %v2179, -inf
      %v2339 = vsel %vm2307, %v2181, -inf
      %v2340 = vsel %vm2308, %v2183, -inf
      %v2341 = vsel %vm2309, %v2185, -inf
      %v2342 = vsel %vm2310, %v2187, -inf
      %v2343 = vsel %vm2311, %v2189, -inf
      %v2344 = vsel %vm2312, %v2191, -inf
      %v2345 = vsel %vm2313, %v2193, -inf
      %v2346 = vsel %vm2314, %v2195, -inf
      %v2347 = vsel %vm2315, %v2197, -inf
      %v2348 = vsel %vm2316, %v2199, -inf
      %v2349 = vsel %vm2317, %v2201, -inf
      %v2350 = vsel %vm2318, %v2203, -inf
      %v2351 = vsel %vm2319, %v2205, -inf
      %v2352 = vsel %vm2320, %v2207, -inf
      %v2353 = vsel %vm2321, %v2209, -inf
      %v2354 = vsel %vm2322, %v2211, -inf
      %v2355 = vsel %vm2323, %v2213, -inf
      %v2356 = vsel %vm2324, %v2215, -inf
      %v2357 = vsel %vm2325, %v2217, -inf
      %v2358 = vsel %vm2326, %v2219, -inf
      %v2359 = vsel %vm2327, %v2221, -inf
      %v2360 = vsel %vm2328, %v2223, -inf
      %v2361 = vsel %vm2329, %v2225, -inf
      %v2362 = vsel %vm2330, %v2227, -inf
      %v2363 = vsel %vm2331, %v2229, -inf
      %v2364 = vsel %vm2332, %v2231, -inf
      %v2365 = vsel %vm2333, %v2233, -inf
      %v2366 = vsel %vm2334, %v2235, -inf
      %v2367 = vsel %vm2335, %v2237, -inf
      %v2368 = vsel %vm2336, %v2239, -inf
      %v2369 = vmax.f32 %v2144, %v2337
      %v2370 = vmax.f32 %v2145, %v2338
      %v2371 = vmax.f32 %v2146, %v2339
      %v2372 = vmax.f32 %v2147, %v2340
      %v2373 = vmax.f32 %v2148, %v2341
      %v2374 = vmax.f32 %v2149, %v2342
      %v2375 = vmax.f32 %v2150, %v2343
      %v2376 = vmax.f32 %v2151, %v2344
      %v2377 = vmax.f32 %v2152, %v2345
      %v2378 = vmax.f32 %v2153, %v2346
      %v2379 = vmax.f32 %v2154, %v2347
      %v2380 = vmax.f32 %v2155, %v2348
      %v2381 = vmax.f32 %v2156, %v2349
      %v2382 = vmax.f32 %v2157, %v2350
      %v2383 = vmax.f32 %v2158, %v2351
      %v2384 = vmax.f32 %v2159, %v2352
      %v2385 = vmax.f32 %v2160, %v2353
      %v2386 = vmax.f32 %v2161, %v2354
      %v2387 = vmax.f32 %v2162, %v2355
      %v2388 = vmax.f32 %v2163, %v2356
      %v2389 = vmax.f32 %v2164, %v2357
      %v2390 = vmax.f32 %v2165, %v2358
      %v2391 = vmax.f32 %v2166, %v2359
      %v2392 = vmax.f32 %v2167, %v2360
      %v2393 = vmax.f32 %v2168, %v2361
      %v2394 = vmax.f32 %v2169, %v2362
      %v2395 = vmax.f32 %v2170, %v2363
      %v2396 = vmax.f32 %v2171, %v2364
      %v2397 = vmax.f32 %v2172, %v2365
      %v2398 = vmax.f32 %v2173, %v2366
      %v2399 = vmax.f32 %v2174, %v2367
      %v2400 = vmax.f32 %v2175, %v2368
      %v2401 = vmax.f32 %v1015, %v2369
      %v2402 = vmax.f32 %v1016, %v2370
      %v2403 = vmax.f32 %v1017, %v2371
      %v2404 = vmax.f32 %v1018, %v2372
      %v2405 = vmax.f32 %v1019, %v2373
      %v2406 = vmax.f32 %v1020, %v2374
      %v2407 = vmax.f32 %v1021, %v2375
      %v2408 = vmax.f32 %v1022, %v2376
      %v2409 = vmax.f32 %v1023, %v2377
      %v2410 = vmax.f32 %v1024, %v2378
      %v2411 = vmax.f32 %v1025, %v2379
      %v2412 = vmax.f32 %v1026, %v2380
      %v2413 = vmax.f32 %v1027, %v2381
      %v2414 = vmax.f32 %v1028, %v2382
      %v2415 = vmax.f32 %v1029, %v2383
      %v2416 = vmax.f32 %v1030, %v2384
      %v2417 = vmax.f32 %v1031, %v2385
      %v2418 = vmax.f32 %v1032, %v2386
      %v2419 = vmax.f32 %v1033, %v2387
      %v2420 = vmax.f32 %v1034, %v2388
      %v2421 = vmax.f32 %v1035, %v2389
      %v2422 = vmax.f32 %v1036, %v2390
      %v2423 = vmax.f32 %v1037, %v2391
      %v2424 = vmax.f32 %v1038, %v2392
      %v2425 = vmax.f32 %v1039, %v2393
      %v2426 = vmax.f32 %v1040, %v2394
      %v2427 = vmax.f32 %v1041, %v2395
      %v2428 = vmax.f32 %v1042, %v2396
      %v2429 = vmax.f32 %v1043, %v2397
      %v2430 = vmax.f32 %v1044, %v2398
      %v2431 = vmax.f32 %v1045, %v2399
      %v2432 = vmax.f32 %v1046, %v2400
      %vm2433 = vcmask 1045504
      %v2434 = vrot.slane %v1015, 2
      %v2435 = vrot.slane %v1016, 2
      %v2436 = vsel %vm2433, %v2434, %v2435
      %v2437 = vrot.slane %v1017, 2
      %v2438 = vsel %vm2433, %v2435, %v2437
      %v2439 = vrot.slane %v1018, 2
      %v2440 = vsel %vm2433, %v2437, %v2439
      %v2441 = vrot.slane %v1019, 2
      %v2442 = vsel %vm2433, %v2439, %v2441
      %v2443 = vrot.slane %v1020, 2
      %v2444 = vsel %vm2433, %v2441, %v2443
      %v2445 = vrot.slane %v1021, 2
      %v2446 = vsel %vm2433, %v2443, %v2445
      %v2447 = vrot.slane %v1022, 2
      %v2448 = vsel %vm2433, %v2445, %v2447
      %v2449 = vrot.slane %v1023, 2
      %v2450 = vsel %vm2433, %v2447, %v2449
      %v2451 = vrot.slane %v1024, 2
      %v2452 = vsel %vm2433, %v2449, %v2451
      %v2453 = vrot.slane %v1025, 2
      %v2454 = vsel %vm2433, %v2451, %v2453
      %v2455 = vrot.slane %v1026, 2
      %v2456 = vsel %vm2433, %v2453, %v2455
      %v2457 = vrot.slane %v1027, 2
      %v2458 = vsel %vm2433, %v2455, %v2457
      %v2459 = vrot.slane %v1028, 2
      %v2460 = vsel %vm2433, %v2457, %v2459
      %v2461 = vrot.slane %v1029, 2
      %v2462 = vsel %vm2433, %v2459, %v2461
      %v2463 = vrot.slane %v1030, 2
      %v2464 = vsel %vm2433, %v2461, %v2463
      %v2465 = vrot.slane %v1031, 2
      %v2466 = vsel %vm2433, %v2463, %v2465
      %v2467 = vrot.slane %v1032, 2
      %v2468 = vsel %vm2433, %v2465, %v2467
      %v2469 = vrot.slane %v1033, 2
      %v2470 = vsel %vm2433, %v2467, %v2469
      %v2471 = vrot.slane %v1034, 2
      %v2472 = vsel %vm2433, %v2469, %v2471
      %v2473 = vrot.slane %v1035, 2
      %v2474 = vsel %vm2433, %v2471, %v2473
      %v2475 = vrot.slane %v1036, 2
      %v2476 = vsel %vm2433, %v2473, %v2475
      %v2477 = vrot.slane %v1037, 2
      %v2478 = vsel %vm2433, %v2475, %v2477
      %v2479 = vrot.slane %v1038, 2
      %v2480 = vsel %vm2433, %v2477, %v2479
      %v2481 = vrot.slane %v1039, 2
      %v2482 = vsel %vm2433, %v2479, %v2481
      %v2483 = vrot.slane %v1040, 2
      %v2484 = vsel %vm2433, %v2481, %v2483
      %v2485 = vrot.slane %v1041, 2
      %v2486 = vsel %vm2433, %v2483, %v2485
      %v2487 = vrot.slane %v1042, 2
      %v2488 = vsel %vm2433, %v2485, %v2487
      %v2489 = vrot.slane %v1043, 2
      %v2490 = vsel %vm2433, %v2487, %v2489
      %v2491 = vrot.slane %v1044, 2
      %v2492 = vsel %vm2433, %v2489, %v2491
      %v2493 = vrot.slane %v1045, 2
      %v2494 = vsel %vm2433, %v2491, %v2493
      %v2495 = vrot.slane %v1046, 2
      %v2496 = vsel %vm2433, %v2493, %v2495
      %v2529 = vsel %vm2433, %v2495, -inf
      %v2530 = vsel %vm1496, 1, 0
      %v2531 = vsel %vm1497, 1, 0
      %v2532 = vsel %vm1498, 1, 0
      %v2533 = vsel %vm1499, 1, 0
      %v2534 = vsel %vm1500, 1, 0
      %v2535 = vsel %vm1501, 1, 0
      %v2536 = vsel %vm1502, 1, 0
      %v2537 = vsel %vm1503, 1, 0
      %v2538 = vsel %vm1504, 1, 0
      %v2539 = vsel %vm1505, 1, 0
      %v2540 = vsel %vm1506, 1, 0
      %v2541 = vsel %vm1507, 1, 0
      %v2542 = vsel %vm1508, 1, 0
      %v2543 = vsel %vm1509, 1, 0
      %v2544 = vsel %vm1510, 1, 0
      %v2545 = vsel %vm1511, 1, 0
      %v2546 = vsel %vm1512, 1, 0
      %v2547 = vsel %vm1513, 1, 0
      %v2548 = vsel %vm1514, 1, 0
      %v2549 = vsel %vm1515, 1, 0
      %v2550 = vsel %vm1516, 1, 0
      %v2551 = vsel %vm1517, 1, 0
      %v2552 = vsel %vm1518, 1, 0
      %v2553 = vsel %vm1519, 1, 0
      %v2554 = vsel %vm1520, 1, 0
      %v2555 = vsel %vm1521, 1, 0
      %v2556 = vsel %vm1522, 1, 0
      %v2557 = vsel %vm1523, 1, 0
      %v2558 = vsel %vm1524, 1, 0
      %v2559 = vsel %vm1525, 1, 0
      %v2560 = vsel %vm1526, 1, 0
      %v2561 = vsel %vm1527, 1, 0
      %vm2562 = vcmp.eq.s32.totalorder %v2530, 1
      %vm2563 = vcmp.eq.s32.totalorder %v2531, 1
      %vm2564 = vcmp.eq.s32.totalorder %v2532, 1
      %vm2565 = vcmp.eq.s32.totalorder %v2533, 1
      %vm2566 = vcmp.eq.s32.totalorder %v2534, 1
      %vm2567 = vcmp.eq.s32.totalorder %v2535, 1
      %vm2568 = vcmp.eq.s32.totalorder %v2536, 1
      %vm2569 = vcmp.eq.s32.totalorder %v2537, 1
      %vm2570 = vcmp.eq.s32.totalorder %v2538, 1
      %vm2571 = vcmp.eq.s32.totalorder %v2539, 1
      %vm2572 = vcmp.eq.s32.totalorder %v2540, 1
      %vm2573 = vcmp.eq.s32.totalorder %v2541, 1
      %vm2574 = vcmp.eq.s32.totalorder %v2542, 1
      %vm2575 = vcmp.eq.s32.totalorder %v2543, 1
      %vm2576 = vcmp.eq.s32.totalorder %v2544, 1
      %vm2577 = vcmp.eq.s32.totalorder %v2545, 1
      %vm2578 = vcmp.eq.s32.totalorder %v2546, 1
      %vm2579 = vcmp.eq.s32.totalorder %v2547, 1
      %vm2580 = vcmp.eq.s32.totalorder %v2548, 1
      %vm2581 = vcmp.eq.s32.totalorder %v2549, 1
      %vm2582 = vcmp.eq.s32.totalorder %v2550, 1
      %vm2583 = vcmp.eq.s32.totalorder %v2551, 1
      %vm2584 = vcmp.eq.s32.totalorder %v2552, 1
      %vm2585 = vcmp.eq.s32.totalorder %v2553, 1
      %vm2586 = vcmp.eq.s32.totalorder %v2554, 1
      %vm2587 = vcmp.eq.s32.totalorder %v2555, 1
      %vm2588 = vcmp.eq.s32.totalorder %v2556, 1
      %vm2589 = vcmp.eq.s32.totalorder %v2557, 1
      %vm2590 = vcmp.eq.s32.totalorder %v2558, 1
      %vm2591 = vcmp.eq.s32.totalorder %v2559, 1
      %vm2592 = vcmp.eq.s32.totalorder %v2560, 1
      %vm2593 = vcmp.eq.s32.totalorder %v2561, 1
      %v2594 = vsel %vm2562, %v2436, -inf
      %v2595 = vsel %vm2563, %v2438, -inf
      %v2596 = vsel %vm2564, %v2440, -inf
      %v2597 = vsel %vm2565, %v2442, -inf
      %v2598 = vsel %vm2566, %v2444, -inf
      %v2599 = vsel %vm2567, %v2446, -inf
      %v2600 = vsel %vm2568, %v2448, -inf
      %v2601 = vsel %vm2569, %v2450, -inf
      %v2602 = vsel %vm2570, %v2452, -inf
      %v2603 = vsel %vm2571, %v2454, -inf
      %v2604 = vsel %vm2572, %v2456, -inf
      %v2605 = vsel %vm2573, %v2458, -inf
      %v2606 = vsel %vm2574, %v2460, -inf
      %v2607 = vsel %vm2575, %v2462, -inf
      %v2608 = vsel %vm2576, %v2464, -inf
      %v2609 = vsel %vm2577, %v2466, -inf
      %v2610 = vsel %vm2578, %v2468, -inf
      %v2611 = vsel %vm2579, %v2470, -inf
      %v2612 = vsel %vm2580, %v2472, -inf
      %v2613 = vsel %vm2581, %v2474, -inf
      %v2614 = vsel %vm2582, %v2476, -inf
      %v2615 = vsel %vm2583, %v2478, -inf
      %v2616 = vsel %vm2584, %v2480, -inf
      %v2617 = vsel %vm2585, %v2482, -inf
      %v2618 = vsel %vm2586, %v2484, -inf
      %v2619 = vsel %vm2587, %v2486, -inf
      %v2620 = vsel %vm2588, %v2488, -inf
      %v2621 = vsel %vm2589, %v2490, -inf
      %v2622 = vsel %vm2590, %v2492, -inf
      %v2623 = vsel %vm2591, %v2494, -inf
      %v2624 = vsel %vm2592, %v2496, -inf
      %v2625 = vsel %vm2593, %v2529, -inf
      %vm2626 = vcmask 1041408
      %v2627 = vrot.slane %v1015, 6
      %v2628 = vrot.slane %v1016, 6
      %v2629 = vsel %vm2626, %v2627, %v2628
      %v2630 = vrot.slane %v1017, 6
      %v2631 = vsel %vm2626, %v2628, %v2630
      %v2632 = vrot.slane %v1018, 6
      %v2633 = vsel %vm2626, %v2630, %v2632
      %v2634 = vrot.slane %v1019, 6
      %v2635 = vsel %vm2626, %v2632, %v2634
      %v2636 = vrot.slane %v1020, 6
      %v2637 = vsel %vm2626, %v2634, %v2636
      %v2638 = vrot.slane %v1021, 6
      %v2639 = vsel %vm2626, %v2636, %v2638
      %v2640 = vrot.slane %v1022, 6
      %v2641 = vsel %vm2626, %v2638, %v2640
      %v2642 = vrot.slane %v1023, 6
      %v2643 = vsel %vm2626, %v2640, %v2642
      %v2644 = vrot.slane %v1024, 6
      %v2645 = vsel %vm2626, %v2642, %v2644
      %v2646 = vrot.slane %v1025, 6
      %v2647 = vsel %vm2626, %v2644, %v2646
      %v2648 = vrot.slane %v1026, 6
      %v2649 = vsel %vm2626, %v2646, %v2648
      %v2650 = vrot.slane %v1027, 6
      %v2651 = vsel %vm2626, %v2648, %v2650
      %v2652 = vrot.slane %v1028, 6
      %v2653 = vsel %vm2626, %v2650, %v2652
      %v2654 = vrot.slane %v1029, 6
      %v2655 = vsel %vm2626, %v2652, %v2654
      %v2656 = vrot.slane %v1030, 6
      %v2657 = vsel %vm2626, %v2654, %v2656
      %v2658 = vrot.slane %v1031, 6
      %v2659 = vsel %vm2626, %v2656, %v2658
      %v2660 = vrot.slane %v1032, 6
      %v2661 = vsel %vm2626, %v2658, %v2660
      %v2662 = vrot.slane %v1033, 6
      %v2663 = vsel %vm2626, %v2660, %v2662
      %v2664 = vrot.slane %v1034, 6
      %v2665 = vsel %vm2626, %v2662, %v2664
      %v2666 = vrot.slane %v1035, 6
      %v2667 = vsel %vm2626, %v2664, %v2666
      %v2668 = vrot.slane %v1036, 6
      %v2669 = vsel %vm2626, %v2666, %v2668
      %v2670 = vrot.slane %v1037, 6
      %v2671 = vsel %vm2626, %v2668, %v2670
      %v2672 = vrot.slane %v1038, 6
      %v2673 = vsel %vm2626, %v2670, %v2672
      %v2674 = vrot.slane %v1039, 6
      %v2675 = vsel %vm2626, %v2672, %v2674
      %v2676 = vrot.slane %v1040, 6
      %v2677 = vsel %vm2626, %v2674, %v2676
      %v2678 = vrot.slane %v1041, 6
      %v2679 = vsel %vm2626, %v2676, %v2678
      %v2680 = vrot.slane %v1042, 6
      %v2681 = vsel %vm2626, %v2678, %v2680
      %v2682 = vrot.slane %v1043, 6
      %v2683 = vsel %vm2626, %v2680, %v2682
      %v2684 = vrot.slane %v1044, 6
      %v2685 = vsel %vm2626, %v2682, %v2684
      %v2686 = vrot.slane %v1045, 6
      %v2687 = vsel %vm2626, %v2684, %v2686
      %v2688 = vrot.slane %v1046, 6
      %v2689 = vsel %vm2626, %v2686, %v2688
      %v2722 = vsel %vm2626, -inf, %v2627
      %v2723 = vsel %vm1560, 1, 0
      %v2724 = vsel %vm1561, 1, 0
      %v2725 = vsel %vm1562, 1, 0
      %v2726 = vsel %vm1563, 1, 0
      %v2727 = vsel %vm1564, 1, 0
      %v2728 = vsel %vm1565, 1, 0
      %v2729 = vsel %vm1566, 1, 0
      %v2730 = vsel %vm1567, 1, 0
      %v2731 = vsel %vm1568, 1, 0
      %v2732 = vsel %vm1569, 1, 0
      %v2733 = vsel %vm1570, 1, 0
      %v2734 = vsel %vm1571, 1, 0
      %v2735 = vsel %vm1572, 1, 0
      %v2736 = vsel %vm1573, 1, 0
      %v2737 = vsel %vm1574, 1, 0
      %v2738 = vsel %vm1575, 1, 0
      %v2739 = vsel %vm1576, 1, 0
      %v2740 = vsel %vm1577, 1, 0
      %v2741 = vsel %vm1578, 1, 0
      %v2742 = vsel %vm1579, 1, 0
      %v2743 = vsel %vm1580, 1, 0
      %v2744 = vsel %vm1581, 1, 0
      %v2745 = vsel %vm1582, 1, 0
      %v2746 = vsel %vm1583, 1, 0
      %v2747 = vsel %vm1584, 1, 0
      %v2748 = vsel %vm1585, 1, 0
      %v2749 = vsel %vm1586, 1, 0
      %v2750 = vsel %vm1587, 1, 0
      %v2751 = vsel %vm1588, 1, 0
      %v2752 = vsel %vm1589, 1, 0
      %v2753 = vsel %vm1590, 1, 0
      %v2754 = vsel %vm1591, 1, 0
      %vm2755 = vcmp.eq.s32.totalorder %v2723, 1
      %vm2756 = vcmp.eq.s32.totalorder %v2724, 1
      %vm2757 = vcmp.eq.s32.totalorder %v2725, 1
      %vm2758 = vcmp.eq.s32.totalorder %v2726, 1
      %vm2759 = vcmp.eq.s32.totalorder %v2727, 1
      %vm2760 = vcmp.eq.s32.totalorder %v2728, 1
      %vm2761 = vcmp.eq.s32.totalorder %v2729, 1
      %vm2762 = vcmp.eq.s32.totalorder %v2730, 1
      %vm2763 = vcmp.eq.s32.totalorder %v2731, 1
      %vm2764 = vcmp.eq.s32.totalorder %v2732, 1
      %vm2765 = vcmp.eq.s32.totalorder %v2733, 1
      %vm2766 = vcmp.eq.s32.totalorder %v2734, 1
      %vm2767 = vcmp.eq.s32.totalorder %v2735, 1
      %vm2768 = vcmp.eq.s32.totalorder %v2736, 1
      %vm2769 = vcmp.eq.s32.totalorder %v2737, 1
      %vm2770 = vcmp.eq.s32.totalorder %v2738, 1
      %vm2771 = vcmp.eq.s32.totalorder %v2739, 1
      %vm2772 = vcmp.eq.s32.totalorder %v2740, 1
      %vm2773 = vcmp.eq.s32.totalorder %v2741, 1
      %vm2774 = vcmp.eq.s32.totalorder %v2742, 1
      %vm2775 = vcmp.eq.s32.totalorder %v2743, 1
      %vm2776 = vcmp.eq.s32.totalorder %v2744, 1
      %vm2777 = vcmp.eq.s32.totalorder %v2745, 1
      %vm2778 = vcmp.eq.s32.totalorder %v2746, 1
      %vm2779 = vcmp.eq.s32.totalorder %v2747, 1
      %vm2780 = vcmp.eq.s32.totalorder %v2748, 1
      %vm2781 = vcmp.eq.s32.totalorder %v2749, 1
      %vm2782 = vcmp.eq.s32.totalorder %v2750, 1
      %vm2783 = vcmp.eq.s32.totalorder %v2751, 1
      %vm2784 = vcmp.eq.s32.totalorder %v2752, 1
      %vm2785 = vcmp.eq.s32.totalorder %v2753, 1
      %vm2786 = vcmp.eq.s32.totalorder %v2754, 1
      %v2787 = vsel %vm2755, %v2722, -inf
      %v2788 = vsel %vm2756, %v2629, -inf
      %v2789 = vsel %vm2757, %v2631, -inf
      %v2790 = vsel %vm2758, %v2633, -inf
      %v2791 = vsel %vm2759, %v2635, -inf
      %v2792 = vsel %vm2760, %v2637, -inf
      %v2793 = vsel %vm2761, %v2639, -inf
      %v2794 = vsel %vm2762, %v2641, -inf
      %v2795 = vsel %vm2763, %v2643, -inf
      %v2796 = vsel %vm2764, %v2645, -inf
      %v2797 = vsel %vm2765, %v2647, -inf
      %v2798 = vsel %vm2766, %v2649, -inf
      %v2799 = vsel %vm2767, %v2651, -inf
      %v2800 = vsel %vm2768, %v2653, -inf
      %v2801 = vsel %vm2769, %v2655, -inf
      %v2802 = vsel %vm2770, %v2657, -inf
      %v2803 = vsel %vm2771, %v2659, -inf
      %v2804 = vsel %vm2772, %v2661, -inf
      %v2805 = vsel %vm2773, %v2663, -inf
      %v2806 = vsel %vm2774, %v2665, -inf
      %v2807 = vsel %vm2775, %v2667, -inf
      %v2808 = vsel %vm2776, %v2669, -inf
      %v2809 = vsel %vm2777, %v2671, -inf
      %v2810 = vsel %vm2778, %v2673, -inf
      %v2811 = vsel %vm2779, %v2675, -inf
      %v2812 = vsel %vm2780, %v2677, -inf
      %v2813 = vsel %vm2781, %v2679, -inf
      %v2814 = vsel %vm2782, %v2681, -inf
      %v2815 = vsel %vm2783, %v2683, -inf
      %v2816 = vsel %vm2784, %v2685, -inf
      %v2817 = vsel %vm2785, %v2687, -inf
      %v2818 = vsel %vm2786, %v2689, -inf
      %v2819 = vmax.f32 %v2594, %v2787
      %v2820 = vmax.f32 %v2595, %v2788
      %v2821 = vmax.f32 %v2596, %v2789
      %v2822 = vmax.f32 %v2597, %v2790
      %v2823 = vmax.f32 %v2598, %v2791
      %v2824 = vmax.f32 %v2599, %v2792
      %v2825 = vmax.f32 %v2600, %v2793
      %v2826 = vmax.f32 %v2601, %v2794
      %v2827 = vmax.f32 %v2602, %v2795
      %v2828 = vmax.f32 %v2603, %v2796
      %v2829 = vmax.f32 %v2604, %v2797
      %v2830 = vmax.f32 %v2605, %v2798
      %v2831 = vmax.f32 %v2606, %v2799
      %v2832 = vmax.f32 %v2607, %v2800
      %v2833 = vmax.f32 %v2608, %v2801
      %v2834 = vmax.f32 %v2609, %v2802
      %v2835 = vmax.f32 %v2610, %v2803
      %v2836 = vmax.f32 %v2611, %v2804
      %v2837 = vmax.f32 %v2612, %v2805
      %v2838 = vmax.f32 %v2613, %v2806
      %v2839 = vmax.f32 %v2614, %v2807
      %v2840 = vmax.f32 %v2615, %v2808
      %v2841 = vmax.f32 %v2616, %v2809
      %v2842 = vmax.f32 %v2617, %v2810
      %v2843 = vmax.f32 %v2618, %v2811
      %v2844 = vmax.f32 %v2619, %v2812
      %v2845 = vmax.f32 %v2620, %v2813
      %v2846 = vmax.f32 %v2621, %v2814
      %v2847 = vmax.f32 %v2622, %v2815
      %v2848 = vmax.f32 %v2623, %v2816
      %v2849 = vmax.f32 %v2624, %v2817
      %v2850 = vmax.f32 %v2625, %v2818
      %v2851 = vmax.f32 %v2401, %v2819
      %v2852 = vmax.f32 %v2402, %v2820
      %v2853 = vmax.f32 %v2403, %v2821
      %v2854 = vmax.f32 %v2404, %v2822
      %v2855 = vmax.f32 %v2405, %v2823
      %v2856 = vmax.f32 %v2406, %v2824
      %v2857 = vmax.f32 %v2407, %v2825
      %v2858 = vmax.f32 %v2408, %v2826
      %v2859 = vmax.f32 %v2409, %v2827
      %v2860 = vmax.f32 %v2410, %v2828
      %v2861 = vmax.f32 %v2411, %v2829
      %v2862 = vmax.f32 %v2412, %v2830
      %v2863 = vmax.f32 %v2413, %v2831
      %v2864 = vmax.f32 %v2414, %v2832
      %v2865 = vmax.f32 %v2415, %v2833
      %v2866 = vmax.f32 %v2416, %v2834
      %v2867 = vmax.f32 %v2417, %v2835
      %v2868 = vmax.f32 %v2418, %v2836
      %v2869 = vmax.f32 %v2419, %v2837
      %v2870 = vmax.f32 %v2420, %v2838
      %v2871 = vmax.f32 %v2421, %v2839
      %v2872 = vmax.f32 %v2422, %v2840
      %v2873 = vmax.f32 %v2423, %v2841
      %v2874 = vmax.f32 %v2424, %v2842
      %v2875 = vmax.f32 %v2425, %v2843
      %v2876 = vmax.f32 %v2426, %v2844
      %v2877 = vmax.f32 %v2427, %v2845
      %v2878 = vmax.f32 %v2428, %v2846
      %v2879 = vmax.f32 %v2429, %v2847
      %v2880 = vmax.f32 %v2430, %v2848
      %v2881 = vmax.f32 %v2431, %v2849
      %v2882 = vmax.f32 %v2432, %v2850
      %v2883 = vmax.f32 %v2855, %v2851
      %v2884 = vmax.f32 %v2856, %v2852
      %v2885 = vmax.f32 %v2857, %v2853
      %v2886 = vmax.f32 %v2858, %v2854
      %v2887 = vmax.f32 %v2859, %v2855
      %v2888 = vmax.f32 %v2860, %v2856
      %v2889 = vmax.f32 %v2861, %v2857
      %v2890 = vmax.f32 %v2862, %v2858
      %v2891 = vmax.f32 %v2863, %v2859
      %v2892 = vmax.f32 %v2864, %v2860
      %v2893 = vmax.f32 %v2865, %v2861
      %v2894 = vmax.f32 %v2866, %v2862
      %v2895 = vmax.f32 %v2867, %v2863
      %v2896 = vmax.f32 %v2868, %v2864
      %v2897 = vmax.f32 %v2869, %v2865
      %v2898 = vmax.f32 %v2870, %v2866
      %v2899 = vmax.f32 %v2871, %v2867
      %v2900 = vmax.f32 %v2872, %v2868
      %v2901 = vmax.f32 %v2873, %v2869
      %v2902 = vmax.f32 %v2874, %v2870
      %v2903 = vmax.f32 %v2875, %v2871
      %v2904 = vmax.f32 %v2876, %v2872
      %v2905 = vmax.f32 %v2877, %v2873
      %v2906 = vmax.f32 %v2878, %v2874
      %v2907 = vmax.f32 %v2879, %v2875
      %v2908 = vmax.f32 %v2880, %v2876
      %v2909 = vmax.f32 %v2881, %v2877
      %v2910 = vmax.f32 %v2882, %v2878
      %v2911 = vmax.f32 %v2851, %v2853
      %v2912 = vmax.f32 %v2852, %v2854
      %v2913 = vmax.f32 %v2853, %v2883
      %v2914 = vmax.f32 %v2854, %v2884
      %v2915 = vmax.f32 %v2855, %v2885
      %v2916 = vmax.f32 %v2856, %v2886
      %v2917 = vmax.f32 %v2857, %v2887
      %v2918 = vmax.f32 %v2858, %v2888
      %v2919 = vmax.f32 %v2859, %v2889
      %v2920 = vmax.f32 %v2860, %v2890
      %v2921 = vmax.f32 %v2861, %v2891
      %v2922 = vmax.f32 %v2862, %v2892
      %v2923 = vmax.f32 %v2863, %v2893
      %v2924 = vmax.f32 %v2864, %v2894
      %v2925 = vmax.f32 %v2865, %v2895
      %v2926 = vmax.f32 %v2866, %v2896
      %v2927 = vmax.f32 %v2867, %v2897
      %v2928 = vmax.f32 %v2868, %v2898
      %v2929 = vmax.f32 %v2869, %v2899
      %v2930 = vmax.f32 %v2870, %v2900
      %v2931 = vmax.f32 %v2871, %v2901
      %v2932 = vmax.f32 %v2872, %v2902
      %v2933 = vmax.f32 %v2873, %v2903
      %v2934 = vmax.f32 %v2874, %v2904
      %v2935 = vmax.f32 %v2875, %v2905
      %v2936 = vmax.f32 %v2876, %v2906
      %v2937 = vmax.f32 %v2877, %v2907
      %v2938 = vmax.f32 %v2878, %v2908
      %v2939 = vmax.f32 %v2879, %v2909
      %v2940 = vmax.f32 %v2880, %v2910
      %v2941 = vmax.f32 %v2881, %v2879
      %v2942 = vmax.f32 %v2882, %v2880
      %v2943 = vmax.f32 %v2859, %v2851
      %v2944 = vmax.f32 %v2860, %v2852
      %v2945 = vmax.f32 %v2861, %v2853
      %v2946 = vmax.f32 %v2862, %v2854
      %v2947 = vmax.f32 %v2863, %v2855
      %v2948 = vmax.f32 %v2864, %v2856
      %v2949 = vmax.f32 %v2865, %v2857
      %v2950 = vmax.f32 %v2866, %v2858
      %v2951 = vmax.f32 %v2867, %v2859
      %v2952 = vmax.f32 %v2868, %v2860
      %v2953 = vmax.f32 %v2869, %v2861
      %v2954 = vmax.f32 %v2870, %v2862
      %v2955 = vmax.f32 %v2871, %v2863
      %v2956 = vmax.f32 %v2872, %v2864
      %v2957 = vmax.f32 %v2873, %v2865
      %v2958 = vmax.f32 %v2874, %v2866
      %v2959 = vmax.f32 %v2875, %v2867
      %v2960 = vmax.f32 %v2876, %v2868
      %v2961 = vmax.f32 %v2877, %v2869
      %v2962 = vmax.f32 %v2878, %v2870
      %v2963 = vmax.f32 %v2879, %v2871
      %v2964 = vmax.f32 %v2880, %v2872
      %v2965 = vmax.f32 %v2881, %v2873
      %v2966 = vmax.f32 %v2882, %v2874
      %v2967 = vmax.f32 %v2911, %v2855
      %v2968 = vmax.f32 %v2912, %v2856
      %v2969 = vmax.f32 %v2913, %v2857
      %v2970 = vmax.f32 %v2914, %v2858
      %v2971 = vmax.f32 %v2915, %v2943
      %v2972 = vmax.f32 %v2916, %v2944
      %v2973 = vmax.f32 %v2917, %v2945
      %v2974 = vmax.f32 %v2918, %v2946
      %v2975 = vmax.f32 %v2919, %v2947
      %v2976 = vmax.f32 %v2920, %v2948
      %v2977 = vmax.f32 %v2921, %v2949
      %v2978 = vmax.f32 %v2922, %v2950
      %v2979 = vmax.f32 %v2923, %v2951
      %v2980 = vmax.f32 %v2924, %v2952
      %v2981 = vmax.f32 %v2925, %v2953
      %v2982 = vmax.f32 %v2926, %v2954
      %v2983 = vmax.f32 %v2927, %v2955
      %v2984 = vmax.f32 %v2928, %v2956
      %v2985 = vmax.f32 %v2929, %v2957
      %v2986 = vmax.f32 %v2930, %v2958
      %v2987 = vmax.f32 %v2931, %v2959
      %v2988 = vmax.f32 %v2932, %v2960
      %v2989 = vmax.f32 %v2933, %v2961
      %v2990 = vmax.f32 %v2934, %v2962
      %v2991 = vmax.f32 %v2935, %v2963
      %v2992 = vmax.f32 %v2936, %v2964
      %v2993 = vmax.f32 %v2937, %v2965
      %v2994 = vmax.f32 %v2938, %v2966
      %v2995 = vmax.f32 %v2939, %v2875
      %v2996 = vmax.f32 %v2940, %v2876
      %v2997 = vmax.f32 %v2941, %v2877
      %v2998 = vmax.f32 %v2942, %v2878
      %s2999 = scalar_lea.vmem %s347, 4
      %v3000 = vld [vmem:[%s2999] sm:$0xf]
      %v3002 = vsel %vm1625, %v2967, 0
      %v3005 = vsel %vm1625, %v2968, 0
      %v3008 = vsel %vm1625, %v2969, 0
      %v3011 = vsel %vm1625, %v2970, 0
      %v3014 = vsel %vm1625, %v2971, 0
      %v3017 = vsel %vm1625, %v2972, 0
      %v3020 = vsel %vm1625, %v2973, 0
      %v3023 = vsel %vm1625, %v2974, 0
      %v3026 = vsel %vm1625, %v2975, 0
      %v3029 = vsel %vm1625, %v2976, 0
      %v3032 = vsel %vm1625, %v2977, 0
      %v3035 = vsel %vm1625, %v2978, 0
      %v3038 = vsel %vm1625, %v2979, 0
      %v3041 = vsel %vm1625, %v2980, 0
      %v3044 = vsel %vm1625, %v2981, 0
      %v3047 = vsel %vm1625, %v2982, 0
      %v3050 = vsel %vm1625, %v2983, 0
      %v3053 = vsel %vm1625, %v2984, 0
      %v3056 = vsel %vm1625, %v2985, 0
      %v3059 = vsel %vm1625, %v2986, 0
      %v3062 = vsel %vm1625, %v2987, 0
      %v3065 = vsel %vm1625, %v2988, 0
      %v3068 = vsel %vm1625, %v2989, 0
      %v3071 = vsel %vm1625, %v2990, 0
      %v3074 = vsel %vm1625, %v2991, 0
      %v3077 = vsel %vm1625, %v2992, 0
      %v3080 = vsel %vm1625, %v2993, 0
      %v3083 = vsel %vm1625, %v2994, 0
      %v3086 = vsel %vm1625, %v2995, 0
      %v3089 = vsel %vm1625, %v2996, 0
      %v3092 = vsel %vm1625, %v2997, 0
      %v3095 = vsel %vm1625, %v2998, 0
      %v3098 = vsel %vm1722, %v3000, 0
      %3100 = vmatprep.subr.mxu0 0.0
      %3101 = vmatpush1.msra.mxu0 0.0
      %3102 = vmatprep.subr.mxu0 0.0
      %3103 = vmatpush1.msra.mxu0 0.0
      %3104 = vmatprep.subr.mxu0 0.0
      %3105 = vmatpush1.msra.mxu0 0.0
      %3106 = vmatprep.subr.mxu0 0.0
      %3107 = vmatpush1.msra.mxu0 0.0
      %3108 = vmatprep.subr.mxu0 0.0
      %3109 = vmatpush1.msra.mxu0 0.0
      %3110 = vmatprep.subr.mxu0 0.0
      %3111 = vmatpush1.msra.mxu0 0.0
      %3112 = vmatprep.subr.mxu0 0.0
      %3113 = vmatpush1.msra.mxu0 0.0
      %3114 = vmatprep.subr.mxu0 0.0
      %3115 = vmatpush1.msra.mxu0 0.0
      %3116 = vmatprep.subr.mxu0 0.0
      %3117 = vmatpush1.msra.mxu0 0.0
      %3118 = vmatprep.subr.mxu0 0.0
      %3119 = vmatpush1.msra.mxu0 0.0
      %3120 = vmatprep.subr.mxu0 0.0
      %3121 = vmatpush1.msra.mxu0 0.0
      %3122 = vmatprep.subr.mxu0 0.0
      %3123 = vmatpush1.msra.mxu0 0.0
      %3124 = vmatprep.subr.mxu0 0.0
      %3125 = vmatpush1.msra.mxu0 0.0
      %3126 = vmatprep.subr.mxu0 0.0
      %3127 = vmatpush1.msra.mxu0 0.0
      %3128 = vmatprep.subr.mxu0 0.0
      %3129 = vmatpush1.msra.mxu0 0.0
      %3130 = vmatprep.subr.mxu0 0.0
      %3131 = vmatpush1.msra.mxu0 %v3098
      %3132 = vmatprep.subr.mxu0 0.0
      %3133 = vmatpush2.msra.mxu0 0.0
      %3134 = vmatprep.subr.mxu0 0.0
      %3135 = vmatpush2.msra.mxu0 0.0
      %3136 = vmatprep.subr.mxu0 0.0
      %3137 = vmatpush2.msra.mxu0 0.0
      %3138 = vmatprep.subr.mxu0 0.0
      %3139 = vmatpush2.msra.mxu0 0.0
      %3140 = vmatprep.subr.mxu0 0.0
      %3141 = vmatpush2.msra.mxu0 0.0
      %3142 = vmatprep.subr.mxu0 0.0
      %3143 = vmatpush2.msra.mxu0 0.0
      %3144 = vmatprep.subr.mxu0 0.0
      %3145 = vmatpush2.msra.mxu0 0.0
      %3146 = vmatprep.subr.mxu0 0.0
      %3147 = vmatpush2.msra.mxu0 0.0
      %3148 = vmatprep.subr.mxu0 0.0
      %3149 = vmatpush2.msra.mxu0 0.0
      %3150 = vmatprep.subr.mxu0 0.0
      %3151 = vmatpush2.msra.mxu0 0.0
      %3152 = vmatprep.subr.mxu0 0.0
      %3153 = vmatpush2.msra.mxu0 0.0
      %3154 = vmatprep.subr.mxu0 0.0
      %3155 = vmatpush2.msra.mxu0 0.0
      %3156 = vmatprep.subr.mxu0 0.0
      %3157 = vmatpush2.msra.mxu0 0.0
      %3158 = vmatprep.subr.mxu0 0.0
      %3159 = vmatpush2.msra.mxu0 0.0
      %3160 = vmatprep.subr.mxu0 0.0
      %3161 = vmatpush2.msra.mxu0 0.0
      %3162 = vmatprep.subr.mxu0 0.0
      %3163 = vmatpush2.msra.mxu0 0.0
      %3164 = vmatprep.mubr.f32.mxu0 0.0
      %3165 = vmatmul.mubr.f32.gmra.mxu0 %v3002
      %v3166 = vpop.f32.mrf.mxu0
      %v3167 = vadd.f32 0.0, %v3166
      %v3168 = vpop.f32.mrf.mxu0
      %3169 = vmatprep.mubr.f32.mxu0 0.0
      %3170 = vmatmul.mubr.f32.gmra.mxu0 %v3005
      %v3171 = vpop.f32.mrf.mxu0
      %v3172 = vadd.f32 0.0, %v3171
      %v3173 = vpop.f32.mrf.mxu0
      %3174 = vmatprep.mubr.f32.mxu0 0.0
      %3175 = vmatmul.mubr.f32.gmra.mxu0 %v3008
      %v3176 = vpop.f32.mrf.mxu0
      %v3177 = vadd.f32 0.0, %v3176
      %v3178 = vpop.f32.mrf.mxu0
      %3179 = vmatprep.mubr.f32.mxu0 0.0
      %3180 = vmatmul.mubr.f32.gmra.mxu0 %v3011
      %v3181 = vpop.f32.mrf.mxu0
      %v3182 = vadd.f32 0.0, %v3181
      %v3183 = vpop.f32.mrf.mxu0
      %3184 = vmatprep.mubr.f32.mxu0 0.0
      %3185 = vmatmul.mubr.f32.gmra.mxu0 %v3014
      %v3186 = vpop.f32.mrf.mxu0
      %v3187 = vadd.f32 0.0, %v3186
      %v3188 = vpop.f32.mrf.mxu0
      %3189 = vmatprep.mubr.f32.mxu0 0.0
      %3190 = vmatmul.mubr.f32.gmra.mxu0 %v3017
      %v3191 = vpop.f32.mrf.mxu0
      %v3192 = vadd.f32 0.0, %v3191
      %v3193 = vpop.f32.mrf.mxu0
      %3194 = vmatprep.mubr.f32.mxu0 0.0
      %3195 = vmatmul.mubr.f32.gmra.mxu0 %v3020
      %v3196 = vpop.f32.mrf.mxu0
      %v3197 = vadd.f32 0.0, %v3196
      %v3198 = vpop.f32.mrf.mxu0
      %3199 = vmatprep.mubr.f32.mxu0 0.0
      %3200 = vmatmul.mubr.f32.gmra.mxu0 %v3023
      %v3201 = vpop.f32.mrf.mxu0
      %v3202 = vadd.f32 0.0, %v3201
      %v3203 = vpop.f32.mrf.mxu0
      %3204 = vmatprep.mubr.f32.mxu0 0.0
      %3205 = vmatmul.mubr.f32.gmra.mxu0 %v3026
      %v3206 = vpop.f32.mrf.mxu0
      %v3207 = vadd.f32 0.0, %v3206
      %v3208 = vpop.f32.mrf.mxu0
      %3209 = vmatprep.mubr.f32.mxu0 0.0
      %3210 = vmatmul.mubr.f32.gmra.mxu0 %v3029
      %v3211 = vpop.f32.mrf.mxu0
      %v3212 = vadd.f32 0.0, %v3211
      %v3213 = vpop.f32.mrf.mxu0
      %3214 = vmatprep.mubr.f32.mxu0 0.0
      %3215 = vmatmul.mubr.f32.gmra.mxu0 %v3032
      %v3216 = vpop.f32.mrf.mxu0
      %v3217 = vadd.f32 0.0, %v3216
      %v3218 = vpop.f32.mrf.mxu0
      %3219 = vmatprep.mubr.f32.mxu0 0.0
      %3220 = vmatmul.mubr.f32.gmra.mxu0 %v3035
      %v3221 = vpop.f32.mrf.mxu0
      %v3222 = vadd.f32 0.0, %v3221
      %v3223 = vpop.f32.mrf.mxu0
      %3224 = vmatprep.mubr.f32.mxu0 0.0
      %3225 = vmatmul.mubr.f32.gmra.mxu0 %v3038
      %v3226 = vpop.f32.mrf.mxu0
      %v3227 = vadd.f32 0.0, %v3226
      %v3228 = vpop.f32.mrf.mxu0
      %3229 = vmatprep.mubr.f32.mxu0 0.0
      %3230 = vmatmul.mubr.f32.gmra.mxu0 %v3041
      %v3231 = vpop.f32.mrf.mxu0
      %v3232 = vadd.f32 0.0, %v3231
      %v3233 = vpop.f32.mrf.mxu0
      %3234 = vmatprep.mubr.f32.mxu0 0.0
      %3235 = vmatmul.mubr.f32.gmra.mxu0 %v3044
      %v3236 = vpop.f32.mrf.mxu0
      %v3237 = vadd.f32 0.0, %v3236
      %v3238 = vpop.f32.mrf.mxu0
      %3239 = vmatprep.mubr.f32.mxu0 0.0
      %3240 = vmatmul.mubr.f32.gmra.mxu0 %v3047
      %v3241 = vpop.f32.mrf.mxu0
      %v3242 = vadd.f32 0.0, %v3241
      %v3243 = vpop.f32.mrf.mxu0
      %3244 = vmatprep.mubr.f32.mxu0 0.0
      %3245 = vmatmul.mubr.f32.gmra.mxu0 %v3050
      %v3246 = vpop.f32.mrf.mxu0
      %v3247 = vadd.f32 0.0, %v3246
      %v3248 = vpop.f32.mrf.mxu0
      %3249 = vmatprep.mubr.f32.mxu0 0.0
      %3250 = vmatmul.mubr.f32.gmra.mxu0 %v3053
      %v3251 = vpop.f32.mrf.mxu0
      %v3252 = vadd.f32 0.0, %v3251
      %v3253 = vpop.f32.mrf.mxu0
      %3254 = vmatprep.mubr.f32.mxu0 0.0
      %3255 = vmatmul.mubr.f32.gmra.mxu0 %v3056
      %v3256 = vpop.f32.mrf.mxu0
      %v3257 = vadd.f32 0.0, %v3256
      %v3258 = vpop.f32.mrf.mxu0
      %3259 = vmatprep.mubr.f32.mxu0 0.0
      %3260 = vmatmul.mubr.f32.gmra.mxu0 %v3059
      %v3261 = vpop.f32.mrf.mxu0
      %v3262 = vadd.f32 0.0, %v3261
      %v3263 = vpop.f32.mrf.mxu0
      %3264 = vmatprep.mubr.f32.mxu0 0.0
      %3265 = vmatmul.mubr.f32.gmra.mxu0 %v3062
      %v3266 = vpop.f32.mrf.mxu0
      %v3267 = vadd.f32 0.0, %v3266
      %v3268 = vpop.f32.mrf.mxu0
      %3269 = vmatprep.mubr.f32.mxu0 0.0
      %3270 = vmatmul.mubr.f32.gmra.mxu0 %v3065
      %v3271 = vpop.f32.mrf.mxu0
      %v3272 = vadd.f32 0.0, %v3271
      %v3273 = vpop.f32.mrf.mxu0
      %3274 = vmatprep.mubr.f32.mxu0 0.0
      %3275 = vmatmul.mubr.f32.gmra.mxu0 %v3068
      %v3276 = vpop.f32.mrf.mxu0
      %v3277 = vadd.f32 0.0, %v3276
      %v3278 = vpop.f32.mrf.mxu0
      %3279 = vmatprep.mubr.f32.mxu0 0.0
      %3280 = vmatmul.mubr.f32.gmra.mxu0 %v3071
      %v3281 = vpop.f32.mrf.mxu0
      %v3282 = vadd.f32 0.0, %v3281
      %v3283 = vpop.f32.mrf.mxu0
      %3284 = vmatprep.mubr.f32.mxu0 0.0
      %3285 = vmatmul.mubr.f32.gmra.mxu0 %v3074
      %v3286 = vpop.f32.mrf.mxu0
      %v3287 = vadd.f32 0.0, %v3286
      %v3288 = vpop.f32.mrf.mxu0
      %3289 = vmatprep.mubr.f32.mxu0 0.0
      %3290 = vmatmul.mubr.f32.gmra.mxu0 %v3077
      %v3291 = vpop.f32.mrf.mxu0
      %v3292 = vadd.f32 0.0, %v3291
      %v3293 = vpop.f32.mrf.mxu0
      %3294 = vmatprep.mubr.f32.mxu0 0.0
      %3295 = vmatmul.mubr.f32.gmra.mxu0 %v3080
      %v3296 = vpop.f32.mrf.mxu0
      %v3297 = vadd.f32 0.0, %v3296
      %v3298 = vpop.f32.mrf.mxu0
      %3299 = vmatprep.mubr.f32.mxu0 0.0
      %3300 = vmatmul.mubr.f32.gmra.mxu0 %v3083
      %v3301 = vpop.f32.mrf.mxu0
      %v3302 = vadd.f32 0.0, %v3301
      %v3303 = vpop.f32.mrf.mxu0
      %3304 = vmatprep.mubr.f32.mxu0 0.0
      %3305 = vmatmul.mubr.f32.gmra.mxu0 %v3086
      %v3306 = vpop.f32.mrf.mxu0
      %v3307 = vadd.f32 0.0, %v3306
      %v3308 = vpop.f32.mrf.mxu0
      %3309 = vmatprep.mubr.f32.mxu0 0.0
      %3310 = vmatmul.mubr.f32.gmra.mxu0 %v3089
      %v3311 = vpop.f32.mrf.mxu0
      %v3312 = vadd.f32 0.0, %v3311
      %v3313 = vpop.f32.mrf.mxu0
      %3314 = vmatprep.mubr.f32.mxu0 0.0
      %3315 = vmatmul.mubr.f32.gmra.mxu0 %v3092
      %v3316 = vpop.f32.mrf.mxu0
      %v3317 = vadd.f32 0.0, %v3316
      %v3318 = vpop.f32.mrf.mxu0
      %3319 = vmatprep.mubr.f32.mxu0 0.0
      %3320 = vmatmul.mubr.f32.gmra.mxu0 %v3095
      %v3321 = vpop.f32.mrf.mxu0
      %v3322 = vadd.f32 0.0, %v3321
      %v3323 = vpop.f32.mrf.mxu0
      %3324 = vdwg.mxu0
      %v3325 = vadd.f32 %v1951, %v3167
      %v3326 = vadd.f32 %v1952, %v3172
      %v3327 = vadd.f32 %v1953, %v3177
      %v3328 = vadd.f32 %v1954, %v3182
      %v3329 = vadd.f32 %v1955, %v3187
      %v3330 = vadd.f32 %v1956, %v3192
      %v3331 = vadd.f32 %v1957, %v3197
      %v3332 = vadd.f32 %v1958, %v3202
      %v3333 = vadd.f32 %v1959, %v3207
      %v3334 = vadd.f32 %v1960, %v3212
      %v3335 = vadd.f32 %v1961, %v3217
      %v3336 = vadd.f32 %v1962, %v3222
      %v3337 = vadd.f32 %v1963, %v3227
      %v3338 = vadd.f32 %v1964, %v3232
      %v3339 = vadd.f32 %v1965, %v3237
      %v3340 = vadd.f32 %v1966, %v3242
      %v3341 = vadd.f32 %v1967, %v3247
      %v3342 = vadd.f32 %v1968, %v3252
      %v3343 = vadd.f32 %v1969, %v3257
      %v3344 = vadd.f32 %v1970, %v3262
      %v3345 = vadd.f32 %v1971, %v3267
      %v3346 = vadd.f32 %v1972, %v3272
      %v3347 = vadd.f32 %v1973, %v3277
      %v3348 = vadd.f32 %v1974, %v3282
      %v3349 = vadd.f32 %v1975, %v3287
      %v3350 = vadd.f32 %v1976, %v3292
      %v3351 = vadd.f32 %v1977, %v3297
      %v3352 = vadd.f32 %v1978, %v3302
      %v3353 = vadd.f32 %v1979, %v3307
      %v3354 = vadd.f32 %v1980, %v3312
      %v3355 = vadd.f32 %v1981, %v3317
      %v3356 = vadd.f32 %v1982, %v3322
      %v3357 = vrot.slane %v2967, 1
      %v3358 = vrot.slane %v2968, 1
      %v3359 = vsel %vm1983, %v3357, %v3358
      %v3360 = vrot.slane %v2969, 1
      %v3361 = vsel %vm1983, %v3358, %v3360
      %v3362 = vrot.slane %v2970, 1
      %v3363 = vsel %vm1983, %v3360, %v3362
      %v3364 = vrot.slane %v2971, 1
      %v3365 = vsel %vm1983, %v3362, %v3364
      %v3366 = vrot.slane %v2972, 1
      %v3367 = vsel %vm1983, %v3364, %v3366
      %v3368 = vrot.slane %v2973, 1
      %v3369 = vsel %vm1983, %v3366, %v3368
      %v3370 = vrot.slane %v2974, 1
      %v3371 = vsel %vm1983, %v3368, %v3370
      %v3372 = vrot.slane %v2975, 1
      %v3373 = vsel %vm1983, %v3370, %v3372
      %v3374 = vrot.slane %v2976, 1
      %v3375 = vsel %vm1983, %v3372, %v3374
      %v3376 = vrot.slane %v2977, 1
      %v3377 = vsel %vm1983, %v3374, %v3376
      %v3378 = vrot.slane %v2978, 1
      %v3379 = vsel %vm1983, %v3376, %v3378
      %v3380 = vrot.slane %v2979, 1
      %v3381 = vsel %vm1983, %v3378, %v3380
      %v3382 = vrot.slane %v2980, 1
      %v3383 = vsel %vm1983, %v3380, %v3382
      %v3384 = vrot.slane %v2981, 1
      %v3385 = vsel %vm1983, %v3382, %v3384
      %v3386 = vrot.slane %v2982, 1
      %v3387 = vsel %vm1983, %v3384, %v3386
      %v3388 = vrot.slane %v2983, 1
      %v3389 = vsel %vm1983, %v3386, %v3388
      %v3390 = vrot.slane %v2984, 1
      %v3391 = vsel %vm1983, %v3388, %v3390
      %v3392 = vrot.slane %v2985, 1
      %v3393 = vsel %vm1983, %v3390, %v3392
      %v3394 = vrot.slane %v2986, 1
      %v3395 = vsel %vm1983, %v3392, %v3394
      %v3396 = vrot.slane %v2987, 1
      %v3397 = vsel %vm1983, %v3394, %v3396
      %v3398 = vrot.slane %v2988, 1
      %v3399 = vsel %vm1983, %v3396, %v3398
      %v3400 = vrot.slane %v2989, 1
      %v3401 = vsel %vm1983, %v3398, %v3400
      %v3402 = vrot.slane %v2990, 1
      %v3403 = vsel %vm1983, %v3400, %v3402
      %v3404 = vrot.slane %v2991, 1
      %v3405 = vsel %vm1983, %v3402, %v3404
      %v3406 = vrot.slane %v2992, 1
      %v3407 = vsel %vm1983, %v3404, %v3406
      %v3408 = vrot.slane %v2993, 1
      %v3409 = vsel %vm1983, %v3406, %v3408
      %v3410 = vrot.slane %v2994, 1
      %v3411 = vsel %vm1983, %v3408, %v3410
      %v3412 = vrot.slane %v2995, 1
      %v3413 = vsel %vm1983, %v3410, %v3412
      %v3414 = vrot.slane %v2996, 1
      %v3415 = vsel %vm1983, %v3412, %v3414
      %v3416 = vrot.slane %v2997, 1
      %v3417 = vsel %vm1983, %v3414, %v3416
      %v3418 = vrot.slane %v2998, 1
      %v3419 = vsel %vm1983, %v3416, %v3418
      %v3452 = vsel %vm1983, %v3418, -inf
      %v3453 = vsel %vm2112, %v3359, -inf
      %v3454 = vsel %vm2113, %v3361, -inf
      %v3455 = vsel %vm2114, %v3363, -inf
      %v3456 = vsel %vm2115, %v3365, -inf
      %v3457 = vsel %vm2116, %v3367, -inf
      %v3458 = vsel %vm2117, %v3369, -inf
      %v3459 = vsel %vm2118, %v3371, -inf
      %v3460 = vsel %vm2119, %v3373, -inf
      %v3461 = vsel %vm2120, %v3375, -inf
      %v3462 = vsel %vm2121, %v3377, -inf
      %v3463 = vsel %vm2122, %v3379, -inf
      %v3464 = vsel %vm2123, %v3381, -inf
      %v3465 = vsel %vm2124, %v3383, -inf
      %v3466 = vsel %vm2125, %v3385, -inf
      %v3467 = vsel %vm2126, %v3387, -inf
      %v3468 = vsel %vm2127, %v3389, -inf
      %v3469 = vsel %vm2128, %v3391, -inf
      %v3470 = vsel %vm2129, %v3393, -inf
      %v3471 = vsel %vm2130, %v3395, -inf
      %v3472 = vsel %vm2131, %v3397, -inf
      %v3473 = vsel %vm2132, %v3399, -inf
      %v3474 = vsel %vm2133, %v3401, -inf
      %v3475 = vsel %vm2134, %v3403, -inf
      %v3476 = vsel %vm2135, %v3405, -inf
      %v3477 = vsel %vm2136, %v3407, -inf
      %v3478 = vsel %vm2137, %v3409, -inf
      %v3479 = vsel %vm2138, %v3411, -inf
      %v3480 = vsel %vm2139, %v3413, -inf
      %v3481 = vsel %vm2140, %v3415, -inf
      %v3482 = vsel %vm2141, %v3417, -inf
      %v3483 = vsel %vm2142, %v3419, -inf
      %v3484 = vsel %vm2143, %v3452, -inf
      %v3485 = vrot.slane %v2967, 7
      %v3486 = vrot.slane %v2968, 7
      %v3487 = vsel %vm2176, %v3485, %v3486
      %v3488 = vrot.slane %v2969, 7
      %v3489 = vsel %vm2176, %v3486, %v3488
      %v3490 = vrot.slane %v2970, 7
      %v3491 = vsel %vm2176, %v3488, %v3490
      %v3492 = vrot.slane %v2971, 7
      %v3493 = vsel %vm2176, %v3490, %v3492
      %v3494 = vrot.slane %v2972, 7
      %v3495 = vsel %vm2176, %v3492, %v3494
      %v3496 = vrot.slane %v2973, 7
      %v3497 = vsel %vm2176, %v3494, %v3496
      %v3498 = vrot.slane %v2974, 7
      %v3499 = vsel %vm2176, %v3496, %v3498
      %v3500 = vrot.slane %v2975, 7
      %v3501 = vsel %vm2176, %v3498, %v3500
      %v3502 = vrot.slane %v2976, 7
      %v3503 = vsel %vm2176, %v3500, %v3502
      %v3504 = vrot.slane %v2977, 7
      %v3505 = vsel %vm2176, %v3502, %v3504
      %v3506 = vrot.slane %v2978, 7
      %v3507 = vsel %vm2176, %v3504, %v3506
      %v3508 = vrot.slane %v2979, 7
      %v3509 = vsel %vm2176, %v3506, %v3508
      %v3510 = vrot.slane %v2980, 7
      %v3511 = vsel %vm2176, %v3508, %v3510
      %v3512 = vrot.slane %v2981, 7
      %v3513 = vsel %vm2176, %v3510, %v3512
      %v3514 = vrot.slane %v2982, 7
      %v3515 = vsel %vm2176, %v3512, %v3514
      %v3516 = vrot.slane %v2983, 7
      %v3517 = vsel %vm2176, %v3514, %v3516
      %v3518 = vrot.slane %v2984, 7
      %v3519 = vsel %vm2176, %v3516, %v3518
      %v3520 = vrot.slane %v2985, 7
      %v3521 = vsel %vm2176, %v3518, %v3520
      %v3522 = vrot.slane %v2986, 7
      %v3523 = vsel %vm2176, %v3520, %v3522
      %v3524 = vrot.slane %v2987, 7
      %v3525 = vsel %vm2176, %v3522, %v3524
      %v3526 = vrot.slane %v2988, 7
      %v3527 = vsel %vm2176, %v3524, %v3526
      %v3528 = vrot.slane %v2989, 7
      %v3529 = vsel %vm2176, %v3526, %v3528
      %v3530 = vrot.slane %v2990, 7
      %v3531 = vsel %vm2176, %v3528, %v3530
      %v3532 = vrot.slane %v2991, 7
      %v3533 = vsel %vm2176, %v3530, %v3532
      %v3534 = vrot.slane %v2992, 7
      %v3535 = vsel %vm2176, %v3532, %v3534
      %v3536 = vrot.slane %v2993, 7
      %v3537 = vsel %vm2176, %v3534, %v3536
      %v3538 = vrot.slane %v2994, 7
      %v3539 = vsel %vm2176, %v3536, %v3538
      %v3540 = vrot.slane %v2995, 7
      %v3541 = vsel %vm2176, %v3538, %v3540
      %v3542 = vrot.slane %v2996, 7
      %v3543 = vsel %vm2176, %v3540, %v3542
      %v3544 = vrot.slane %v2997, 7
      %v3545 = vsel %vm2176, %v3542, %v3544
      %v3546 = vrot.slane %v2998, 7
      %v3547 = vsel %vm2176, %v3544, %v3546
      %v3580 = vsel %vm2176, -inf, %v3485
      %v3581 = vsel %vm2305, %v3580, -inf
      %v3582 = vsel %vm2306, %v3487, -inf
      %v3583 = vsel %vm2307, %v3489, -inf
      %v3584 = vsel %vm2308, %v3491, -inf
      %v3585 = vsel %vm2309, %v3493, -inf
      %v3586 = vsel %vm2310, %v3495, -inf
      %v3587 = vsel %vm2311, %v3497, -inf
      %v3588 = vsel %vm2312, %v3499, -inf
      %v3589 = vsel %vm2313, %v3501, -inf
      %v3590 = vsel %vm2314, %v3503, -inf
      %v3591 = vsel %vm2315, %v3505, -inf
      %v3592 = vsel %vm2316, %v3507, -inf
      %v3593 = vsel %vm2317, %v3509, -inf
      %v3594 = vsel %vm2318, %v3511, -inf
      %v3595 = vsel %vm2319, %v3513, -inf
      %v3596 = vsel %vm2320, %v3515, -inf
      %v3597 = vsel %vm2321, %v3517, -inf
      %v3598 = vsel %vm2322, %v3519, -inf
      %v3599 = vsel %vm2323, %v3521, -inf
      %v3600 = vsel %vm2324, %v3523, -inf
      %v3601 = vsel %vm2325, %v3525, -inf
      %v3602 = vsel %vm2326, %v3527, -inf
      %v3603 = vsel %vm2327, %v3529, -inf
      %v3604 = vsel %vm2328, %v3531, -inf
      %v3605 = vsel %vm2329, %v3533, -inf
      %v3606 = vsel %vm2330, %v3535, -inf
      %v3607 = vsel %vm2331, %v3537, -inf
      %v3608 = vsel %vm2332, %v3539, -inf
      %v3609 = vsel %vm2333, %v3541, -inf
      %v3610 = vsel %vm2334, %v3543, -inf
      %v3611 = vsel %vm2335, %v3545, -inf
      %v3612 = vsel %vm2336, %v3547, -inf
      %v3613 = vmax.f32 %v3453, %v3581
      %v3614 = vmax.f32 %v3454, %v3582
      %v3615 = vmax.f32 %v3455, %v3583
      %v3616 = vmax.f32 %v3456, %v3584
      %v3617 = vmax.f32 %v3457, %v3585
      %v3618 = vmax.f32 %v3458, %v3586
      %v3619 = vmax.f32 %v3459, %v3587
      %v3620 = vmax.f32 %v3460, %v3588
      %v3621 = vmax.f32 %v3461, %v3589
      %v3622 = vmax.f32 %v3462, %v3590
      %v3623 = vmax.f32 %v3463, %v3591
      %v3624 = vmax.f32 %v3464, %v3592
      %v3625 = vmax.f32 %v3465, %v3593
      %v3626 = vmax.f32 %v3466, %v3594
      %v3627 = vmax.f32 %v3467, %v3595
      %v3628 = vmax.f32 %v3468, %v3596
      %v3629 = vmax.f32 %v3469, %v3597
      %v3630 = vmax.f32 %v3470, %v3598
      %v3631 = vmax.f32 %v3471, %v3599
      %v3632 = vmax.f32 %v3472, %v3600
      %v3633 = vmax.f32 %v3473, %v3601
      %v3634 = vmax.f32 %v3474, %v3602
      %v3635 = vmax.f32 %v3475, %v3603
      %v3636 = vmax.f32 %v3476, %v3604
      %v3637 = vmax.f32 %v3477, %v3605
      %v3638 = vmax.f32 %v3478, %v3606
      %v3639 = vmax.f32 %v3479, %v3607
      %v3640 = vmax.f32 %v3480, %v3608
      %v3641 = vmax.f32 %v3481, %v3609
      %v3642 = vmax.f32 %v3482, %v3610
      %v3643 = vmax.f32 %v3483, %v3611
      %v3644 = vmax.f32 %v3484, %v3612
      %v3645 = vmax.f32 %v2967, %v3613
      %v3646 = vmax.f32 %v2968, %v3614
      %v3647 = vmax.f32 %v2969, %v3615
      %v3648 = vmax.f32 %v2970, %v3616
      %v3649 = vmax.f32 %v2971, %v3617
      %v3650 = vmax.f32 %v2972, %v3618
      %v3651 = vmax.f32 %v2973, %v3619
      %v3652 = vmax.f32 %v2974, %v3620
      %v3653 = vmax.f32 %v2975, %v3621
      %v3654 = vmax.f32 %v2976, %v3622
      %v3655 = vmax.f32 %v2977, %v3623
      %v3656 = vmax.f32 %v2978, %v3624
      %v3657 = vmax.f32 %v2979, %v3625
      %v3658 = vmax.f32 %v2980, %v3626
      %v3659 = vmax.f32 %v2981, %v3627
      %v3660 = vmax.f32 %v2982, %v3628
      %v3661 = vmax.f32 %v2983, %v3629
      %v3662 = vmax.f32 %v2984, %v3630
      %v3663 = vmax.f32 %v2985, %v3631
      %v3664 = vmax.f32 %v2986, %v3632
      %v3665 = vmax.f32 %v2987, %v3633
      %v3666 = vmax.f32 %v2988, %v3634
      %v3667 = vmax.f32 %v2989, %v3635
      %v3668 = vmax.f32 %v2990, %v3636
      %v3669 = vmax.f32 %v2991, %v3637
      %v3670 = vmax.f32 %v2992, %v3638
      %v3671 = vmax.f32 %v2993, %v3639
      %v3672 = vmax.f32 %v2994, %v3640
      %v3673 = vmax.f32 %v2995, %v3641
      %v3674 = vmax.f32 %v2996, %v3642
      %v3675 = vmax.f32 %v2997, %v3643
      %v3676 = vmax.f32 %v2998, %v3644
      %v3677 = vrot.slane %v2967, 2
      %v3678 = vrot.slane %v2968, 2
      %v3679 = vsel %vm2433, %v3677, %v3678
      %v3680 = vrot.slane %v2969, 2
      %v3681 = vsel %vm2433, %v3678, %v3680
      %v3682 = vrot.slane %v2970, 2
      %v3683 = vsel %vm2433, %v3680, %v3682
      %v3684 = vrot.slane %v2971, 2
      %v3685 = vsel %vm2433, %v3682, %v3684
      %v3686 = vrot.slane %v2972, 2
      %v3687 = vsel %vm2433, %v3684, %v3686
      %v3688 = vrot.slane %v2973, 2
      %v3689 = vsel %vm2433, %v3686, %v3688
      %v3690 = vrot.slane %v2974, 2
      %v3691 = vsel %vm2433, %v3688, %v3690
      %v3692 = vrot.slane %v2975, 2
      %v3693 = vsel %vm2433, %v3690, %v3692
      %v3694 = vrot.slane %v2976, 2
      %v3695 = vsel %vm2433, %v3692, %v3694
      %v3696 = vrot.slane %v2977, 2
      %v3697 = vsel %vm2433, %v3694, %v3696
      %v3698 = vrot.slane %v2978, 2
      %v3699 = vsel %vm2433, %v3696, %v3698
      %v3700 = vrot.slane %v2979, 2
      %v3701 = vsel %vm2433, %v3698, %v3700
      %v3702 = vrot.slane %v2980, 2
      %v3703 = vsel %vm2433, %v3700, %v3702
      %v3704 = vrot.slane %v2981, 2
      %v3705 = vsel %vm2433, %v3702, %v3704
      %v3706 = vrot.slane %v2982, 2
      %v3707 = vsel %vm2433, %v3704, %v3706
      %v3708 = vrot.slane %v2983, 2
      %v3709 = vsel %vm2433, %v3706, %v3708
      %v3710 = vrot.slane %v2984, 2
      %v3711 = vsel %vm2433, %v3708, %v3710
      %v3712 = vrot.slane %v2985, 2
      %v3713 = vsel %vm2433, %v3710, %v3712
      %v3714 = vrot.slane %v2986, 2
      %v3715 = vsel %vm2433, %v3712, %v3714
      %v3716 = vrot.slane %v2987, 2
      %v3717 = vsel %vm2433, %v3714, %v3716
      %v3718 = vrot.slane %v2988, 2
      %v3719 = vsel %vm2433, %v3716, %v3718
      %v3720 = vrot.slane %v2989, 2
      %v3721 = vsel %vm2433, %v3718, %v3720
      %v3722 = vrot.slane %v2990, 2
      %v3723 = vsel %vm2433, %v3720, %v3722
      %v3724 = vrot.slane %v2991, 2
      %v3725 = vsel %vm2433, %v3722, %v3724
      %v3726 = vrot.slane %v2992, 2
      %v3727 = vsel %vm2433, %v3724, %v3726
      %v3728 = vrot.slane %v2993, 2
      %v3729 = vsel %vm2433, %v3726, %v3728
      %v3730 = vrot.slane %v2994, 2
      %v3731 = vsel %vm2433, %v3728, %v3730
      %v3732 = vrot.slane %v2995, 2
      %v3733 = vsel %vm2433, %v3730, %v3732
      %v3734 = vrot.slane %v2996, 2
      %v3735 = vsel %vm2433, %v3732, %v3734
      %v3736 = vrot.slane %v2997, 2
      %v3737 = vsel %vm2433, %v3734, %v3736
      %v3738 = vrot.slane %v2998, 2
      %v3739 = vsel %vm2433, %v3736, %v3738
      %v3772 = vsel %vm2433, %v3738, -inf
      %v3773 = vsel %vm2562, %v3679, -inf
      %v3774 = vsel %vm2563, %v3681, -inf
      %v3775 = vsel %vm2564, %v3683, -inf
      %v3776 = vsel %vm2565, %v3685, -inf
      %v3777 = vsel %vm2566, %v3687, -inf
      %v3778 = vsel %vm2567, %v3689, -inf
      %v3779 = vsel %vm2568, %v3691, -inf
      %v3780 = vsel %vm2569, %v3693, -inf
      %v3781 = vsel %vm2570, %v3695, -inf
      %v3782 = vsel %vm2571, %v3697, -inf
      %v3783 = vsel %vm2572, %v3699, -inf
      %v3784 = vsel %vm2573, %v3701, -inf
      %v3785 = vsel %vm2574, %v3703, -inf
      %v3786 = vsel %vm2575, %v3705, -inf
      %v3787 = vsel %vm2576, %v3707, -inf
      %v3788 = vsel %vm2577, %v3709, -inf
      %v3789 = vsel %vm2578, %v3711, -inf
      %v3790 = vsel %vm2579, %v3713, -inf
      %v3791 = vsel %vm2580, %v3715, -inf
      %v3792 = vsel %vm2581, %v3717, -inf
      %v3793 = vsel %vm2582, %v3719, -inf
      %v3794 = vsel %vm2583, %v3721, -inf
      %v3795 = vsel %vm2584, %v3723, -inf
      %v3796 = vsel %vm2585, %v3725, -inf
      %v3797 = vsel %vm2586, %v3727, -inf
      %v3798 = vsel %vm2587, %v3729, -inf
      %v3799 = vsel %vm2588, %v3731, -inf
      %v3800 = vsel %vm2589, %v3733, -inf
      %v3801 = vsel %vm2590, %v3735, -inf
      %v3802 = vsel %vm2591, %v3737, -inf
      %v3803 = vsel %vm2592, %v3739, -inf
      %v3804 = vsel %vm2593, %v3772, -inf
      %v3805 = vrot.slane %v2967, 6
      %v3806 = vrot.slane %v2968, 6
      %v3807 = vsel %vm2626, %v3805, %v3806
      %v3808 = vrot.slane %v2969, 6
      %v3809 = vsel %vm2626, %v3806, %v3808
      %v3810 = vrot.slane %v2970, 6
      %v3811 = vsel %vm2626, %v3808, %v3810
      %v3812 = vrot.slane %v2971, 6
      %v3813 = vsel %vm2626, %v3810, %v3812
      %v3814 = vrot.slane %v2972, 6
      %v3815 = vsel %vm2626, %v3812, %v3814
      %v3816 = vrot.slane %v2973, 6
      %v3817 = vsel %vm2626, %v3814, %v3816
      %v3818 = vrot.slane %v2974, 6
      %v3819 = vsel %vm2626, %v3816, %v3818
      %v3820 = vrot.slane %v2975, 6
      %v3821 = vsel %vm2626, %v3818, %v3820
      %v3822 = vrot.slane %v2976, 6
      %v3823 = vsel %vm2626, %v3820, %v3822
      %v3824 = vrot.slane %v2977, 6
      %v3825 = vsel %vm2626, %v3822, %v3824
      %v3826 = vrot.slane %v2978, 6
      %v3827 = vsel %vm2626, %v3824, %v3826
      %v3828 = vrot.slane %v2979, 6
      %v3829 = vsel %vm2626, %v3826, %v3828
      %v3830 = vrot.slane %v2980, 6
      %v3831 = vsel %vm2626, %v3828, %v3830
      %v3832 = vrot.slane %v2981, 6
      %v3833 = vsel %vm2626, %v3830, %v3832
      %v3834 = vrot.slane %v2982, 6
      %v3835 = vsel %vm2626, %v3832, %v3834
      %v3836 = vrot.slane %v2983, 6
      %v3837 = vsel %vm2626, %v3834, %v3836
      %v3838 = vrot.slane %v2984, 6
      %v3839 = vsel %vm2626, %v3836, %v3838
      %v3840 = vrot.slane %v2985, 6
      %v3841 = vsel %vm2626, %v3838, %v3840
      %v3842 = vrot.slane %v2986, 6
      %v3843 = vsel %vm2626, %v3840, %v3842
      %v3844 = vrot.slane %v2987, 6
      %v3845 = vsel %vm2626, %v3842, %v3844
      %v3846 = vrot.slane %v2988, 6
      %v3847 = vsel %vm2626, %v3844, %v3846
      %v3848 = vrot.slane %v2989, 6
      %v3849 = vsel %vm2626, %v3846, %v3848
      %v3850 = vrot.slane %v2990, 6
      %v3851 = vsel %vm2626, %v3848, %v3850
      %v3852 = vrot.slane %v2991, 6
      %v3853 = vsel %vm2626, %v3850, %v3852
      %v3854 = vrot.slane %v2992, 6
      %v3855 = vsel %vm2626, %v3852, %v3854
      %v3856 = vrot.slane %v2993, 6
      %v3857 = vsel %vm2626, %v3854, %v3856
      %v3858 = vrot.slane %v2994, 6
      %v3859 = vsel %vm2626, %v3856, %v3858
      %v3860 = vrot.slane %v2995, 6
      %v3861 = vsel %vm2626, %v3858, %v3860
      %v3862 = vrot.slane %v2996, 6
      %v3863 = vsel %vm2626, %v3860, %v3862
      %v3864 = vrot.slane %v2997, 6
      %v3865 = vsel %vm2626, %v3862, %v3864
      %v3866 = vrot.slane %v2998, 6
      %v3867 = vsel %vm2626, %v3864, %v3866
      %v3900 = vsel %vm2626, -inf, %v3805
      %v3901 = vsel %vm2755, %v3900, -inf
      %v3902 = vsel %vm2756, %v3807, -inf
      %v3903 = vsel %vm2757, %v3809, -inf
      %v3904 = vsel %vm2758, %v3811, -inf
      %v3905 = vsel %vm2759, %v3813, -inf
      %v3906 = vsel %vm2760, %v3815, -inf
      %v3907 = vsel %vm2761, %v3817, -inf
      %v3908 = vsel %vm2762, %v3819, -inf
      %v3909 = vsel %vm2763, %v3821, -inf
      %v3910 = vsel %vm2764, %v3823, -inf
      %v3911 = vsel %vm2765, %v3825, -inf
      %v3912 = vsel %vm2766, %v3827, -inf
      %v3913 = vsel %vm2767, %v3829, -inf
      %v3914 = vsel %vm2768, %v3831, -inf
      %v3915 = vsel %vm2769, %v3833, -inf
      %v3916 = vsel %vm2770, %v3835, -inf
      %v3917 = vsel %vm2771, %v3837, -inf
      %v3918 = vsel %vm2772, %v3839, -inf
      %v3919 = vsel %vm2773, %v3841, -inf
      %v3920 = vsel %vm2774, %v3843, -inf
      %v3921 = vsel %vm2775, %v3845, -inf
      %v3922 = vsel %vm2776, %v3847, -inf
      %v3923 = vsel %vm2777, %v3849, -inf
      %v3924 = vsel %vm2778, %v3851, -inf
      %v3925 = vsel %vm2779, %v3853, -inf
      %v3926 = vsel %vm2780, %v3855, -inf
      %v3927 = vsel %vm2781, %v3857, -inf
      %v3928 = vsel %vm2782, %v3859, -inf
      %v3929 = vsel %vm2783, %v3861, -inf
      %v3930 = vsel %vm2784, %v3863, -inf
      %v3931 = vsel %vm2785, %v3865, -inf
      %v3932 = vsel %vm2786, %v3867, -inf
      %v3933 = vmax.f32 %v3773, %v3901
      %v3934 = vmax.f32 %v3774, %v3902
      %v3935 = vmax.f32 %v3775, %v3903
      %v3936 = vmax.f32 %v3776, %v3904
      %v3937 = vmax.f32 %v3777, %v3905
      %v3938 = vmax.f32 %v3778, %v3906
      %v3939 = vmax.f32 %v3779, %v3907
      %v3940 = vmax.f32 %v3780, %v3908
      %v3941 = vmax.f32 %v3781, %v3909
      %v3942 = vmax.f32 %v3782, %v3910
      %v3943 = vmax.f32 %v3783, %v3911
      %v3944 = vmax.f32 %v3784, %v3912
      %v3945 = vmax.f32 %v3785, %v3913
      %v3946 = vmax.f32 %v3786, %v3914
      %v3947 = vmax.f32 %v3787, %v3915
      %v3948 = vmax.f32 %v3788, %v3916
      %v3949 = vmax.f32 %v3789, %v3917
      %v3950 = vmax.f32 %v3790, %v3918
      %v3951 = vmax.f32 %v3791, %v3919
      %v3952 = vmax.f32 %v3792, %v3920
      %v3953 = vmax.f32 %v3793, %v3921
      %v3954 = vmax.f32 %v3794, %v3922
      %v3955 = vmax.f32 %v3795, %v3923
      %v3956 = vmax.f32 %v3796, %v3924
      %v3957 = vmax.f32 %v3797, %v3925
      %v3958 = vmax.f32 %v3798, %v3926
      %v3959 = vmax.f32 %v3799, %v3927
      %v3960 = vmax.f32 %v3800, %v3928
      %v3961 = vmax.f32 %v3801, %v3929
      %v3962 = vmax.f32 %v3802, %v3930
      %v3963 = vmax.f32 %v3803, %v3931
      %v3964 = vmax.f32 %v3804, %v3932
      %v3965 = vmax.f32 %v3645, %v3933
      %v3966 = vmax.f32 %v3646, %v3934
      %v3967 = vmax.f32 %v3647, %v3935
      %v3968 = vmax.f32 %v3648, %v3936
      %v3969 = vmax.f32 %v3649, %v3937
      %v3970 = vmax.f32 %v3650, %v3938
      %v3971 = vmax.f32 %v3651, %v3939
      %v3972 = vmax.f32 %v3652, %v3940
      %v3973 = vmax.f32 %v3653, %v3941
      %v3974 = vmax.f32 %v3654, %v3942
      %v3975 = vmax.f32 %v3655, %v3943
      %v3976 = vmax.f32 %v3656, %v3944
      %v3977 = vmax.f32 %v3657, %v3945
      %v3978 = vmax.f32 %v3658, %v3946
      %v3979 = vmax.f32 %v3659, %v3947
      %v3980 = vmax.f32 %v3660, %v3948
      %v3981 = vmax.f32 %v3661, %v3949
      %v3982 = vmax.f32 %v3662, %v3950
      %v3983 = vmax.f32 %v3663, %v3951
      %v3984 = vmax.f32 %v3664, %v3952
      %v3985 = vmax.f32 %v3665, %v3953
      %v3986 = vmax.f32 %v3666, %v3954
      %v3987 = vmax.f32 %v3667, %v3955
      %v3988 = vmax.f32 %v3668, %v3956
      %v3989 = vmax.f32 %v3669, %v3957
      %v3990 = vmax.f32 %v3670, %v3958
      %v3991 = vmax.f32 %v3671, %v3959
      %v3992 = vmax.f32 %v3672, %v3960
      %v3993 = vmax.f32 %v3673, %v3961
      %v3994 = vmax.f32 %v3674, %v3962
      %v3995 = vmax.f32 %v3675, %v3963
      %v3996 = vmax.f32 %v3676, %v3964
      %v3997 = vmax.f32 %v3969, %v3965
      %v3998 = vmax.f32 %v3970, %v3966
      %v3999 = vmax.f32 %v3971, %v3967
      %v4000 = vmax.f32 %v3972, %v3968
      %v4001 = vmax.f32 %v3973, %v3969
      %v4002 = vmax.f32 %v3974, %v3970
      %v4003 = vmax.f32 %v3975, %v3971
      %v4004 = vmax.f32 %v3976, %v3972
      %v4005 = vmax.f32 %v3977, %v3973
      %v4006 = vmax.f32 %v3978, %v3974
      %v4007 = vmax.f32 %v3979, %v3975
      %v4008 = vmax.f32 %v3980, %v3976
      %v4009 = vmax.f32 %v3981, %v3977
      %v4010 = vmax.f32 %v3982, %v3978
      %v4011 = vmax.f32 %v3983, %v3979
      %v4012 = vmax.f32 %v3984, %v3980
      %v4013 = vmax.f32 %v3985, %v3981
      %v4014 = vmax.f32 %v3986, %v3982
      %v4015 = vmax.f32 %v3987, %v3983
      %v4016 = vmax.f32 %v3988, %v3984
      %v4017 = vmax.f32 %v3989, %v3985
      %v4018 = vmax.f32 %v3990, %v3986
      %v4019 = vmax.f32 %v3991, %v3987
      %v4020 = vmax.f32 %v3992, %v3988
      %v4021 = vmax.f32 %v3993, %v3989
      %v4022 = vmax.f32 %v3994, %v3990
      %v4023 = vmax.f32 %v3995, %v3991
      %v4024 = vmax.f32 %v3996, %v3992
      %v4025 = vmax.f32 %v3965, %v3967
      %v4026 = vmax.f32 %v3966, %v3968
      %v4027 = vmax.f32 %v3967, %v3997
      %v4028 = vmax.f32 %v3968, %v3998
      %v4029 = vmax.f32 %v3969, %v3999
      %v4030 = vmax.f32 %v3970, %v4000
      %v4031 = vmax.f32 %v3971, %v4001
      %v4032 = vmax.f32 %v3972, %v4002
      %v4033 = vmax.f32 %v3973, %v4003
      %v4034 = vmax.f32 %v3974, %v4004
      %v4035 = vmax.f32 %v3975, %v4005
      %v4036 = vmax.f32 %v3976, %v4006
      %v4037 = vmax.f32 %v3977, %v4007
      %v4038 = vmax.f32 %v3978, %v4008
      %v4039 = vmax.f32 %v3979, %v4009
      %v4040 = vmax.f32 %v3980, %v4010
      %v4041 = vmax.f32 %v3981, %v4011
      %v4042 = vmax.f32 %v3982, %v4012
      %v4043 = vmax.f32 %v3983, %v4013
      %v4044 = vmax.f32 %v3984, %v4014
      %v4045 = vmax.f32 %v3985, %v4015
      %v4046 = vmax.f32 %v3986, %v4016
      %v4047 = vmax.f32 %v3987, %v4017
      %v4048 = vmax.f32 %v3988, %v4018
      %v4049 = vmax.f32 %v3989, %v4019
      %v4050 = vmax.f32 %v3990, %v4020
      %v4051 = vmax.f32 %v3991, %v4021
      %v4052 = vmax.f32 %v3992, %v4022
      %v4053 = vmax.f32 %v3993, %v4023
      %v4054 = vmax.f32 %v3994, %v4024
      %v4055 = vmax.f32 %v3995, %v3993
      %v4056 = vmax.f32 %v3996, %v3994
      %v4057 = vmax.f32 %v3973, %v3965
      %v4058 = vmax.f32 %v3974, %v3966
      %v4059 = vmax.f32 %v3975, %v3967
      %v4060 = vmax.f32 %v3976, %v3968
      %v4061 = vmax.f32 %v3977, %v3969
      %v4062 = vmax.f32 %v3978, %v3970
      %v4063 = vmax.f32 %v3979, %v3971
      %v4064 = vmax.f32 %v3980, %v3972
      %v4065 = vmax.f32 %v3981, %v3973
      %v4066 = vmax.f32 %v3982, %v3974
      %v4067 = vmax.f32 %v3983, %v3975
      %v4068 = vmax.f32 %v3984, %v3976
      %v4069 = vmax.f32 %v3985, %v3977
      %v4070 = vmax.f32 %v3986, %v3978
      %v4071 = vmax.f32 %v3987, %v3979
      %v4072 = vmax.f32 %v3988, %v3980
      %v4073 = vmax.f32 %v3989, %v3981
      %v4074 = vmax.f32 %v3990, %v3982
      %v4075 = vmax.f32 %v3991, %v3983
      %v4076 = vmax.f32 %v3992, %v3984
      %v4077 = vmax.f32 %v3993, %v3985
      %v4078 = vmax.f32 %v3994, %v3986
      %v4079 = vmax.f32 %v3995, %v3987
      %v4080 = vmax.f32 %v3996, %v3988
      %v4081 = vmax.f32 %v4025, %v3969
      %v4082 = vmax.f32 %v4026, %v3970
      %v4083 = vmax.f32 %v4027, %v3971
      %v4084 = vmax.f32 %v4028, %v3972
      %v4085 = vmax.f32 %v4029, %v4057
      %v4086 = vmax.f32 %v4030, %v4058
      %v4087 = vmax.f32 %v4031, %v4059
      %v4088 = vmax.f32 %v4032, %v4060
      %v4089 = vmax.f32 %v4033, %v4061
      %v4090 = vmax.f32 %v4034, %v4062
      %v4091 = vmax.f32 %v4035, %v4063
      %v4092 = vmax.f32 %v4036, %v4064
      %v4093 = vmax.f32 %v4037, %v4065
      %v4094 = vmax.f32 %v4038, %v4066
      %v4095 = vmax.f32 %v4039, %v4067
      %v4096 = vmax.f32 %v4040, %v4068
      %v4097 = vmax.f32 %v4041, %v4069
      %v4098 = vmax.f32 %v4042, %v4070
      %v4099 = vmax.f32 %v4043, %v4071
      %v4100 = vmax.f32 %v4044, %v4072
      %v4101 = vmax.f32 %v4045, %v4073
      %v4102 = vmax.f32 %v4046, %v4074
      %v4103 = vmax.f32 %v4047, %v4075
      %v4104 = vmax.f32 %v4048, %v4076
      %v4105 = vmax.f32 %v4049, %v4077
      %v4106 = vmax.f32 %v4050, %v4078
      %v4107 = vmax.f32 %v4051, %v4079
      %v4108 = vmax.f32 %v4052, %v4080
      %v4109 = vmax.f32 %v4053, %v3989
      %v4110 = vmax.f32 %v4054, %v3990
      %v4111 = vmax.f32 %v4055, %v3991
      %v4112 = vmax.f32 %v4056, %v3992
      %s4113 = scalar_lea.vmem %s347, 8
      %v4114 = vld [vmem:[%s4113] sm:$0xf]
      %v4116 = vsel %vm1625, %v4081, 0
      %v4119 = vsel %vm1625, %v4082, 0
      %v4122 = vsel %vm1625, %v4083, 0
      %v4125 = vsel %vm1625, %v4084, 0
      %v4128 = vsel %vm1625, %v4085, 0
      %v4131 = vsel %vm1625, %v4086, 0
      %v4134 = vsel %vm1625, %v4087, 0
      %v4137 = vsel %vm1625, %v4088, 0
      %v4140 = vsel %vm1625, %v4089, 0
      %v4143 = vsel %vm1625, %v4090, 0
      %v4146 = vsel %vm1625, %v4091, 0
      %v4149 = vsel %vm1625, %v4092, 0
      %v4152 = vsel %vm1625, %v4093, 0
      %v4155 = vsel %vm1625, %v4094, 0
      %v4158 = vsel %vm1625, %v4095, 0
      %v4161 = vsel %vm1625, %v4096, 0
      %v4164 = vsel %vm1625, %v4097, 0
      %v4167 = vsel %vm1625, %v4098, 0
      %v4170 = vsel %vm1625, %v4099, 0
      %v4173 = vsel %vm1625, %v4100, 0
      %v4176 = vsel %vm1625, %v4101, 0
      %v4179 = vsel %vm1625, %v4102, 0
      %v4182 = vsel %vm1625, %v4103, 0
      %v4185 = vsel %vm1625, %v4104, 0
      %v4188 = vsel %vm1625, %v4105, 0
      %v4191 = vsel %vm1625, %v4106, 0
      %v4194 = vsel %vm1625, %v4107, 0
      %v4197 = vsel %vm1625, %v4108, 0
      %v4200 = vsel %vm1625, %v4109, 0
      %v4203 = vsel %vm1625, %v4110, 0
      %v4206 = vsel %vm1625, %v4111, 0
      %v4209 = vsel %vm1625, %v4112, 0
      %v4212 = vsel %vm1722, %v4114, 0
      %4214 = vmatprep.subr.mxu0 0.0
      %4215 = vmatpush1.msra.mxu0 0.0
      %4216 = vmatprep.subr.mxu0 0.0
      %4217 = vmatpush1.msra.mxu0 0.0
      %4218 = vmatprep.subr.mxu0 0.0
      %4219 = vmatpush1.msra.mxu0 0.0
      %4220 = vmatprep.subr.mxu0 0.0
      %4221 = vmatpush1.msra.mxu0 0.0
      %4222 = vmatprep.subr.mxu0 0.0
      %4223 = vmatpush1.msra.mxu0 0.0
      %4224 = vmatprep.subr.mxu0 0.0
      %4225 = vmatpush1.msra.mxu0 0.0
      %4226 = vmatprep.subr.mxu0 0.0
      %4227 = vmatpush1.msra.mxu0 0.0
      %4228 = vmatprep.subr.mxu0 0.0
      %4229 = vmatpush1.msra.mxu0 0.0
      %4230 = vmatprep.subr.mxu0 0.0
      %4231 = vmatpush1.msra.mxu0 0.0
      %4232 = vmatprep.subr.mxu0 0.0
      %4233 = vmatpush1.msra.mxu0 0.0
      %4234 = vmatprep.subr.mxu0 0.0
      %4235 = vmatpush1.msra.mxu0 0.0
      %4236 = vmatprep.subr.mxu0 0.0
      %4237 = vmatpush1.msra.mxu0 0.0
      %4238 = vmatprep.subr.mxu0 0.0
      %4239 = vmatpush1.msra.mxu0 0.0
      %4240 = vmatprep.subr.mxu0 0.0
      %4241 = vmatpush1.msra.mxu0 0.0
      %4242 = vmatprep.subr.mxu0 0.0
      %4243 = vmatpush1.msra.mxu0 0.0
      %4244 = vmatprep.subr.mxu0 0.0
      %4245 = vmatpush1.msra.mxu0 %v4212
      %4246 = vmatprep.subr.mxu0 0.0
      %4247 = vmatpush2.msra.mxu0 0.0
      %4248 = vmatprep.subr.mxu0 0.0
      %4249 = vmatpush2.msra.mxu0 0.0
      %4250 = vmatprep.subr.mxu0 0.0
      %4251 = vmatpush2.msra.mxu0 0.0
      %4252 = vmatprep.subr.mxu0 0.0
      %4253 = vmatpush2.msra.mxu0 0.0
      %4254 = vmatprep.subr.mxu0 0.0
      %4255 = vmatpush2.msra.mxu0 0.0
      %4256 = vmatprep.subr.mxu0 0.0
      %4257 = vmatpush2.msra.mxu0 0.0
      %4258 = vmatprep.subr.mxu0 0.0
      %4259 = vmatpush2.msra.mxu0 0.0
      %4260 = vmatprep.subr.mxu0 0.0
      %4261 = vmatpush2.msra.mxu0 0.0
      %4262 = vmatprep.subr.mxu0 0.0
      %4263 = vmatpush2.msra.mxu0 0.0
      %4264 = vmatprep.subr.mxu0 0.0
      %4265 = vmatpush2.msra.mxu0 0.0
      %4266 = vmatprep.subr.mxu0 0.0
      %4267 = vmatpush2.msra.mxu0 0.0
      %4268 = vmatprep.subr.mxu0 0.0
      %4269 = vmatpush2.msra.mxu0 0.0
      %4270 = vmatprep.subr.mxu0 0.0
      %4271 = vmatpush2.msra.mxu0 0.0
      %4272 = vmatprep.subr.mxu0 0.0
      %4273 = vmatpush2.msra.mxu0 0.0
      %4274 = vmatprep.subr.mxu0 0.0
      %4275 = vmatpush2.msra.mxu0 0.0
      %4276 = vmatprep.subr.mxu0 0.0
      %4277 = vmatpush2.msra.mxu0 0.0
      %4278 = vmatprep.mubr.f32.mxu0 0.0
      %4279 = vmatmul.mubr.f32.gmra.mxu0 %v4116
      %v4280 = vpop.f32.mrf.mxu0
      %v4281 = vadd.f32 0.0, %v4280
      %v4282 = vpop.f32.mrf.mxu0
      %4283 = vmatprep.mubr.f32.mxu0 0.0
      %4284 = vmatmul.mubr.f32.gmra.mxu0 %v4119
      %v4285 = vpop.f32.mrf.mxu0
      %v4286 = vadd.f32 0.0, %v4285
      %v4287 = vpop.f32.mrf.mxu0
      %4288 = vmatprep.mubr.f32.mxu0 0.0
      %4289 = vmatmul.mubr.f32.gmra.mxu0 %v4122
      %v4290 = vpop.f32.mrf.mxu0
      %v4291 = vadd.f32 0.0, %v4290
      %v4292 = vpop.f32.mrf.mxu0
      %4293 = vmatprep.mubr.f32.mxu0 0.0
      %4294 = vmatmul.mubr.f32.gmra.mxu0 %v4125
      %v4295 = vpop.f32.mrf.mxu0
      %v4296 = vadd.f32 0.0, %v4295
      %v4297 = vpop.f32.mrf.mxu0
      %4298 = vmatprep.mubr.f32.mxu0 0.0
      %4299 = vmatmul.mubr.f32.gmra.mxu0 %v4128
      %v4300 = vpop.f32.mrf.mxu0
      %v4301 = vadd.f32 0.0, %v4300
      %v4302 = vpop.f32.mrf.mxu0
      %4303 = vmatprep.mubr.f32.mxu0 0.0
      %4304 = vmatmul.mubr.f32.gmra.mxu0 %v4131
      %v4305 = vpop.f32.mrf.mxu0
      %v4306 = vadd.f32 0.0, %v4305
      %v4307 = vpop.f32.mrf.mxu0
      %4308 = vmatprep.mubr.f32.mxu0 0.0
      %4309 = vmatmul.mubr.f32.gmra.mxu0 %v4134
      %v4310 = vpop.f32.mrf.mxu0
      %v4311 = vadd.f32 0.0, %v4310
      %v4312 = vpop.f32.mrf.mxu0
      %4313 = vmatprep.mubr.f32.mxu0 0.0
      %4314 = vmatmul.mubr.f32.gmra.mxu0 %v4137
      %v4315 = vpop.f32.mrf.mxu0
      %v4316 = vadd.f32 0.0, %v4315
      %v4317 = vpop.f32.mrf.mxu0
      %4318 = vmatprep.mubr.f32.mxu0 0.0
      %4319 = vmatmul.mubr.f32.gmra.mxu0 %v4140
      %v4320 = vpop.f32.mrf.mxu0
      %v4321 = vadd.f32 0.0, %v4320
      %v4322 = vpop.f32.mrf.mxu0
      %4323 = vmatprep.mubr.f32.mxu0 0.0
      %4324 = vmatmul.mubr.f32.gmra.mxu0 %v4143
      %v4325 = vpop.f32.mrf.mxu0
      %v4326 = vadd.f32 0.0, %v4325
      %v4327 = vpop.f32.mrf.mxu0
      %4328 = vmatprep.mubr.f32.mxu0 0.0
      %4329 = vmatmul.mubr.f32.gmra.mxu0 %v4146
      %v4330 = vpop.f32.mrf.mxu0
      %v4331 = vadd.f32 0.0, %v4330
      %v4332 = vpop.f32.mrf.mxu0
      %4333 = vmatprep.mubr.f32.mxu0 0.0
      %4334 = vmatmul.mubr.f32.gmra.mxu0 %v4149
      %v4335 = vpop.f32.mrf.mxu0
      %v4336 = vadd.f32 0.0, %v4335
      %v4337 = vpop.f32.mrf.mxu0
      %4338 = vmatprep.mubr.f32.mxu0 0.0
      %4339 = vmatmul.mubr.f32.gmra.mxu0 %v4152
      %v4340 = vpop.f32.mrf.mxu0
      %v4341 = vadd.f32 0.0, %v4340
      %v4342 = vpop.f32.mrf.mxu0
      %4343 = vmatprep.mubr.f32.mxu0 0.0
      %4344 = vmatmul.mubr.f32.gmra.mxu0 %v4155
      %v4345 = vpop.f32.mrf.mxu0
      %v4346 = vadd.f32 0.0, %v4345
      %v4347 = vpop.f32.mrf.mxu0
      %4348 = vmatprep.mubr.f32.mxu0 0.0
      %4349 = vmatmul.mubr.f32.gmra.mxu0 %v4158
      %v4350 = vpop.f32.mrf.mxu0
      %v4351 = vadd.f32 0.0, %v4350
      %v4352 = vpop.f32.mrf.mxu0
      %4353 = vmatprep.mubr.f32.mxu0 0.0
      %4354 = vmatmul.mubr.f32.gmra.mxu0 %v4161
      %v4355 = vpop.f32.mrf.mxu0
      %v4356 = vadd.f32 0.0, %v4355
      %v4357 = vpop.f32.mrf.mxu0
      %4358 = vmatprep.mubr.f32.mxu0 0.0
      %4359 = vmatmul.mubr.f32.gmra.mxu0 %v4164
      %v4360 = vpop.f32.mrf.mxu0
      %v4361 = vadd.f32 0.0, %v4360
      %v4362 = vpop.f32.mrf.mxu0
      %4363 = vmatprep.mubr.f32.mxu0 0.0
      %4364 = vmatmul.mubr.f32.gmra.mxu0 %v4167
      %v4365 = vpop.f32.mrf.mxu0
      %v4366 = vadd.f32 0.0, %v4365
      %v4367 = vpop.f32.mrf.mxu0
      %4368 = vmatprep.mubr.f32.mxu0 0.0
      %4369 = vmatmul.mubr.f32.gmra.mxu0 %v4170
      %v4370 = vpop.f32.mrf.mxu0
      %v4371 = vadd.f32 0.0, %v4370
      %v4372 = vpop.f32.mrf.mxu0
      %4373 = vmatprep.mubr.f32.mxu0 0.0
      %4374 = vmatmul.mubr.f32.gmra.mxu0 %v4173
      %v4375 = vpop.f32.mrf.mxu0
      %v4376 = vadd.f32 0.0, %v4375
      %v4377 = vpop.f32.mrf.mxu0
      %4378 = vmatprep.mubr.f32.mxu0 0.0
      %4379 = vmatmul.mubr.f32.gmra.mxu0 %v4176
      %v4380 = vpop.f32.mrf.mxu0
      %v4381 = vadd.f32 0.0, %v4380
      %v4382 = vpop.f32.mrf.mxu0
      %4383 = vmatprep.mubr.f32.mxu0 0.0
      %4384 = vmatmul.mubr.f32.gmra.mxu0 %v4179
      %v4385 = vpop.f32.mrf.mxu0
      %v4386 = vadd.f32 0.0, %v4385
      %v4387 = vpop.f32.mrf.mxu0
      %4388 = vmatprep.mubr.f32.mxu0 0.0
      %4389 = vmatmul.mubr.f32.gmra.mxu0 %v4182
      %v4390 = vpop.f32.mrf.mxu0
      %v4391 = vadd.f32 0.0, %v4390
      %v4392 = vpop.f32.mrf.mxu0
      %4393 = vmatprep.mubr.f32.mxu0 0.0
      %4394 = vmatmul.mubr.f32.gmra.mxu0 %v4185
      %v4395 = vpop.f32.mrf.mxu0
      %v4396 = vadd.f32 0.0, %v4395
      %v4397 = vpop.f32.mrf.mxu0
      %4398 = vmatprep.mubr.f32.mxu0 0.0
      %4399 = vmatmul.mubr.f32.gmra.mxu0 %v4188
      %v4400 = vpop.f32.mrf.mxu0
      %v4401 = vadd.f32 0.0, %v4400
      %v4402 = vpop.f32.mrf.mxu0
      %4403 = vmatprep.mubr.f32.mxu0 0.0
      %4404 = vmatmul.mubr.f32.gmra.mxu0 %v4191
      %v4405 = vpop.f32.mrf.mxu0
      %v4406 = vadd.f32 0.0, %v4405
      %v4407 = vpop.f32.mrf.mxu0
      %4408 = vmatprep.mubr.f32.mxu0 0.0
      %4409 = vmatmul.mubr.f32.gmra.mxu0 %v4194
      %v4410 = vpop.f32.mrf.mxu0
      %v4411 = vadd.f32 0.0, %v4410
      %v4412 = vpop.f32.mrf.mxu0
      %4413 = vmatprep.mubr.f32.mxu0 0.0
      %4414 = vmatmul.mubr.f32.gmra.mxu0 %v4197
      %v4415 = vpop.f32.mrf.mxu0
      %v4416 = vadd.f32 0.0, %v4415
      %v4417 = vpop.f32.mrf.mxu0
      %4418 = vmatprep.mubr.f32.mxu0 0.0
      %4419 = vmatmul.mubr.f32.gmra.mxu0 %v4200
      %v4420 = vpop.f32.mrf.mxu0
      %v4421 = vadd.f32 0.0, %v4420
      %v4422 = vpop.f32.mrf.mxu0
      %4423 = vmatprep.mubr.f32.mxu0 0.0
      %4424 = vmatmul.mubr.f32.gmra.mxu0 %v4203
      %v4425 = vpop.f32.mrf.mxu0
      %v4426 = vadd.f32 0.0, %v4425
      %v4427 = vpop.f32.mrf.mxu0
      %4428 = vmatprep.mubr.f32.mxu0 0.0
      %4429 = vmatmul.mubr.f32.gmra.mxu0 %v4206
      %v4430 = vpop.f32.mrf.mxu0
      %v4431 = vadd.f32 0.0, %v4430
      %v4432 = vpop.f32.mrf.mxu0
      %4433 = vmatprep.mubr.f32.mxu0 0.0
      %4434 = vmatmul.mubr.f32.gmra.mxu0 %v4209
      %v4435 = vpop.f32.mrf.mxu0
      %v4436 = vadd.f32 0.0, %v4435
      %v4437 = vpop.f32.mrf.mxu0
      %4438 = vdwg.mxu0
      %v4439 = vadd.f32 %v3325, %v4281
      %v4440 = vadd.f32 %v3326, %v4286
      %v4441 = vadd.f32 %v3327, %v4291
      %v4442 = vadd.f32 %v3328, %v4296
      %v4443 = vadd.f32 %v3329, %v4301
      %v4444 = vadd.f32 %v3330, %v4306
      %v4445 = vadd.f32 %v3331, %v4311
      %v4446 = vadd.f32 %v3332, %v4316
      %v4447 = vadd.f32 %v3333, %v4321
      %v4448 = vadd.f32 %v3334, %v4326
      %v4449 = vadd.f32 %v3335, %v4331
      %v4450 = vadd.f32 %v3336, %v4336
      %v4451 = vadd.f32 %v3337, %v4341
      %v4452 = vadd.f32 %v3338, %v4346
      %v4453 = vadd.f32 %v3339, %v4351
      %v4454 = vadd.f32 %v3340, %v4356
      %v4455 = vadd.f32 %v3341, %v4361
      %v4456 = vadd.f32 %v3342, %v4366
      %v4457 = vadd.f32 %v3343, %v4371
      %v4458 = vadd.f32 %v3344, %v4376
      %v4459 = vadd.f32 %v3345, %v4381
      %v4460 = vadd.f32 %v3346, %v4386
      %v4461 = vadd.f32 %v3347, %v4391
      %v4462 = vadd.f32 %v3348, %v4396
      %v4463 = vadd.f32 %v3349, %v4401
      %v4464 = vadd.f32 %v3350, %v4406
      %v4465 = vadd.f32 %v3351, %v4411
      %v4466 = vadd.f32 %v3352, %v4416
      %v4467 = vadd.f32 %v3353, %v4421
      %v4468 = vadd.f32 %v3354, %v4426
      %v4469 = vadd.f32 %v3355, %v4431
      %v4470 = vadd.f32 %v3356, %v4436
      %v4471 = vrot.slane %v4081, 1
      %v4472 = vrot.slane %v4082, 1
      %v4473 = vsel %vm1983, %v4471, %v4472
      %v4474 = vrot.slane %v4083, 1
      %v4475 = vsel %vm1983, %v4472, %v4474
      %v4476 = vrot.slane %v4084, 1
      %v4477 = vsel %vm1983, %v4474, %v4476
      %v4478 = vrot.slane %v4085, 1
      %v4479 = vsel %vm1983, %v4476, %v4478
      %v4480 = vrot.slane %v4086, 1
      %v4481 = vsel %vm1983, %v4478, %v4480
      %v4482 = vrot.slane %v4087, 1
      %v4483 = vsel %vm1983, %v4480, %v4482
      %v4484 = vrot.slane %v4088, 1
      %v4485 = vsel %vm1983, %v4482, %v4484
      %v4486 = vrot.slane %v4089, 1
      %v4487 = vsel %vm1983, %v4484, %v4486
      %v4488 = vrot.slane %v4090, 1
      %v4489 = vsel %vm1983, %v4486, %v4488
      %v4490 = vrot.slane %v4091, 1
      %v4491 = vsel %vm1983, %v4488, %v4490
      %v4492 = vrot.slane %v4092, 1
      %v4493 = vsel %vm1983, %v4490, %v4492
      %v4494 = vrot.slane %v4093, 1
      %v4495 = vsel %vm1983, %v4492, %v4494
      %v4496 = vrot.slane %v4094, 1
      %v4497 = vsel %vm1983, %v4494, %v4496
      %v4498 = vrot.slane %v4095, 1
      %v4499 = vsel %vm1983, %v4496, %v4498
      %v4500 = vrot.slane %v4096, 1
      %v4501 = vsel %vm1983, %v4498, %v4500
      %v4502 = vrot.slane %v4097, 1
      %v4503 = vsel %vm1983, %v4500, %v4502
      %v4504 = vrot.slane %v4098, 1
      %v4505 = vsel %vm1983, %v4502, %v4504
      %v4506 = vrot.slane %v4099, 1
      %v4507 = vsel %vm1983, %v4504, %v4506
      %v4508 = vrot.slane %v4100, 1
      %v4509 = vsel %vm1983, %v4506, %v4508
      %v4510 = vrot.slane %v4101, 1
      %v4511 = vsel %vm1983, %v4508, %v4510
      %v4512 = vrot.slane %v4102, 1
      %v4513 = vsel %vm1983, %v4510, %v4512
      %v4514 = vrot.slane %v4103, 1
      %v4515 = vsel %vm1983, %v4512, %v4514
      %v4516 = vrot.slane %v4104, 1
      %v4517 = vsel %vm1983, %v4514, %v4516
      %v4518 = vrot.slane %v4105, 1
      %v4519 = vsel %vm1983, %v4516, %v4518
      %v4520 = vrot.slane %v4106, 1
      %v4521 = vsel %vm1983, %v4518, %v4520
      %v4522 = vrot.slane %v4107, 1
      %v4523 = vsel %vm1983, %v4520, %v4522
      %v4524 = vrot.slane %v4108, 1
      %v4525 = vsel %vm1983, %v4522, %v4524
      %v4526 = vrot.slane %v4109, 1
      %v4527 = vsel %vm1983, %v4524, %v4526
      %v4528 = vrot.slane %v4110, 1
      %v4529 = vsel %vm1983, %v4526, %v4528
      %v4530 = vrot.slane %v4111, 1
      %v4531 = vsel %vm1983, %v4528, %v4530
      %v4532 = vrot.slane %v4112, 1
      %v4533 = vsel %vm1983, %v4530, %v4532
      %v4566 = vsel %vm1983, %v4532, -inf
      %v4567 = vsel %vm2112, %v4473, -inf
      %v4568 = vsel %vm2113, %v4475, -inf
      %v4569 = vsel %vm2114, %v4477, -inf
      %v4570 = vsel %vm2115, %v4479, -inf
      %v4571 = vsel %vm2116, %v4481, -inf
      %v4572 = vsel %vm2117, %v4483, -inf
      %v4573 = vsel %vm2118, %v4485, -inf
      %v4574 = vsel %vm2119, %v4487, -inf
      %v4575 = vsel %vm2120, %v4489, -inf
      %v4576 = vsel %vm2121, %v4491, -inf
      %v4577 = vsel %vm2122, %v4493, -inf
      %v4578 = vsel %vm2123, %v4495, -inf
      %v4579 = vsel %vm2124, %v4497, -inf
      %v4580 = vsel %vm2125, %v4499, -inf
      %v4581 = vsel %vm2126, %v4501, -inf
      %v4582 = vsel %vm2127, %v4503, -inf
      %v4583 = vsel %vm2128, %v4505, -inf
      %v4584 = vsel %vm2129, %v4507, -inf
      %v4585 = vsel %vm2130, %v4509, -inf
      %v4586 = vsel %vm2131, %v4511, -inf
      %v4587 = vsel %vm2132, %v4513, -inf
      %v4588 = vsel %vm2133, %v4515, -inf
      %v4589 = vsel %vm2134, %v4517, -inf
      %v4590 = vsel %vm2135, %v4519, -inf
      %v4591 = vsel %vm2136, %v4521, -inf
      %v4592 = vsel %vm2137, %v4523, -inf
      %v4593 = vsel %vm2138, %v4525, -inf
      %v4594 = vsel %vm2139, %v4527, -inf
      %v4595 = vsel %vm2140, %v4529, -inf
      %v4596 = vsel %vm2141, %v4531, -inf
      %v4597 = vsel %vm2142, %v4533, -inf
      %v4598 = vsel %vm2143, %v4566, -inf
      %v4599 = vrot.slane %v4081, 7
      %v4600 = vrot.slane %v4082, 7
      %v4601 = vsel %vm2176, %v4599, %v4600
      %v4602 = vrot.slane %v4083, 7
      %v4603 = vsel %vm2176, %v4600, %v4602
      %v4604 = vrot.slane %v4084, 7
      %v4605 = vsel %vm2176, %v4602, %v4604
      %v4606 = vrot.slane %v4085, 7
      %v4607 = vsel %vm2176, %v4604, %v4606
      %v4608 = vrot.slane %v4086, 7
      %v4609 = vsel %vm2176, %v4606, %v4608
      %v4610 = vrot.slane %v4087, 7
      %v4611 = vsel %vm2176, %v4608, %v4610
      %v4612 = vrot.slane %v4088, 7
      %v4613 = vsel %vm2176, %v4610, %v4612
      %v4614 = vrot.slane %v4089, 7
      %v4615 = vsel %vm2176, %v4612, %v4614
      %v4616 = vrot.slane %v4090, 7
      %v4617 = vsel %vm2176, %v4614, %v4616
      %v4618 = vrot.slane %v4091, 7
      %v4619 = vsel %vm2176, %v4616, %v4618
      %v4620 = vrot.slane %v4092, 7
      %v4621 = vsel %vm2176, %v4618, %v4620
      %v4622 = vrot.slane %v4093, 7
      %v4623 = vsel %vm2176, %v4620, %v4622
      %v4624 = vrot.slane %v4094, 7
      %v4625 = vsel %vm2176, %v4622, %v4624
      %v4626 = vrot.slane %v4095, 7
      %v4627 = vsel %vm2176, %v4624, %v4626
      %v4628 = vrot.slane %v4096, 7
      %v4629 = vsel %vm2176, %v4626, %v4628
      %v4630 = vrot.slane %v4097, 7
      %v4631 = vsel %vm2176, %v4628, %v4630
      %v4632 = vrot.slane %v4098, 7
      %v4633 = vsel %vm2176, %v4630, %v4632
      %v4634 = vrot.slane %v4099, 7
      %v4635 = vsel %vm2176, %v4632, %v4634
      %v4636 = vrot.slane %v4100, 7
      %v4637 = vsel %vm2176, %v4634, %v4636
      %v4638 = vrot.slane %v4101, 7
      %v4639 = vsel %vm2176, %v4636, %v4638
      %v4640 = vrot.slane %v4102, 7
      %v4641 = vsel %vm2176, %v4638, %v4640
      %v4642 = vrot.slane %v4103, 7
      %v4643 = vsel %vm2176, %v4640, %v4642
      %v4644 = vrot.slane %v4104, 7
      %v4645 = vsel %vm2176, %v4642, %v4644
      %v4646 = vrot.slane %v4105, 7
      %v4647 = vsel %vm2176, %v4644, %v4646
      %v4648 = vrot.slane %v4106, 7
      %v4649 = vsel %vm2176, %v4646, %v4648
      %v4650 = vrot.slane %v4107, 7
      %v4651 = vsel %vm2176, %v4648, %v4650
      %v4652 = vrot.slane %v4108, 7
      %v4653 = vsel %vm2176, %v4650, %v4652
      %v4654 = vrot.slane %v4109, 7
      %v4655 = vsel %vm2176, %v4652, %v4654
      %v4656 = vrot.slane %v4110, 7
      %v4657 = vsel %vm2176, %v4654, %v4656
      %v4658 = vrot.slane %v4111, 7
      %v4659 = vsel %vm2176, %v4656, %v4658
      %v4660 = vrot.slane %v4112, 7
      %v4661 = vsel %vm2176, %v4658, %v4660
      %v4694 = vsel %vm2176, -inf, %v4599
      %v4695 = vsel %vm2305, %v4694, -inf
      %v4696 = vsel %vm2306, %v4601, -inf
      %v4697 = vsel %vm2307, %v4603, -inf
      %v4698 = vsel %vm2308, %v4605, -inf
      %v4699 = vsel %vm2309, %v4607, -inf
      %v4700 = vsel %vm2310, %v4609, -inf
      %v4701 = vsel %vm2311, %v4611, -inf
      %v4702 = vsel %vm2312, %v4613, -inf
      %v4703 = vsel %vm2313, %v4615, -inf
      %v4704 = vsel %vm2314, %v4617, -inf
      %v4705 = vsel %vm2315, %v4619, -inf
      %v4706 = vsel %vm2316, %v4621, -inf
      %v4707 = vsel %vm2317, %v4623, -inf
      %v4708 = vsel %vm2318, %v4625, -inf
      %v4709 = vsel %vm2319, %v4627, -inf
      %v4710 = vsel %vm2320, %v4629, -inf
      %v4711 = vsel %vm2321, %v4631, -inf
      %v4712 = vsel %vm2322, %v4633, -inf
      %v4713 = vsel %vm2323, %v4635, -inf
      %v4714 = vsel %vm2324, %v4637, -inf
      %v4715 = vsel %vm2325, %v4639, -inf
      %v4716 = vsel %vm2326, %v4641, -inf
      %v4717 = vsel %vm2327, %v4643, -inf
      %v4718 = vsel %vm2328, %v4645, -inf
      %v4719 = vsel %vm2329, %v4647, -inf
      %v4720 = vsel %vm2330, %v4649, -inf
      %v4721 = vsel %vm2331, %v4651, -inf
      %v4722 = vsel %vm2332, %v4653, -inf
      %v4723 = vsel %vm2333, %v4655, -inf
      %v4724 = vsel %vm2334, %v4657, -inf
      %v4725 = vsel %vm2335, %v4659, -inf
      %v4726 = vsel %vm2336, %v4661, -inf
      %v4727 = vmax.f32 %v4567, %v4695
      %v4728 = vmax.f32 %v4568, %v4696
      %v4729 = vmax.f32 %v4569, %v4697
      %v4730 = vmax.f32 %v4570, %v4698
      %v4731 = vmax.f32 %v4571, %v4699
      %v4732 = vmax.f32 %v4572, %v4700
      %v4733 = vmax.f32 %v4573, %v4701
      %v4734 = vmax.f32 %v4574, %v4702
      %v4735 = vmax.f32 %v4575, %v4703
      %v4736 = vmax.f32 %v4576, %v4704
      %v4737 = vmax.f32 %v4577, %v4705
      %v4738 = vmax.f32 %v4578, %v4706
      %v4739 = vmax.f32 %v4579, %v4707
      %v4740 = vmax.f32 %v4580, %v4708
      %v4741 = vmax.f32 %v4581, %v4709
      %v4742 = vmax.f32 %v4582, %v4710
      %v4743 = vmax.f32 %v4583, %v4711
      %v4744 = vmax.f32 %v4584, %v4712
      %v4745 = vmax.f32 %v4585, %v4713
      %v4746 = vmax.f32 %v4586, %v4714
      %v4747 = vmax.f32 %v4587, %v4715
      %v4748 = vmax.f32 %v4588, %v4716
      %v4749 = vmax.f32 %v4589, %v4717
      %v4750 = vmax.f32 %v4590, %v4718
      %v4751 = vmax.f32 %v4591, %v4719
      %v4752 = vmax.f32 %v4592, %v4720
      %v4753 = vmax.f32 %v4593, %v4721
      %v4754 = vmax.f32 %v4594, %v4722
      %v4755 = vmax.f32 %v4595, %v4723
      %v4756 = vmax.f32 %v4596, %v4724
      %v4757 = vmax.f32 %v4597, %v4725
      %v4758 = vmax.f32 %v4598, %v4726
      %v4759 = vmax.f32 %v4081, %v4727
      %v4760 = vmax.f32 %v4082, %v4728
      %v4761 = vmax.f32 %v4083, %v4729
      %v4762 = vmax.f32 %v4084, %v4730
      %v4763 = vmax.f32 %v4085, %v4731
      %v4764 = vmax.f32 %v4086, %v4732
      %v4765 = vmax.f32 %v4087, %v4733
      %v4766 = vmax.f32 %v4088, %v4734
      %v4767 = vmax.f32 %v4089, %v4735
      %v4768 = vmax.f32 %v4090, %v4736
      %v4769 = vmax.f32 %v4091, %v4737
      %v4770 = vmax.f32 %v4092, %v4738
      %v4771 = vmax.f32 %v4093, %v4739
      %v4772 = vmax.f32 %v4094, %v4740
      %v4773 = vmax.f32 %v4095, %v4741
      %v4774 = vmax.f32 %v4096, %v4742
      %v4775 = vmax.f32 %v4097, %v4743
      %v4776 = vmax.f32 %v4098, %v4744
      %v4777 = vmax.f32 %v4099, %v4745
      %v4778 = vmax.f32 %v4100, %v4746
      %v4779 = vmax.f32 %v4101, %v4747
      %v4780 = vmax.f32 %v4102, %v4748
      %v4781 = vmax.f32 %v4103, %v4749
      %v4782 = vmax.f32 %v4104, %v4750
      %v4783 = vmax.f32 %v4105, %v4751
      %v4784 = vmax.f32 %v4106, %v4752
      %v4785 = vmax.f32 %v4107, %v4753
      %v4786 = vmax.f32 %v4108, %v4754
      %v4787 = vmax.f32 %v4109, %v4755
      %v4788 = vmax.f32 %v4110, %v4756
      %v4789 = vmax.f32 %v4111, %v4757
      %v4790 = vmax.f32 %v4112, %v4758
      %v4791 = vrot.slane %v4081, 2
      %v4792 = vrot.slane %v4082, 2
      %v4793 = vsel %vm2433, %v4791, %v4792
      %v4794 = vrot.slane %v4083, 2
      %v4795 = vsel %vm2433, %v4792, %v4794
      %v4796 = vrot.slane %v4084, 2
      %v4797 = vsel %vm2433, %v4794, %v4796
      %v4798 = vrot.slane %v4085, 2
      %v4799 = vsel %vm2433, %v4796, %v4798
      %v4800 = vrot.slane %v4086, 2
      %v4801 = vsel %vm2433, %v4798, %v4800
      %v4802 = vrot.slane %v4087, 2
      %v4803 = vsel %vm2433, %v4800, %v4802
      %v4804 = vrot.slane %v4088, 2
      %v4805 = vsel %vm2433, %v4802, %v4804
      %v4806 = vrot.slane %v4089, 2
      %v4807 = vsel %vm2433, %v4804, %v4806
      %v4808 = vrot.slane %v4090, 2
      %v4809 = vsel %vm2433, %v4806, %v4808
      %v4810 = vrot.slane %v4091, 2
      %v4811 = vsel %vm2433, %v4808, %v4810
      %v4812 = vrot.slane %v4092, 2
      %v4813 = vsel %vm2433, %v4810, %v4812
      %v4814 = vrot.slane %v4093, 2
      %v4815 = vsel %vm2433, %v4812, %v4814
      %v4816 = vrot.slane %v4094, 2
      %v4817 = vsel %vm2433, %v4814, %v4816
      %v4818 = vrot.slane %v4095, 2
      %v4819 = vsel %vm2433, %v4816, %v4818
      %v4820 = vrot.slane %v4096, 2
      %v4821 = vsel %vm2433, %v4818, %v4820
      %v4822 = vrot.slane %v4097, 2
      %v4823 = vsel %vm2433, %v4820, %v4822
      %v4824 = vrot.slane %v4098, 2
      %v4825 = vsel %vm2433, %v4822, %v4824
      %v4826 = vrot.slane %v4099, 2
      %v4827 = vsel %vm2433, %v4824, %v4826
      %v4828 = vrot.slane %v4100, 2
      %v4829 = vsel %vm2433, %v4826, %v4828
      %v4830 = vrot.slane %v4101, 2
      %v4831 = vsel %vm2433, %v4828, %v4830
      %v4832 = vrot.slane %v4102, 2
      %v4833 = vsel %vm2433, %v4830, %v4832
      %v4834 = vrot.slane %v4103, 2
      %v4835 = vsel %vm2433, %v4832, %v4834
      %v4836 = vrot.slane %v4104, 2
      %v4837 = vsel %vm2433, %v4834, %v4836
      %v4838 = vrot.slane %v4105, 2
      %v4839 = vsel %vm2433, %v4836, %v4838
      %v4840 = vrot.slane %v4106, 2
      %v4841 = vsel %vm2433, %v4838, %v4840
      %v4842 = vrot.slane %v4107, 2
      %v4843 = vsel %vm2433, %v4840, %v4842
      %v4844 = vrot.slane %v4108, 2
      %v4845 = vsel %vm2433, %v4842, %v4844
      %v4846 = vrot.slane %v4109, 2
      %v4847 = vsel %vm2433, %v4844, %v4846
      %v4848 = vrot.slane %v4110, 2
      %v4849 = vsel %vm2433, %v4846, %v4848
      %v4850 = vrot.slane %v4111, 2
      %v4851 = vsel %vm2433, %v4848, %v4850
      %v4852 = vrot.slane %v4112, 2
      %v4853 = vsel %vm2433, %v4850, %v4852
      %v4886 = vsel %vm2433, %v4852, -inf
      %v4887 = vsel %vm2562, %v4793, -inf
      %v4888 = vsel %vm2563, %v4795, -inf
      %v4889 = vsel %vm2564, %v4797, -inf
      %v4890 = vsel %vm2565, %v4799, -inf
      %v4891 = vsel %vm2566, %v4801, -inf
      %v4892 = vsel %vm2567, %v4803, -inf
      %v4893 = vsel %vm2568, %v4805, -inf
      %v4894 = vsel %vm2569, %v4807, -inf
      %v4895 = vsel %vm2570, %v4809, -inf
      %v4896 = vsel %vm2571, %v4811, -inf
      %v4897 = vsel %vm2572, %v4813, -inf
      %v4898 = vsel %vm2573, %v4815, -inf
      %v4899 = vsel %vm2574, %v4817, -inf
      %v4900 = vsel %vm2575, %v4819, -inf
      %v4901 = vsel %vm2576, %v4821, -inf
      %v4902 = vsel %vm2577, %v4823, -inf
      %v4903 = vsel %vm2578, %v4825, -inf
      %v4904 = vsel %vm2579, %v4827, -inf
      %v4905 = vsel %vm2580, %v4829, -inf
      %v4906 = vsel %vm2581, %v4831, -inf
      %v4907 = vsel %vm2582, %v4833, -inf
      %v4908 = vsel %vm2583, %v4835, -inf
      %v4909 = vsel %vm2584, %v4837, -inf
      %v4910 = vsel %vm2585, %v4839, -inf
      %v4911 = vsel %vm2586, %v4841, -inf
      %v4912 = vsel %vm2587, %v4843, -inf
      %v4913 = vsel %vm2588, %v4845, -inf
      %v4914 = vsel %vm2589, %v4847, -inf
      %v4915 = vsel %vm2590, %v4849, -inf
      %v4916 = vsel %vm2591, %v4851, -inf
      %v4917 = vsel %vm2592, %v4853, -inf
      %v4918 = vsel %vm2593, %v4886, -inf
      %v4919 = vrot.slane %v4081, 6
      %v4920 = vrot.slane %v4082, 6
      %v4921 = vsel %vm2626, %v4919, %v4920
      %v4922 = vrot.slane %v4083, 6
      %v4923 = vsel %vm2626, %v4920, %v4922
      %v4924 = vrot.slane %v4084, 6
      %v4925 = vsel %vm2626, %v4922, %v4924
      %v4926 = vrot.slane %v4085, 6
      %v4927 = vsel %vm2626, %v4924, %v4926
      %v4928 = vrot.slane %v4086, 6
      %v4929 = vsel %vm2626, %v4926, %v4928
      %v4930 = vrot.slane %v4087, 6
      %v4931 = vsel %vm2626, %v4928, %v4930
      %v4932 = vrot.slane %v4088, 6
      %v4933 = vsel %vm2626, %v4930, %v4932
      %v4934 = vrot.slane %v4089, 6
      %v4935 = vsel %vm2626, %v4932, %v4934
      %v4936 = vrot.slane %v4090, 6
      %v4937 = vsel %vm2626, %v4934, %v4936
      %v4938 = vrot.slane %v4091, 6
      %v4939 = vsel %vm2626, %v4936, %v4938
      %v4940 = vrot.slane %v4092, 6
      %v4941 = vsel %vm2626, %v4938, %v4940
      %v4942 = vrot.slane %v4093, 6
      %v4943 = vsel %vm2626, %v4940, %v4942
      %v4944 = vrot.slane %v4094, 6
      %v4945 = vsel %vm2626, %v4942, %v4944
      %v4946 = vrot.slane %v4095, 6
      %v4947 = vsel %vm2626, %v4944, %v4946
      %v4948 = vrot.slane %v4096, 6
      %v4949 = vsel %vm2626, %v4946, %v4948
      %v4950 = vrot.slane %v4097, 6
      %v4951 = vsel %vm2626, %v4948, %v4950
      %v4952 = vrot.slane %v4098, 6
      %v4953 = vsel %vm2626, %v4950, %v4952
      %v4954 = vrot.slane %v4099, 6
      %v4955 = vsel %vm2626, %v4952, %v4954
      %v4956 = vrot.slane %v4100, 6
      %v4957 = vsel %vm2626, %v4954, %v4956
      %v4958 = vrot.slane %v4101, 6
      %v4959 = vsel %vm2626, %v4956, %v4958
      %v4960 = vrot.slane %v4102, 6
      %v4961 = vsel %vm2626, %v4958, %v4960
      %v4962 = vrot.slane %v4103, 6
      %v4963 = vsel %vm2626, %v4960, %v4962
      %v4964 = vrot.slane %v4104, 6
      %v4965 = vsel %vm2626, %v4962, %v4964
      %v4966 = vrot.slane %v4105, 6
      %v4967 = vsel %vm2626, %v4964, %v4966
      %v4968 = vrot.slane %v4106, 6
      %v4969 = vsel %vm2626, %v4966, %v4968
      %v4970 = vrot.slane %v4107, 6
      %v4971 = vsel %vm2626, %v4968, %v4970
      %v4972 = vrot.slane %v4108, 6
      %v4973 = vsel %vm2626, %v4970, %v4972
      %v4974 = vrot.slane %v4109, 6
      %v4975 = vsel %vm2626, %v4972, %v4974
      %v4976 = vrot.slane %v4110, 6
      %v4977 = vsel %vm2626, %v4974, %v4976
      %v4978 = vrot.slane %v4111, 6
      %v4979 = vsel %vm2626, %v4976, %v4978
      %v4980 = vrot.slane %v4112, 6
      %v4981 = vsel %vm2626, %v4978, %v4980
      %v5014 = vsel %vm2626, -inf, %v4919
      %v5015 = vsel %vm2755, %v5014, -inf
      %v5016 = vsel %vm2756, %v4921, -inf
      %v5017 = vsel %vm2757, %v4923, -inf
      %v5018 = vsel %vm2758, %v4925, -inf
      %v5019 = vsel %vm2759, %v4927, -inf
      %v5020 = vsel %vm2760, %v4929, -inf
      %v5021 = vsel %vm2761, %v4931, -inf
      %v5022 = vsel %vm2762, %v4933, -inf
      %v5023 = vsel %vm2763, %v4935, -inf
      %v5024 = vsel %vm2764, %v4937, -inf
      %v5025 = vsel %vm2765, %v4939, -inf
      %v5026 = vsel %vm2766, %v4941, -inf
      %v5027 = vsel %vm2767, %v4943, -inf
      %v5028 = vsel %vm2768, %v4945, -inf
      %v5029 = vsel %vm2769, %v4947, -inf
      %v5030 = vsel %vm2770, %v4949, -inf
      %v5031 = vsel %vm2771, %v4951, -inf
      %v5032 = vsel %vm2772, %v4953, -inf
      %v5033 = vsel %vm2773, %v4955, -inf
      %v5034 = vsel %vm2774, %v4957, -inf
      %v5035 = vsel %vm2775, %v4959, -inf
      %v5036 = vsel %vm2776, %v4961, -inf
      %v5037 = vsel %vm2777, %v4963, -inf
      %v5038 = vsel %vm2778, %v4965, -inf
      %v5039 = vsel %vm2779, %v4967, -inf
      %v5040 = vsel %vm2780, %v4969, -inf
      %v5041 = vsel %vm2781, %v4971, -inf
      %v5042 = vsel %vm2782, %v4973, -inf
      %v5043 = vsel %vm2783, %v4975, -inf
      %v5044 = vsel %vm2784, %v4977, -inf
      %v5045 = vsel %vm2785, %v4979, -inf
      %v5046 = vsel %vm2786, %v4981, -inf
      %v5047 = vmax.f32 %v4887, %v5015
      %v5048 = vmax.f32 %v4888, %v5016
      %v5049 = vmax.f32 %v4889, %v5017
      %v5050 = vmax.f32 %v4890, %v5018
      %v5051 = vmax.f32 %v4891, %v5019
      %v5052 = vmax.f32 %v4892, %v5020
      %v5053 = vmax.f32 %v4893, %v5021
      %v5054 = vmax.f32 %v4894, %v5022
      %v5055 = vmax.f32 %v4895, %v5023
      %v5056 = vmax.f32 %v4896, %v5024
      %v5057 = vmax.f32 %v4897, %v5025
      %v5058 = vmax.f32 %v4898, %v5026
      %v5059 = vmax.f32 %v4899, %v5027
      %v5060 = vmax.f32 %v4900, %v5028
      %v5061 = vmax.f32 %v4901, %v5029
      %v5062 = vmax.f32 %v4902, %v5030
      %v5063 = vmax.f32 %v4903, %v5031
      %v5064 = vmax.f32 %v4904, %v5032
      %v5065 = vmax.f32 %v4905, %v5033
      %v5066 = vmax.f32 %v4906, %v5034
      %v5067 = vmax.f32 %v4907, %v5035
      %v5068 = vmax.f32 %v4908, %v5036
      %v5069 = vmax.f32 %v4909, %v5037
      %v5070 = vmax.f32 %v4910, %v5038
      %v5071 = vmax.f32 %v4911, %v5039
      %v5072 = vmax.f32 %v4912, %v5040
      %v5073 = vmax.f32 %v4913, %v5041
      %v5074 = vmax.f32 %v4914, %v5042
      %v5075 = vmax.f32 %v4915, %v5043
      %v5076 = vmax.f32 %v4916, %v5044
      %v5077 = vmax.f32 %v4917, %v5045
      %v5078 = vmax.f32 %v4918, %v5046
      %v5079 = vmax.f32 %v4759, %v5047
      %v5080 = vmax.f32 %v4760, %v5048
      %v5081 = vmax.f32 %v4761, %v5049
      %v5082 = vmax.f32 %v4762, %v5050
      %v5083 = vmax.f32 %v4763, %v5051
      %v5084 = vmax.f32 %v4764, %v5052
      %v5085 = vmax.f32 %v4765, %v5053
      %v5086 = vmax.f32 %v4766, %v5054
      %v5087 = vmax.f32 %v4767, %v5055
      %v5088 = vmax.f32 %v4768, %v5056
      %v5089 = vmax.f32 %v4769, %v5057
      %v5090 = vmax.f32 %v4770, %v5058
      %v5091 = vmax.f32 %v4771, %v5059
      %v5092 = vmax.f32 %v4772, %v5060
      %v5093 = vmax.f32 %v4773, %v5061
      %v5094 = vmax.f32 %v4774, %v5062
      %v5095 = vmax.f32 %v4775, %v5063
      %v5096 = vmax.f32 %v4776, %v5064
      %v5097 = vmax.f32 %v4777, %v5065
      %v5098 = vmax.f32 %v4778, %v5066
      %v5099 = vmax.f32 %v4779, %v5067
      %v5100 = vmax.f32 %v4780, %v5068
      %v5101 = vmax.f32 %v4781, %v5069
      %v5102 = vmax.f32 %v4782, %v5070
      %v5103 = vmax.f32 %v4783, %v5071
      %v5104 = vmax.f32 %v4784, %v5072
      %v5105 = vmax.f32 %v4785, %v5073
      %v5106 = vmax.f32 %v4786, %v5074
      %v5107 = vmax.f32 %v4787, %v5075
      %v5108 = vmax.f32 %v4788, %v5076
      %v5109 = vmax.f32 %v4789, %v5077
      %v5110 = vmax.f32 %v4790, %v5078
      %v5111 = vmax.f32 %v5083, %v5079
      %v5112 = vmax.f32 %v5084, %v5080
      %v5113 = vmax.f32 %v5085, %v5081
      %v5114 = vmax.f32 %v5086, %v5082
      %v5115 = vmax.f32 %v5087, %v5083
      %v5116 = vmax.f32 %v5088, %v5084
      %v5117 = vmax.f32 %v5089, %v5085
      %v5118 = vmax.f32 %v5090, %v5086
      %v5119 = vmax.f32 %v5091, %v5087
      %v5120 = vmax.f32 %v5092, %v5088
      %v5121 = vmax.f32 %v5093, %v5089
      %v5122 = vmax.f32 %v5094, %v5090
      %v5123 = vmax.f32 %v5095, %v5091
      %v5124 = vmax.f32 %v5096, %v5092
      %v5125 = vmax.f32 %v5097, %v5093
      %v5126 = vmax.f32 %v5098, %v5094
      %v5127 = vmax.f32 %v5099, %v5095
      %v5128 = vmax.f32 %v5100, %v5096
      %v5129 = vmax.f32 %v5101, %v5097
      %v5130 = vmax.f32 %v5102, %v5098
      %v5131 = vmax.f32 %v5103, %v5099
      %v5132 = vmax.f32 %v5104, %v5100
      %v5133 = vmax.f32 %v5105, %v5101
      %v5134 = vmax.f32 %v5106, %v5102
      %v5135 = vmax.f32 %v5107, %v5103
      %v5136 = vmax.f32 %v5108, %v5104
      %v5137 = vmax.f32 %v5109, %v5105
      %v5138 = vmax.f32 %v5110, %v5106
      %v5139 = vmax.f32 %v5079, %v5081
      %v5140 = vmax.f32 %v5080, %v5082
      %v5141 = vmax.f32 %v5081, %v5111
      %v5142 = vmax.f32 %v5082, %v5112
      %v5143 = vmax.f32 %v5083, %v5113
      %v5144 = vmax.f32 %v5084, %v5114
      %v5145 = vmax.f32 %v5085, %v5115
      %v5146 = vmax.f32 %v5086, %v5116
      %v5147 = vmax.f32 %v5087, %v5117
      %v5148 = vmax.f32 %v5088, %v5118
      %v5149 = vmax.f32 %v5089, %v5119
      %v5150 = vmax.f32 %v5090, %v5120
      %v5151 = vmax.f32 %v5091, %v5121
      %v5152 = vmax.f32 %v5092, %v5122
      %v5153 = vmax.f32 %v5093, %v5123
      %v5154 = vmax.f32 %v5094, %v5124
      %v5155 = vmax.f32 %v5095, %v5125
      %v5156 = vmax.f32 %v5096, %v5126
      %v5157 = vmax.f32 %v5097, %v5127
      %v5158 = vmax.f32 %v5098, %v5128
      %v5159 = vmax.f32 %v5099, %v5129
      %v5160 = vmax.f32 %v5100, %v5130
      %v5161 = vmax.f32 %v5101, %v5131
      %v5162 = vmax.f32 %v5102, %v5132
      %v5163 = vmax.f32 %v5103, %v5133
      %v5164 = vmax.f32 %v5104, %v5134
      %v5165 = vmax.f32 %v5105, %v5135
      %v5166 = vmax.f32 %v5106, %v5136
      %v5167 = vmax.f32 %v5107, %v5137
      %v5168 = vmax.f32 %v5108, %v5138
      %v5169 = vmax.f32 %v5109, %v5107
      %v5170 = vmax.f32 %v5110, %v5108
      %v5171 = vmax.f32 %v5087, %v5079
      %v5172 = vmax.f32 %v5088, %v5080
      %v5173 = vmax.f32 %v5089, %v5081
      %v5174 = vmax.f32 %v5090, %v5082
      %v5175 = vmax.f32 %v5091, %v5083
      %v5176 = vmax.f32 %v5092, %v5084
      %v5177 = vmax.f32 %v5093, %v5085
      %v5178 = vmax.f32 %v5094, %v5086
      %v5179 = vmax.f32 %v5095, %v5087
      %v5180 = vmax.f32 %v5096, %v5088
      %v5181 = vmax.f32 %v5097, %v5089
      %v5182 = vmax.f32 %v5098, %v5090
      %v5183 = vmax.f32 %v5099, %v5091
      %v5184 = vmax.f32 %v5100, %v5092
      %v5185 = vmax.f32 %v5101, %v5093
      %v5186 = vmax.f32 %v5102, %v5094
      %v5187 = vmax.f32 %v5103, %v5095
      %v5188 = vmax.f32 %v5104, %v5096
      %v5189 = vmax.f32 %v5105, %v5097
      %v5190 = vmax.f32 %v5106, %v5098
      %v5191 = vmax.f32 %v5107, %v5099
      %v5192 = vmax.f32 %v5108, %v5100
      %v5193 = vmax.f32 %v5109, %v5101
      %v5194 = vmax.f32 %v5110, %v5102
      %v5195 = vmax.f32 %v5139, %v5083
      %v5196 = vmax.f32 %v5140, %v5084
      %v5197 = vmax.f32 %v5141, %v5085
      %v5198 = vmax.f32 %v5142, %v5086
      %v5199 = vmax.f32 %v5143, %v5171
      %v5200 = vmax.f32 %v5144, %v5172
      %v5201 = vmax.f32 %v5145, %v5173
      %v5202 = vmax.f32 %v5146, %v5174
      %v5203 = vmax.f32 %v5147, %v5175
      %v5204 = vmax.f32 %v5148, %v5176
      %v5205 = vmax.f32 %v5149, %v5177
      %v5206 = vmax.f32 %v5150, %v5178
      %v5207 = vmax.f32 %v5151, %v5179
      %v5208 = vmax.f32 %v5152, %v5180
      %v5209 = vmax.f32 %v5153, %v5181
      %v5210 = vmax.f32 %v5154, %v5182
      %v5211 = vmax.f32 %v5155, %v5183
      %v5212 = vmax.f32 %v5156, %v5184
      %v5213 = vmax.f32 %v5157, %v5185
      %v5214 = vmax.f32 %v5158, %v5186
      %v5215 = vmax.f32 %v5159, %v5187
      %v5216 = vmax.f32 %v5160, %v5188
      %v5217 = vmax.f32 %v5161, %v5189
      %v5218 = vmax.f32 %v5162, %v5190
      %v5219 = vmax.f32 %v5163, %v5191
      %v5220 = vmax.f32 %v5164, %v5192
      %v5221 = vmax.f32 %v5165, %v5193
      %v5222 = vmax.f32 %v5166, %v5194
      %v5223 = vmax.f32 %v5167, %v5103
      %v5224 = vmax.f32 %v5168, %v5104
      %v5225 = vmax.f32 %v5169, %v5105
      %v5226 = vmax.f32 %v5170, %v5106
      %s5227 = scalar_lea.vmem %s347, 12
      %v5228 = vld [vmem:[%s5227] sm:$0xf]
      %v5230 = vsel %vm1625, %v5195, 0
      %v5233 = vsel %vm1625, %v5196, 0
      %v5236 = vsel %vm1625, %v5197, 0
      %v5239 = vsel %vm1625, %v5198, 0
      %v5242 = vsel %vm1625, %v5199, 0
      %v5245 = vsel %vm1625, %v5200, 0
      %v5248 = vsel %vm1625, %v5201, 0
      %v5251 = vsel %vm1625, %v5202, 0
      %v5254 = vsel %vm1625, %v5203, 0
      %v5257 = vsel %vm1625, %v5204, 0
      %v5260 = vsel %vm1625, %v5205, 0
      %v5263 = vsel %vm1625, %v5206, 0
      %v5266 = vsel %vm1625, %v5207, 0
      %v5269 = vsel %vm1625, %v5208, 0
      %v5272 = vsel %vm1625, %v5209, 0
      %v5275 = vsel %vm1625, %v5210, 0
      %v5278 = vsel %vm1625, %v5211, 0
      %v5281 = vsel %vm1625, %v5212, 0
      %v5284 = vsel %vm1625, %v5213, 0
      %v5287 = vsel %vm1625, %v5214, 0
      %v5290 = vsel %vm1625, %v5215, 0
      %v5293 = vsel %vm1625, %v5216, 0
      %v5296 = vsel %vm1625, %v5217, 0
      %v5299 = vsel %vm1625, %v5218, 0
      %v5302 = vsel %vm1625, %v5219, 0
      %v5305 = vsel %vm1625, %v5220, 0
      %v5308 = vsel %vm1625, %v5221, 0
      %v5311 = vsel %vm1625, %v5222, 0
      %v5314 = vsel %vm1625, %v5223, 0
      %v5317 = vsel %vm1625, %v5224, 0
      %v5320 = vsel %vm1625, %v5225, 0
      %v5323 = vsel %vm1625, %v5226, 0
      %v5326 = vsel %vm1722, %v5228, 0
      %5328 = vmatprep.subr.mxu0 0.0
      %5329 = vmatpush1.msra.mxu0 0.0
      %5330 = vmatprep.subr.mxu0 0.0
      %5331 = vmatpush1.msra.mxu0 0.0
      %5332 = vmatprep.subr.mxu0 0.0
      %5333 = vmatpush1.msra.mxu0 0.0
      %5334 = vmatprep.subr.mxu0 0.0
      %5335 = vmatpush1.msra.mxu0 0.0
      %5336 = vmatprep.subr.mxu0 0.0
      %5337 = vmatpush1.msra.mxu0 0.0
      %5338 = vmatprep.subr.mxu0 0.0
      %5339 = vmatpush1.msra.mxu0 0.0
      %5340 = vmatprep.subr.mxu0 0.0
      %5341 = vmatpush1.msra.mxu0 0.0
      %5342 = vmatprep.subr.mxu0 0.0
      %5343 = vmatpush1.msra.mxu0 0.0
      %5344 = vmatprep.subr.mxu0 0.0
      %5345 = vmatpush1.msra.mxu0 0.0
      %5346 = vmatprep.subr.mxu0 0.0
      %5347 = vmatpush1.msra.mxu0 0.0
      %5348 = vmatprep.subr.mxu0 0.0
      %5349 = vmatpush1.msra.mxu0 0.0
      %5350 = vmatprep.subr.mxu0 0.0
      %5351 = vmatpush1.msra.mxu0 0.0
      %5352 = vmatprep.subr.mxu0 0.0
      %5353 = vmatpush1.msra.mxu0 0.0
      %5354 = vmatprep.subr.mxu0 0.0
      %5355 = vmatpush1.msra.mxu0 0.0
      %5356 = vmatprep.subr.mxu0 0.0
      %5357 = vmatpush1.msra.mxu0 0.0
      %5358 = vmatprep.subr.mxu0 0.0
      %5359 = vmatpush1.msra.mxu0 %v5326
      %5360 = vmatprep.subr.mxu0 0.0
      %5361 = vmatpush2.msra.mxu0 0.0
      %5362 = vmatprep.subr.mxu0 0.0
      %5363 = vmatpush2.msra.mxu0 0.0
      %5364 = vmatprep.subr.mxu0 0.0
      %5365 = vmatpush2.msra.mxu0 0.0
      %5366 = vmatprep.subr.mxu0 0.0
      %5367 = vmatpush2.msra.mxu0 0.0
      %5368 = vmatprep.subr.mxu0 0.0
      %5369 = vmatpush2.msra.mxu0 0.0
      %5370 = vmatprep.subr.mxu0 0.0
      %5371 = vmatpush2.msra.mxu0 0.0
      %5372 = vmatprep.subr.mxu0 0.0
      %5373 = vmatpush2.msra.mxu0 0.0
      %5374 = vmatprep.subr.mxu0 0.0
      %5375 = vmatpush2.msra.mxu0 0.0
      %5376 = vmatprep.subr.mxu0 0.0
      %5377 = vmatpush2.msra.mxu0 0.0
      %5378 = vmatprep.subr.mxu0 0.0
      %5379 = vmatpush2.msra.mxu0 0.0
      %5380 = vmatprep.subr.mxu0 0.0
      %5381 = vmatpush2.msra.mxu0 0.0
      %5382 = vmatprep.subr.mxu0 0.0
      %5383 = vmatpush2.msra.mxu0 0.0
      %5384 = vmatprep.subr.mxu0 0.0
      %5385 = vmatpush2.msra.mxu0 0.0
      %5386 = vmatprep.subr.mxu0 0.0
      %5387 = vmatpush2.msra.mxu0 0.0
      %5388 = vmatprep.subr.mxu0 0.0
      %5389 = vmatpush2.msra.mxu0 0.0
      %5390 = vmatprep.subr.mxu0 0.0
      %5391 = vmatpush2.msra.mxu0 0.0
      %5392 = vmatprep.mubr.f32.mxu0 0.0
      %5393 = vmatmul.mubr.f32.gmra.mxu0 %v5230
      %v5394 = vpop.f32.mrf.mxu0
      %v5395 = vadd.f32 0.0, %v5394
      %v5396 = vpop.f32.mrf.mxu0
      %5397 = vmatprep.mubr.f32.mxu0 0.0
      %5398 = vmatmul.mubr.f32.gmra.mxu0 %v5233
      %v5399 = vpop.f32.mrf.mxu0
      %v5400 = vadd.f32 0.0, %v5399
      %v5401 = vpop.f32.mrf.mxu0
      %5402 = vmatprep.mubr.f32.mxu0 0.0
      %5403 = vmatmul.mubr.f32.gmra.mxu0 %v5236
      %v5404 = vpop.f32.mrf.mxu0
      %v5405 = vadd.f32 0.0, %v5404
      %v5406 = vpop.f32.mrf.mxu0
      %5407 = vmatprep.mubr.f32.mxu0 0.0
      %5408 = vmatmul.mubr.f32.gmra.mxu0 %v5239
      %v5409 = vpop.f32.mrf.mxu0
      %v5410 = vadd.f32 0.0, %v5409
      %v5411 = vpop.f32.mrf.mxu0
      %5412 = vmatprep.mubr.f32.mxu0 0.0
      %5413 = vmatmul.mubr.f32.gmra.mxu0 %v5242
      %v5414 = vpop.f32.mrf.mxu0
      %v5415 = vadd.f32 0.0, %v5414
      %v5416 = vpop.f32.mrf.mxu0
      %5417 = vmatprep.mubr.f32.mxu0 0.0
      %5418 = vmatmul.mubr.f32.gmra.mxu0 %v5245
      %v5419 = vpop.f32.mrf.mxu0
      %v5420 = vadd.f32 0.0, %v5419
      %v5421 = vpop.f32.mrf.mxu0
      %5422 = vmatprep.mubr.f32.mxu0 0.0
      %5423 = vmatmul.mubr.f32.gmra.mxu0 %v5248
      %v5424 = vpop.f32.mrf.mxu0
      %v5425 = vadd.f32 0.0, %v5424
      %v5426 = vpop.f32.mrf.mxu0
      %5427 = vmatprep.mubr.f32.mxu0 0.0
      %5428 = vmatmul.mubr.f32.gmra.mxu0 %v5251
      %v5429 = vpop.f32.mrf.mxu0
      %v5430 = vadd.f32 0.0, %v5429
      %v5431 = vpop.f32.mrf.mxu0
      %5432 = vmatprep.mubr.f32.mxu0 0.0
      %5433 = vmatmul.mubr.f32.gmra.mxu0 %v5254
      %v5434 = vpop.f32.mrf.mxu0
      %v5435 = vadd.f32 0.0, %v5434
      %v5436 = vpop.f32.mrf.mxu0
      %5437 = vmatprep.mubr.f32.mxu0 0.0
      %5438 = vmatmul.mubr.f32.gmra.mxu0 %v5257
      %v5439 = vpop.f32.mrf.mxu0
      %v5440 = vadd.f32 0.0, %v5439
      %v5441 = vpop.f32.mrf.mxu0
      %5442 = vmatprep.mubr.f32.mxu0 0.0
      %5443 = vmatmul.mubr.f32.gmra.mxu0 %v5260
      %v5444 = vpop.f32.mrf.mxu0
      %v5445 = vadd.f32 0.0, %v5444
      %v5446 = vpop.f32.mrf.mxu0
      %5447 = vmatprep.mubr.f32.mxu0 0.0
      %5448 = vmatmul.mubr.f32.gmra.mxu0 %v5263
      %v5449 = vpop.f32.mrf.mxu0
      %v5450 = vadd.f32 0.0, %v5449
      %v5451 = vpop.f32.mrf.mxu0
      %5452 = vmatprep.mubr.f32.mxu0 0.0
      %5453 = vmatmul.mubr.f32.gmra.mxu0 %v5266
      %v5454 = vpop.f32.mrf.mxu0
      %v5455 = vadd.f32 0.0, %v5454
      %v5456 = vpop.f32.mrf.mxu0
      %5457 = vmatprep.mubr.f32.mxu0 0.0
      %5458 = vmatmul.mubr.f32.gmra.mxu0 %v5269
      %v5459 = vpop.f32.mrf.mxu0
      %v5460 = vadd.f32 0.0, %v5459
      %v5461 = vpop.f32.mrf.mxu0
      %5462 = vmatprep.mubr.f32.mxu0 0.0
      %5463 = vmatmul.mubr.f32.gmra.mxu0 %v5272
      %v5464 = vpop.f32.mrf.mxu0
      %v5465 = vadd.f32 0.0, %v5464
      %v5466 = vpop.f32.mrf.mxu0
      %5467 = vmatprep.mubr.f32.mxu0 0.0
      %5468 = vmatmul.mubr.f32.gmra.mxu0 %v5275
      %v5469 = vpop.f32.mrf.mxu0
      %v5470 = vadd.f32 0.0, %v5469
      %v5471 = vpop.f32.mrf.mxu0
      %5472 = vmatprep.mubr.f32.mxu0 0.0
      %5473 = vmatmul.mubr.f32.gmra.mxu0 %v5278
      %v5474 = vpop.f32.mrf.mxu0
      %v5475 = vadd.f32 0.0, %v5474
      %v5476 = vpop.f32.mrf.mxu0
      %5477 = vmatprep.mubr.f32.mxu0 0.0
      %5478 = vmatmul.mubr.f32.gmra.mxu0 %v5281
      %v5479 = vpop.f32.mrf.mxu0
      %v5480 = vadd.f32 0.0, %v5479
      %v5481 = vpop.f32.mrf.mxu0
      %5482 = vmatprep.mubr.f32.mxu0 0.0
      %5483 = vmatmul.mubr.f32.gmra.mxu0 %v5284
      %v5484 = vpop.f32.mrf.mxu0
      %v5485 = vadd.f32 0.0, %v5484
      %v5486 = vpop.f32.mrf.mxu0
      %5487 = vmatprep.mubr.f32.mxu0 0.0
      %5488 = vmatmul.mubr.f32.gmra.mxu0 %v5287
      %v5489 = vpop.f32.mrf.mxu0
      %v5490 = vadd.f32 0.0, %v5489
      %v5491 = vpop.f32.mrf.mxu0
      %5492 = vmatprep.mubr.f32.mxu0 0.0
      %5493 = vmatmul.mubr.f32.gmra.mxu0 %v5290
      %v5494 = vpop.f32.mrf.mxu0
      %v5495 = vadd.f32 0.0, %v5494
      %v5496 = vpop.f32.mrf.mxu0
      %5497 = vmatprep.mubr.f32.mxu0 0.0
      %5498 = vmatmul.mubr.f32.gmra.mxu0 %v5293
      %v5499 = vpop.f32.mrf.mxu0
      %v5500 = vadd.f32 0.0, %v5499
      %v5501 = vpop.f32.mrf.mxu0
      %5502 = vmatprep.mubr.f32.mxu0 0.0
      %5503 = vmatmul.mubr.f32.gmra.mxu0 %v5296
      %v5504 = vpop.f32.mrf.mxu0
      %v5505 = vadd.f32 0.0, %v5504
      %v5506 = vpop.f32.mrf.mxu0
      %5507 = vmatprep.mubr.f32.mxu0 0.0
      %5508 = vmatmul.mubr.f32.gmra.mxu0 %v5299
      %v5509 = vpop.f32.mrf.mxu0
      %v5510 = vadd.f32 0.0, %v5509
      %v5511 = vpop.f32.mrf.mxu0
      %5512 = vmatprep.mubr.f32.mxu0 0.0
      %5513 = vmatmul.mubr.f32.gmra.mxu0 %v5302
      %v5514 = vpop.f32.mrf.mxu0
      %v5515 = vadd.f32 0.0, %v5514
      %v5516 = vpop.f32.mrf.mxu0
      %5517 = vmatprep.mubr.f32.mxu0 0.0
      %5518 = vmatmul.mubr.f32.gmra.mxu0 %v5305
      %v5519 = vpop.f32.mrf.mxu0
      %v5520 = vadd.f32 0.0, %v5519
      %v5521 = vpop.f32.mrf.mxu0
      %5522 = vmatprep.mubr.f32.mxu0 0.0
      %5523 = vmatmul.mubr.f32.gmra.mxu0 %v5308
      %v5524 = vpop.f32.mrf.mxu0
      %v5525 = vadd.f32 0.0, %v5524
      %v5526 = vpop.f32.mrf.mxu0
      %5527 = vmatprep.mubr.f32.mxu0 0.0
      %5528 = vmatmul.mubr.f32.gmra.mxu0 %v5311
      %v5529 = vpop.f32.mrf.mxu0
      %v5530 = vadd.f32 0.0, %v5529
      %v5531 = vpop.f32.mrf.mxu0
      %5532 = vmatprep.mubr.f32.mxu0 0.0
      %5533 = vmatmul.mubr.f32.gmra.mxu0 %v5314
      %v5534 = vpop.f32.mrf.mxu0
      %v5535 = vadd.f32 0.0, %v5534
      %v5536 = vpop.f32.mrf.mxu0
      %5537 = vmatprep.mubr.f32.mxu0 0.0
      %5538 = vmatmul.mubr.f32.gmra.mxu0 %v5317
      %v5539 = vpop.f32.mrf.mxu0
      %v5540 = vadd.f32 0.0, %v5539
      %v5541 = vpop.f32.mrf.mxu0
      %5542 = vmatprep.mubr.f32.mxu0 0.0
      %5543 = vmatmul.mubr.f32.gmra.mxu0 %v5320
      %v5544 = vpop.f32.mrf.mxu0
      %v5545 = vadd.f32 0.0, %v5544
      %v5546 = vpop.f32.mrf.mxu0
      %5547 = vmatprep.mubr.f32.mxu0 0.0
      %5548 = vmatmul.mubr.f32.gmra.mxu0 %v5323
      %v5549 = vpop.f32.mrf.mxu0
      %v5550 = vadd.f32 0.0, %v5549
      %v5551 = vpop.f32.mrf.mxu0
      %5552 = vdwg.mxu0
      %v5553 = vadd.f32 %v4439, %v5395
      %v5554 = vadd.f32 %v4440, %v5400
      %v5555 = vadd.f32 %v4441, %v5405
      %v5556 = vadd.f32 %v4442, %v5410
      %v5557 = vadd.f32 %v4443, %v5415
      %v5558 = vadd.f32 %v4444, %v5420
      %v5559 = vadd.f32 %v4445, %v5425
      %v5560 = vadd.f32 %v4446, %v5430
      %v5561 = vadd.f32 %v4447, %v5435
      %v5562 = vadd.f32 %v4448, %v5440
      %v5563 = vadd.f32 %v4449, %v5445
      %v5564 = vadd.f32 %v4450, %v5450
      %v5565 = vadd.f32 %v4451, %v5455
      %v5566 = vadd.f32 %v4452, %v5460
      %v5567 = vadd.f32 %v4453, %v5465
      %v5568 = vadd.f32 %v4454, %v5470
      %v5569 = vadd.f32 %v4455, %v5475
      %v5570 = vadd.f32 %v4456, %v5480
      %v5571 = vadd.f32 %v4457, %v5485
      %v5572 = vadd.f32 %v4458, %v5490
      %v5573 = vadd.f32 %v4459, %v5495
      %v5574 = vadd.f32 %v4460, %v5500
      %v5575 = vadd.f32 %v4461, %v5505
      %v5576 = vadd.f32 %v4462, %v5510
      %v5577 = vadd.f32 %v4463, %v5515
      %v5578 = vadd.f32 %v4464, %v5520
      %v5579 = vadd.f32 %v4465, %v5525
      %v5580 = vadd.f32 %v4466, %v5530
      %v5581 = vadd.f32 %v4467, %v5535
      %v5582 = vadd.f32 %v4468, %v5540
      %v5583 = vadd.f32 %v4469, %v5545
      %v5584 = vadd.f32 %v4470, %v5550
      %5585 = vst.msk [vmem:[#allocation2] sm:$0xff] %vm423, %v5553
      %5586 = vst.msk [vmem:[#allocation2 + $0x8] sm:$0xff] %vm423, %v5554
      %5587 = vst.msk [vmem:[#allocation2 + $0x10] sm:$0xff] %vm423, %v5555
      %5588 = vst.msk [vmem:[#allocation2 + $0x18] sm:$0xff] %vm423, %v5556
      %5589 = vst.msk [vmem:[#allocation2 + $0x20] sm:$0xff] %vm423, %v5557
      %5590 = vst.msk [vmem:[#allocation2 + $0x28] sm:$0xff] %vm423, %v5558
      %5591 = vst.msk [vmem:[#allocation2 + $0x30] sm:$0xff] %vm423, %v5559
      %5592 = vst.msk [vmem:[#allocation2 + $0x38] sm:$0xff] %vm423, %v5560
      %5593 = vst.msk [vmem:[#allocation2 + $0x40] sm:$0xff] %vm423, %v5561
      %5594 = vst.msk [vmem:[#allocation2 + $0x48] sm:$0xff] %vm423, %v5562
      %5595 = vst.msk [vmem:[#allocation2 + $0x50] sm:$0xff] %vm423, %v5563
      %5596 = vst.msk [vmem:[#allocation2 + $0x58] sm:$0xff] %vm423, %v5564
      %5597 = vst.msk [vmem:[#allocation2 + $0x60] sm:$0xff] %vm423, %v5565
      %5598 = vst.msk [vmem:[#allocation2 + $0x68] sm:$0xff] %vm423, %v5566
      %5599 = vst.msk [vmem:[#allocation2 + $0x70] sm:$0xff] %vm423, %v5567
      %5600 = vst.msk [vmem:[#allocation2 + $0x78] sm:$0xff] %vm423, %v5568
      %5601 = vst.msk [vmem:[#allocation2 + $0x80] sm:$0xff] %vm423, %v5569
      %5602 = vst.msk [vmem:[#allocation2 + $0x88] sm:$0xff] %vm423, %v5570
      %5603 = vst.msk [vmem:[#allocation2 + $0x90] sm:$0xff] %vm423, %v5571
      %5604 = vst.msk [vmem:[#allocation2 + $0x98] sm:$0xff] %vm423, %v5572
      %5605 = vst.msk [vmem:[#allocation2 + $0xa0] sm:$0xff] %vm423, %v5573
      %5606 = vst.msk [vmem:[#allocation2 + $0xa8] sm:$0xff] %vm423, %v5574
      %5607 = vst.msk [vmem:[#allocation2 + $0xb0] sm:$0xff] %vm423, %v5575
      %5608 = vst.msk [vmem:[#allocation2 + $0xb8] sm:$0xff] %vm423, %v5576
      %5609 = vst.msk [vmem:[#allocation2 + $0xc0] sm:$0xff] %vm423, %v5577
      %5610 = vst.msk [vmem:[#allocation2 + $0xc8] sm:$0xff] %vm423, %v5578
      %5611 = vst.msk [vmem:[#allocation2 + $0xd0] sm:$0xff] %vm423, %v5579
      %5612 = vst.msk [vmem:[#allocation2 + $0xd8] sm:$0xff] %vm423, %v5580
      %5613 = vst.msk [vmem:[#allocation2 + $0xe0] sm:$0xff] %vm423, %v5581
      %5614 = vst.msk [vmem:[#allocation2 + $0xe8] sm:$0xff] %vm423, %v5582
      %5615 = vst.msk [vmem:[#allocation2 + $0xf0] sm:$0xff] %vm423, %v5583
      %5616 = vst.msk [vmem:[#allocation2 + $0xf8] sm:$0xff] %vm423, %v5584
      // Predicated region
      $region53: #{tpu_custom_call.1} parent=47 // pred_check
        %p5617 = pneg %p353
      $region54: #{tpu_custom_call.1} parent=47 // pred_check_branch
        %5619 = sbr.rel (%p5617) target = $region56
      $region55: #{tpu_custom_call.1} parent=47 // pred_region
        %v5620 = vld [vmem:[#allocation2] sm:$0xff]
        %v5621 = vld [vmem:[#allocation2 + $0x8] sm:$0xff]
        %v5622 = vld [vmem:[#allocation2 + $0x10] sm:$0xff]
        %v5623 = vld [vmem:[#allocation2 + $0x18] sm:$0xff]
        %v5624 = vld [vmem:[#allocation2 + $0x20] sm:$0xff]
        %v5625 = vld [vmem:[#allocation2 + $0x28] sm:$0xff]
        %v5626 = vld [vmem:[#allocation2 + $0x30] sm:$0xff]
        %v5627 = vld [vmem:[#allocation2 + $0x38] sm:$0xff]
        %v5628 = vld [vmem:[#allocation2 + $0x40] sm:$0xff]
        %v5629 = vld [vmem:[#allocation2 + $0x48] sm:$0xff]
        %v5630 = vld [vmem:[#allocation2 + $0x50] sm:$0xff]
        %v5631 = vld [vmem:[#allocation2 + $0x58] sm:$0xff]
        %v5632 = vld [vmem:[#allocation2 + $0x60] sm:$0xff]
        %v5633 = vld [vmem:[#allocation2 + $0x68] sm:$0xff]
        %v5634 = vld [vmem:[#allocation2 + $0x70] sm:$0xff]
        %v5635 = vld [vmem:[#allocation2 + $0x78] sm:$0xff]
        %v5636 = vld [vmem:[#allocation2 + $0x80] sm:$0xff]
        %v5637 = vld [vmem:[#allocation2 + $0x88] sm:$0xff]
        %v5638 = vld [vmem:[#allocation2 + $0x90] sm:$0xff]
        %v5639 = vld [vmem:[#allocation2 + $0x98] sm:$0xff]
        %v5640 = vld [vmem:[#allocation2 + $0xa0] sm:$0xff]
        %v5641 = vld [vmem:[#allocation2 + $0xa8] sm:$0xff]
        %v5642 = vld [vmem:[#allocation2 + $0xb0] sm:$0xff]
        %v5643 = vld [vmem:[#allocation2 + $0xb8] sm:$0xff]
        %v5644 = vld [vmem:[#allocation2 + $0xc0] sm:$0xff]
        %v5645 = vld [vmem:[#allocation2 + $0xc8] sm:$0xff]
        %v5646 = vld [vmem:[#allocation2 + $0xd0] sm:$0xff]
        %v5647 = vld [vmem:[#allocation2 + $0xd8] sm:$0xff]
        %v5648 = vld [vmem:[#allocation2 + $0xe0] sm:$0xff]
        %v5649 = vld [vmem:[#allocation2 + $0xe8] sm:$0xff]
        %v5650 = vld [vmem:[#allocation2 + $0xf0] sm:$0xff]
        %v5651 = vld [vmem:[#allocation2 + $0xf8] sm:$0xff]
        %v5652 = vld [vmem:[%s5] sm:$0x1]
        %v5654 = vlaneseq
        %v5655 = vshrl.u32 %v5654, 7
        %v5656 = vsub.s32 0, %v5655
        %v5657 = vrot.slane %v5652, %v5656
        %v5659 = vmul.f32 %v5620, %v5657
        %v5660 = vmul.f32 %v5621, %v5657
        %v5661 = vmul.f32 %v5622, %v5657
        %v5662 = vmul.f32 %v5623, %v5657
        %v5663 = vmul.f32 %v5624, %v5657
        %v5664 = vmul.f32 %v5625, %v5657
        %v5665 = vmul.f32 %v5626, %v5657
        %v5666 = vmul.f32 %v5627, %v5657
        %v5667 = vmul.f32 %v5628, %v5657
        %v5668 = vmul.f32 %v5629, %v5657
        %v5669 = vmul.f32 %v5630, %v5657
        %v5670 = vmul.f32 %v5631, %v5657
        %v5671 = vmul.f32 %v5632, %v5657
        %v5672 = vmul.f32 %v5633, %v5657
        %v5673 = vmul.f32 %v5634, %v5657
        %v5674 = vmul.f32 %v5635, %v5657
        %v5675 = vmul.f32 %v5636, %v5657
        %v5676 = vmul.f32 %v5637, %v5657
        %v5677 = vmul.f32 %v5638, %v5657
        %v5678 = vmul.f32 %v5639, %v5657
        %v5679 = vmul.f32 %v5640, %v5657
        %v5680 = vmul.f32 %v5641, %v5657
        %v5681 = vmul.f32 %v5642, %v5657
        %v5682 = vmul.f32 %v5643, %v5657
        %v5683 = vmul.f32 %v5644, %v5657
        %v5684 = vmul.f32 %v5645, %v5657
        %v5685 = vmul.f32 %v5646, %v5657
        %v5686 = vmul.f32 %v5647, %v5657
        %v5687 = vmul.f32 %v5648, %v5657
        %v5688 = vmul.f32 %v5649, %v5657
        %v5689 = vmul.f32 %v5650, %v5657
        %v5690 = vmul.f32 %v5651, %v5657
        %v5691 = vld [vmem:[%s6] sm:$0x1]
        %v5693 = vlaneseq
        %v5694 = vshrl.u32 %v5693, 7
        %v5695 = vsub.s32 0, %v5694
        %v5696 = vrot.slane %v5691, %v5695
        %v5698 = vadd.f32 %v5659, %v5696
        %v5699 = vadd.f32 %v5660, %v5696
        %v5700 = vadd.f32 %v5661, %v5696
        %v5701 = vadd.f32 %v5662, %v5696
        %v5702 = vadd.f32 %v5663, %v5696
        %v5703 = vadd.f32 %v5664, %v5696
        %v5704 = vadd.f32 %v5665, %v5696
        %v5705 = vadd.f32 %v5666, %v5696
        %v5706 = vadd.f32 %v5667, %v5696
        %v5707 = vadd.f32 %v5668, %v5696
        %v5708 = vadd.f32 %v5669, %v5696
        %v5709 = vadd.f32 %v5670, %v5696
        %v5710 = vadd.f32 %v5671, %v5696
        %v5711 = vadd.f32 %v5672, %v5696
        %v5712 = vadd.f32 %v5673, %v5696
        %v5713 = vadd.f32 %v5674, %v5696
        %v5714 = vadd.f32 %v5675, %v5696
        %v5715 = vadd.f32 %v5676, %v5696
        %v5716 = vadd.f32 %v5677, %v5696
        %v5717 = vadd.f32 %v5678, %v5696
        %v5718 = vadd.f32 %v5679, %v5696
        %v5719 = vadd.f32 %v5680, %v5696
        %v5720 = vadd.f32 %v5681, %v5696
        %v5721 = vadd.f32 %v5682, %v5696
        %v5722 = vadd.f32 %v5683, %v5696
        %v5723 = vadd.f32 %v5684, %v5696
        %v5724 = vadd.f32 %v5685, %v5696
        %v5725 = vadd.f32 %v5686, %v5696
        %v5726 = vadd.f32 %v5687, %v5696
        %v5727 = vadd.f32 %v5688, %v5696
        %v5728 = vadd.f32 %v5689, %v5696
        %v5729 = vadd.f32 %v5690, %v5696
        %v5730 = vxor.u32 %v5698, 2147483648
        %v5731 = vxor.u32 %v5699, 2147483648
        %v5732 = vxor.u32 %v5700, 2147483648
        %v5733 = vxor.u32 %v5701, 2147483648
        %v5734 = vxor.u32 %v5702, 2147483648
        %v5735 = vxor.u32 %v5703, 2147483648
        %v5736 = vxor.u32 %v5704, 2147483648
        %v5737 = vxor.u32 %v5705, 2147483648
        %v5738 = vxor.u32 %v5706, 2147483648
        %v5739 = vxor.u32 %v5707, 2147483648
        %v5740 = vxor.u32 %v5708, 2147483648
        %v5741 = vxor.u32 %v5709, 2147483648
        %v5742 = vxor.u32 %v5710, 2147483648
        %v5743 = vxor.u32 %v5711, 2147483648
        %v5744 = vxor.u32 %v5712, 2147483648
        %v5745 = vxor.u32 %v5713, 2147483648
        %v5746 = vxor.u32 %v5714, 2147483648
        %v5747 = vxor.u32 %v5715, 2147483648
        %v5748 = vxor.u32 %v5716, 2147483648
        %v5749 = vxor.u32 %v5717, 2147483648
        %v5750 = vxor.u32 %v5718, 2147483648
        %v5751 = vxor.u32 %v5719, 2147483648
        %v5752 = vxor.u32 %v5720, 2147483648
        %v5753 = vxor.u32 %v5721, 2147483648
        %v5754 = vxor.u32 %v5722, 2147483648
        %v5755 = vxor.u32 %v5723, 2147483648
        %v5756 = vxor.u32 %v5724, 2147483648
        %v5757 = vxor.u32 %v5725, 2147483648
        %v5758 = vxor.u32 %v5726, 2147483648
        %v5759 = vxor.u32 %v5727, 2147483648
        %v5760 = vxor.u32 %v5728, 2147483648
        %v5761 = vxor.u32 %v5729, 2147483648
        %v5762 = vmul.f32 %v5730, 1.442695
        %v5763 = vpow.pop %v5762
        %v5764 = vmul.f32 %v5731, 1.442695
        %v5765 = vpow.pop %v5764
        %v5766 = vmul.f32 %v5732, 1.442695
        %v5767 = vpow.pop %v5766
        %v5768 = vmul.f32 %v5733, 1.442695
        %v5769 = vpow.pop %v5768
        %v5770 = vmul.f32 %v5734, 1.442695
        %v5771 = vpow.pop %v5770
        %v5772 = vmul.f32 %v5735, 1.442695
        %v5773 = vpow.pop %v5772
        %v5774 = vmul.f32 %v5736, 1.442695
        %v5775 = vpow.pop %v5774
        %v5776 = vmul.f32 %v5737, 1.442695
        %v5777 = vpow.pop %v5776
        %v5778 = vmul.f32 %v5738, 1.442695
        %v5779 = vpow.pop %v5778
        %v5780 = vmul.f32 %v5739, 1.442695
        %v5781 = vpow.pop %v5780
        %v5782 = vmul.f32 %v5740, 1.442695
        %v5783 = vpow.pop %v5782
        %v5784 = vmul.f32 %v5741, 1.442695
        %v5785 = vpow.pop %v5784
        %v5786 = vmul.f32 %v5742, 1.442695
        %v5787 = vpow.pop %v5786
        %v5788 = vmul.f32 %v5743, 1.442695
        %v5789 = vpow.pop %v5788
        %v5790 = vmul.f32 %v5744, 1.442695
        %v5791 = vpow.pop %v5790
        %v5792 = vmul.f32 %v5745, 1.442695
        %v5793 = vpow.pop %v5792
        %v5794 = vmul.f32 %v5746, 1.442695
        %v5795 = vpow.pop %v5794
        %v5796 = vmul.f32 %v5747, 1.442695
        %v5797 = vpow.pop %v5796
        %v5798 = vmul.f32 %v5748, 1.442695
        %v5799 = vpow.pop %v5798
        %v5800 = vmul.f32 %v5749, 1.442695
        %v5801 = vpow.pop %v5800
        %v5802 = vmul.f32 %v5750, 1.442695
        %v5803 = vpow.pop %v5802
        %v5804 = vmul.f32 %v5751, 1.442695
        %v5805 = vpow.pop %v5804
        %v5806 = vmul.f32 %v5752, 1.442695
        %v5807 = vpow.pop %v5806
        %v5808 = vmul.f32 %v5753, 1.442695
        %v5809 = vpow.pop %v5808
        %v5810 = vmul.f32 %v5754, 1.442695
        %v5811 = vpow.pop %v5810
        %v5812 = vmul.f32 %v5755, 1.442695
        %v5813 = vpow.pop %v5812
        %v5814 = vmul.f32 %v5756, 1.442695
        %v5815 = vpow.pop %v5814
        %v5816 = vmul.f32 %v5757, 1.442695
        %v5817 = vpow.pop %v5816
        %v5818 = vmul.f32 %v5758, 1.442695
        %v5819 = vpow.pop %v5818
        %v5820 = vmul.f32 %v5759, 1.442695
        %v5821 = vpow.pop %v5820
        %v5822 = vmul.f32 %v5760, 1.442695
        %v5823 = vpow.pop %v5822
        %v5824 = vmul.f32 %v5761, 1.442695
        %v5825 = vpow.pop %v5824
        %v5826 = vadd.f32 %v5763, 1.0
        %v5827 = vadd.f32 %v5765, 1.0
        %v5828 = vadd.f32 %v5767, 1.0
        %v5829 = vadd.f32 %v5769, 1.0
        %v5830 = vadd.f32 %v5771, 1.0
        %v5831 = vadd.f32 %v5773, 1.0
        %v5832 = vadd.f32 %v5775, 1.0
        %v5833 = vadd.f32 %v5777, 1.0
        %v5834 = vadd.f32 %v5779, 1.0
        %v5835 = vadd.f32 %v5781, 1.0
        %v5836 = vadd.f32 %v5783, 1.0
        %v5837 = vadd.f32 %v5785, 1.0
        %v5838 = vadd.f32 %v5787, 1.0
        %v5839 = vadd.f32 %v5789, 1.0
        %v5840 = vadd.f32 %v5791, 1.0
        %v5841 = vadd.f32 %v5793, 1.0
        %v5842 = vadd.f32 %v5795, 1.0
        %v5843 = vadd.f32 %v5797, 1.0
        %v5844 = vadd.f32 %v5799, 1.0
        %v5845 = vadd.f32 %v5801, 1.0
        %v5846 = vadd.f32 %v5803, 1.0
        %v5847 = vadd.f32 %v5805, 1.0
        %v5848 = vadd.f32 %v5807, 1.0
        %v5849 = vadd.f32 %v5809, 1.0
        %v5850 = vadd.f32 %v5811, 1.0
        %v5851 = vadd.f32 %v5813, 1.0
        %v5852 = vadd.f32 %v5815, 1.0
        %v5853 = vadd.f32 %v5817, 1.0
        %v5854 = vadd.f32 %v5819, 1.0
        %v5855 = vadd.f32 %v5821, 1.0
        %v5856 = vadd.f32 %v5823, 1.0
        %v5857 = vadd.f32 %v5825, 1.0
        %v5858 = vrcp.pop %v5826
        %v5859 = vmul.f32 1.0, %v5858
        %v5860 = vrcp.pop %v5827
        %v5861 = vmul.f32 1.0, %v5860
        %v5862 = vrcp.pop %v5828
        %v5863 = vmul.f32 1.0, %v5862
        %v5864 = vrcp.pop %v5829
        %v5865 = vmul.f32 1.0, %v5864
        %v5866 = vrcp.pop %v5830
        %v5867 = vmul.f32 1.0, %v5866
        %v5868 = vrcp.pop %v5831
        %v5869 = vmul.f32 1.0, %v5868
        %v5870 = vrcp.pop %v5832
        %v5871 = vmul.f32 1.0, %v5870
        %v5872 = vrcp.pop %v5833
        %v5873 = vmul.f32 1.0, %v5872
        %v5874 = vrcp.pop %v5834
        %v5875 = vmul.f32 1.0, %v5874
        %v5876 = vrcp.pop %v5835
        %v5877 = vmul.f32 1.0, %v5876
        %v5878 = vrcp.pop %v5836
        %v5879 = vmul.f32 1.0, %v5878
        %v5880 = vrcp.pop %v5837
        %v5881 = vmul.f32 1.0, %v5880
        %v5882 = vrcp.pop %v5838
        %v5883 = vmul.f32 1.0, %v5882
        %v5884 = vrcp.pop %v5839
        %v5885 = vmul.f32 1.0, %v5884
        %v5886 = vrcp.pop %v5840
        %v5887 = vmul.f32 1.0, %v5886
        %v5888 = vrcp.pop %v5841
        %v5889 = vmul.f32 1.0, %v5888
        %v5890 = vrcp.pop %v5842
        %v5891 = vmul.f32 1.0, %v5890
        %v5892 = vrcp.pop %v5843
        %v5893 = vmul.f32 1.0, %v5892
        %v5894 = vrcp.pop %v5844
        %v5895 = vmul.f32 1.0, %v5894
        %v5896 = vrcp.pop %v5845
        %v5897 = vmul.f32 1.0, %v5896
        %v5898 = vrcp.pop %v5846
        %v5899 = vmul.f32 1.0, %v5898
        %v5900 = vrcp.pop %v5847
        %v5901 = vmul.f32 1.0, %v5900
        %v5902 = vrcp.pop %v5848
        %v5903 = vmul.f32 1.0, %v5902
        %v5904 = vrcp.pop %v5849
        %v5905 = vmul.f32 1.0, %v5904
        %v5906 = vrcp.pop %v5850
        %v5907 = vmul.f32 1.0, %v5906
        %v5908 = vrcp.pop %v5851
        %v5909 = vmul.f32 1.0, %v5908
        %v5910 = vrcp.pop %v5852
        %v5911 = vmul.f32 1.0, %v5910
        %v5912 = vrcp.pop %v5853
        %v5913 = vmul.f32 1.0, %v5912
        %v5914 = vrcp.pop %v5854
        %v5915 = vmul.f32 1.0, %v5914
        %v5916 = vrcp.pop %v5855
        %v5917 = vmul.f32 1.0, %v5916
        %v5918 = vrcp.pop %v5856
        %v5919 = vmul.f32 1.0, %v5918
        %v5920 = vrcp.pop %v5857
        %v5921 = vmul.f32 1.0, %v5920
        %v5922 = vmul.f32 %v5698, %v5859
        %v5923 = vmul.f32 %v5699, %v5861
        %v5924 = vmul.f32 %v5700, %v5863
        %v5925 = vmul.f32 %v5701, %v5865
        %v5926 = vmul.f32 %v5702, %v5867
        %v5927 = vmul.f32 %v5703, %v5869
        %v5928 = vmul.f32 %v5704, %v5871
        %v5929 = vmul.f32 %v5705, %v5873
        %v5930 = vmul.f32 %v5706, %v5875
        %v5931 = vmul.f32 %v5707, %v5877
        %v5932 = vmul.f32 %v5708, %v5879
        %v5933 = vmul.f32 %v5709, %v5881
        %v5934 = vmul.f32 %v5710, %v5883
        %v5935 = vmul.f32 %v5711, %v5885
        %v5936 = vmul.f32 %v5712, %v5887
        %v5937 = vmul.f32 %v5713, %v5889
        %v5938 = vmul.f32 %v5714, %v5891
        %v5939 = vmul.f32 %v5715, %v5893
        %v5940 = vmul.f32 %v5716, %v5895
        %v5941 = vmul.f32 %v5717, %v5897
        %v5942 = vmul.f32 %v5718, %v5899
        %v5943 = vmul.f32 %v5719, %v5901
        %v5944 = vmul.f32 %v5720, %v5903
        %v5945 = vmul.f32 %v5721, %v5905
        %v5946 = vmul.f32 %v5722, %v5907
        %v5947 = vmul.f32 %v5723, %v5909
        %v5948 = vmul.f32 %v5724, %v5911
        %v5949 = vmul.f32 %v5725, %v5913
        %v5950 = vmul.f32 %v5726, %v5915
        %v5951 = vmul.f32 %v5727, %v5917
        %v5952 = vmul.f32 %v5728, %v5919
        %v5953 = vmul.f32 %v5729, %v5921
        %5954 = vst.msk [vmem:[%s352] sm:$0xff] %vm423, %v5922
        %5955 = vst.msk [vmem:[%s352 + $0x8] sm:$0xff] %vm423, %v5923
        %5956 = vst.msk [vmem:[%s352 + $0x10] sm:$0xff] %vm423, %v5924
        %5957 = vst.msk [vmem:[%s352 + $0x18] sm:$0xff] %vm423, %v5925
        %5958 = vst.msk [vmem:[%s352 + $0x20] sm:$0xff] %vm423, %v5926
        %5959 = vst.msk [vmem:[%s352 + $0x28] sm:$0xff] %vm423, %v5927
        %5960 = vst.msk [vmem:[%s352 + $0x30] sm:$0xff] %vm423, %v5928
        %5961 = vst.msk [vmem:[%s352 + $0x38] sm:$0xff] %vm423, %v5929
        %5962 = vst.msk [vmem:[%s352 + $0x40] sm:$0xff] %vm423, %v5930
        %5963 = vst.msk [vmem:[%s352 + $0x48] sm:$0xff] %vm423, %v5931
        %5964 = vst.msk [vmem:[%s352 + $0x50] sm:$0xff] %vm423, %v5932
        %5965 = vst.msk [vmem:[%s352 + $0x58] sm:$0xff] %vm423, %v5933
        %5966 = vst.msk [vmem:[%s352 + $0x60] sm:$0xff] %vm423, %v5934
        %5967 = vst.msk [vmem:[%s352 + $0x68] sm:$0xff] %vm423, %v5935
        %5968 = vst.msk [vmem:[%s352 + $0x70] sm:$0xff] %vm423, %v5936
        %5969 = vst.msk [vmem:[%s352 + $0x78] sm:$0xff] %vm423, %v5937
        %5970 = vst.msk [vmem:[%s352 + $0x80] sm:$0xff] %vm423, %v5938
        %5971 = vst.msk [vmem:[%s352 + $0x88] sm:$0xff] %vm423, %v5939
        %5972 = vst.msk [vmem:[%s352 + $0x90] sm:$0xff] %vm423, %v5940
        %5973 = vst.msk [vmem:[%s352 + $0x98] sm:$0xff] %vm423, %v5941
        %5974 = vst.msk [vmem:[%s352 + $0xa0] sm:$0xff] %vm423, %v5942
        %5975 = vst.msk [vmem:[%s352 + $0xa8] sm:$0xff] %vm423, %v5943
        %5976 = vst.msk [vmem:[%s352 + $0xb0] sm:$0xff] %vm423, %v5944
        %5977 = vst.msk [vmem:[%s352 + $0xb8] sm:$0xff] %vm423, %v5945
        %5978 = vst.msk [vmem:[%s352 + $0xc0] sm:$0xff] %vm423, %v5946
        %5979 = vst.msk [vmem:[%s352 + $0xc8] sm:$0xff] %vm423, %v5947
        %5980 = vst.msk [vmem:[%s352 + $0xd0] sm:$0xff] %vm423, %v5948
        %5981 = vst.msk [vmem:[%s352 + $0xd8] sm:$0xff] %vm423, %v5949
        %5982 = vst.msk [vmem:[%s352 + $0xe0] sm:$0xff] %vm423, %v5950
        %5983 = vst.msk [vmem:[%s352 + $0xe8] sm:$0xff] %vm423, %v5951
        %5984 = vst.msk [vmem:[%s352 + $0xf0] sm:$0xff] %vm423, %v5952
        %5985 = vst.msk [vmem:[%s352 + $0xf8] sm:$0xff] %vm423, %v5953
      $region56: #{tpu_custom_call.1} parent=47 // pred_fallthru
        _
      %p5986 = scmp.lt.s32.totalorder %s22, 1
      %s5987 = scalar_select %p5986, %s22, 1
      %s5988 = smul.addr %s5987, 32
      %s5989 = smul.addr %s5988, 8
      %s5990 = scalar_lea.vmem %s7, %s5989
      // Predicated region
      $region57: #{tpu_custom_call.1} parent=47 // pred_check
        %p5991 = pneg %p220
      $region58: #{tpu_custom_call.1} parent=47 // pred_check_branch
        %5993 = sbr.rel (%p5991) target = $region60
      $region59: #{tpu_custom_call.1} parent=47 // pred_region
        _
      $region60: #{tpu_custom_call.1} parent=47 // pred_fallthru
        _
    $region48: #{tpu_custom_call.1} parent=5 // pred_fallthru
      _
    %p5994 = scmp.le.s32.totalorder 2, %s13
    // Predicated region
    $region61: #{tpu_custom_call.1} parent=5 // pred_check
      %p5995 = pneg %p5994
    $region62: #{tpu_custom_call.1} parent=5 // pred_check_branch
      %5997 = sbr.rel (%p5995) target = $region64
    $region63: #{tpu_custom_call.1} parent=5 // pred_region
      %s5998 = ssub.s32 %s13, 2
      // Predicated region
      $region65: #{tpu_custom_call.1} parent=63 // pred_check
        %p5999 = pneg %p226
      $region66: #{tpu_custom_call.1} parent=63 // pred_check_branch
        %6001 = sbr.rel (%p5999) target = $region68
      $region67: #{tpu_custom_call.1} parent=63 // pred_region
        %p6002 = scmp.lt.s32.totalorder %s24, 1
        %s6003 = scalar_select %p6002, %s24, 1
        %s6004 = smul.addr %s6003, 32
        %s6005 = smul.addr %s6004, 8
        %s6006 = scalar_lea.vmem %s7, %s6005
      $region68: #{tpu_custom_call.1} parent=63 // pred_fallthru
        _
    $region64: #{tpu_custom_call.1} parent=5 // pred_fallthru
      _
  $region6: #{tpu_custom_call.1} parent=0 // loop_footer
    %s17 = sadd.s32 1, %s13
  $region7: #{tpu_custom_call.1} parent=0 // loop_footer_branch
    %12 = sbr.rel target = $region3
  $region8: #{tpu_custom_call.1} parent=0 // loop_exit
    _

</llo_original>
